<compile_context>
chip_gen: v6e
topology: v6e:2x2x1
jax: 0.10.0
libtpu: 0.0.40
codegen_flags: <defaults>
</compile_context>

<pallas_src>
import numpy as np

import jax
import jax.numpy as jnp
from jax.experimental import pallas as pl
from jax.experimental.pallas import tpu as pltpu

# ----------------------------- configuration (scaled-down) -------------------
B_IMG = 2            # batch
C_IN = 3             # input image channels (RGB)
IMG = 32             # input spatial size
PATCH = 8            # stem patch size -> 4x4 feature map
FH = FW = IMG // PATCH
SPAT = FH * FW       # spatial positions per image
M_ROWS = B_IMG * SPAT
PC = PATCH * PATCH * C_IN
FEAT = 128           # stands in for 2048 backbone channels
PLANES = 32          # stands in for 512 bottleneck planes
RED_SE = 64          # stands in for 1024 (SE-ResNeXt reductions)
PART_FEATS = 64      # stands in for cfg.MODEL.PART_FEATS (ResNet branch)
IBN_RED = 128        # stands in for 2048 (IBN reductions)
NH = 3 * IBN_RED     # fused head width (384 = 3*128, lane-dense)
EPS = 1e-5


# ----------------------------- fused branch kernel ----------------------------
def _bag_reid_branch_kernel(patches_ref, w_stem_ref, s_stem_ref,
                            w1_ref, s1_ref, sel_ref, w2_ref, s2_ref,
                            w3_ref, s3_ref, wg_ref, wp_ref, sh_ref,
                            out_ref, glob_s, tmax_s):
    f32 = jnp.float32
    bf16 = jnp.bfloat16

    # ---- stem: patch-embed conv + folded BN + ReLU (backbone stand-in) ------
    feat = jnp.dot(patches_ref[...], w_stem_ref[0], preferred_element_type=f32)
    feat = jnp.maximum(feat + s_stem_ref[0], 0.0)            # (M, FEAT) f32
    feat_b = feat.astype(bf16)

    # ---- global average pool (AdaptiveAvgPool2d((1,1))), fused --------------
    for i in range(B_IMG):
        rows = feat[i * SPAT:(i + 1) * SPAT, :]
        glob_s[i:i + 1, :] = jnp.mean(rows, axis=0, keepdims=True)

    # ---- Bottleneck(FEAT, PLANES): 1x1 -> BN -> ReLU ------------------------
    out1 = jnp.dot(feat_b, w1_ref[0], preferred_element_type=f32)
    out1 = jnp.maximum(out1 + s1_ref[0], 0.0)                 # (M, PLANES)
    out1_b = out1.astype(bf16)

    # ---- 3x3 conv (pad=1), in-kernel: 9 shifted-neighbor matmuls ------------
    w2_all = w2_ref[0]                                        # (9*PLANES, PLANES)
    sel_all = sel_ref[...]                                    # (9*M, M) one-hot shifts
    acc = jnp.zeros((M_ROWS, PLANES), f32)
    for k in range(9):
        sel_k = sel_all[k * M_ROWS:(k + 1) * M_ROWS, :]
        shifted = jnp.dot(sel_k, out1_b,
                          preferred_element_type=f32).astype(bf16)
        w2_k = w2_all[k * PLANES:(k + 1) * PLANES, :]
        acc = acc + jnp.dot(shifted, w2_k, preferred_element_type=f32)
    out2 = jnp.maximum(acc + s2_ref[0], 0.0)                  # (M, PLANES)
    out2_b = out2.astype(bf16)

    # ---- 1x1 conv3 + folded BN, residual add + ReLU fused in epilogue -------
    out3 = jnp.dot(out2_b, w3_ref[0], preferred_element_type=f32)
    xp = jnp.maximum(out3 + s3_ref[0] + feat, 0.0)            # (M, FEAT)

    # ---- global max pool (batch_drop is identity in eval), fused ------------
    for i in range(B_IMG):
        rows = xp[i * SPAT:(i + 1) * SPAT, :]
        tmax_s[i:i + 1, :] = jnp.max(rows, axis=0, keepdims=True)

    # ---- fused lane-dense heads: global_reduction / passthrough / part_red --
    g = glob_s[...].astype(bf16)                              # (B, FEAT)
    t = tmax_s[...].astype(bf16)                              # (B, FEAT)
    head = jnp.dot(g, wg_ref[0], preferred_element_type=f32)
    head = head + jnp.dot(t, wp_ref[0], preferred_element_type=f32)
    head = jnp.maximum(head + sh_ref[0], 0.0)                 # (B, NH)
    out_ref[0] = head.astype(out_ref.dtype)


def _fused_branches(params, patches):
    """Run all three branch heads in one pallas_call (grid over branches)."""
    return pl.pallas_call(
        _bag_reid_branch_kernel,
        out_shape=jax.ShapeDtypeStruct((3, B_IMG, NH), jnp.float32),
        grid=(3,),
        in_specs=[
            pl.BlockSpec((M_ROWS, PC), lambda b: (0, 0)),                # patches (shared)
            pl.BlockSpec((1, PC, FEAT), lambda b: (b, 0, 0)),            # stem W (BN folded)
            pl.BlockSpec((1, 1, FEAT), lambda b: (b, 0, 0)),             # stem shift
            pl.BlockSpec((1, FEAT, PLANES), lambda b: (b, 0, 0)),        # bottleneck w1
            pl.BlockSpec((1, 1, PLANES), lambda b: (b, 0, 0)),           # shift1
            pl.BlockSpec((9 * M_ROWS, M_ROWS), lambda b: (0, 0)),        # 3x3 shift sel (shared)
            pl.BlockSpec((1, 9 * PLANES, PLANES), lambda b: (b, 0, 0)),  # bottleneck w2
            pl.BlockSpec((1, 1, PLANES), lambda b: (b, 0, 0)),           # shift2
            pl.BlockSpec((1, PLANES, FEAT), lambda b: (b, 0, 0)),        # bottleneck w3
            pl.BlockSpec((1, 1, FEAT), lambda b: (b, 0, 0)),             # shift3
            pl.BlockSpec((1, FEAT, NH), lambda b: (b, 0, 0)),            # head W (glob path)
            pl.BlockSpec((1, FEAT, NH), lambda b: (b, 0, 0)),            # head W (maxpool path)
            pl.BlockSpec((1, 1, NH), lambda b: (b, 0, 0)),               # head shift
        ],
        out_specs=pl.BlockSpec((1, B_IMG, NH), lambda b: (b, 0, 0)),
        scratch_shapes=[pltpu.VMEM((B_IMG, FEAT), jnp.float32),   # avg-pool scratch
                        pltpu.VMEM((B_IMG, FEAT), jnp.float32)],  # max-pool scratch
        compiler_params=pltpu.CompilerParams(
            dimension_semantics=("parallel",)),
    )(patches, params["w_stem"], params["s_stem"], params["w1"], params["s1"],
      params["sel"], params["w2"], params["s2"], params["w3"], params["s3"],
      params["wg_head"], params["wp_head"], params["s_head"])


# ----------------------------- JAX glue ---------------------------------------
def patchify(x_nhwc, ph, pw):
    # non-overlapping patches (stem conv, stride == kernel)
    B, H, W, C = x_nhwc.shape
    x = x_nhwc.reshape(B, H // ph, ph, W // pw, pw, C)
    x = x.transpose(0, 1, 3, 2, 4, 5).reshape(B, H // ph, W // pw, ph * pw * C)
    return x


def bag_reid_forward(params, x_nchw):
    # layout: accept NCHW (PyTorch convention), NHWC internally.
    x = jnp.transpose(x_nchw, (0, 2, 3, 1)).astype(jnp.float32)
    patches = patchify(x, PATCH, PATCH).reshape(M_ROWS, PC).astype(jnp.bfloat16)
    y = _fused_branches(params, patches)                 # (3, B, NH) padded slabs
    out1 = y[0, :, :2 * RED_SE]                          # SE-ResNeXt: [gred, pred]
    out2 = y[1, :, :FEAT + PART_FEATS]                   # ResNet: [avgpool, pred]
    out3 = y[2, :, :3 * IBN_RED]                         # IBN: [gred, part1, part2]
    return jnp.concatenate([out1, out2, out3], axis=1)


# ----------------------------- parameter init ---------------------------------
def _kaiming(key, cin, cout):
    return jax.random.normal(key, (cin, cout), jnp.float32) * (2.0 / cin) ** 0.5


def _bn_affine(key, c):
    kg, kb, km, kv = jax.random.split(key, 4)
    gamma = 1.0 + 0.1 * jax.random.normal(kg, (c,), jnp.float32)
    beta = 0.1 * jax.random.normal(kb, (c,), jnp.float32)
    mean = 0.1 * jax.random.normal(km, (c,), jnp.float32)
    var = jnp.abs(1.0 + 0.1 * jax.random.normal(kv, (c,), jnp.float32))
    scale = gamma / jnp.sqrt(var + EPS)
    shift = beta - mean * scale
    return scale, shift


def _conv_bn(key, cin, cout, bias=False):
    # Conv/Linear (+ optional bias) followed by eval-mode BN; BN scale folded
    # into the weight, bias folded into the shift.
    kw, kb, kn = jax.random.split(key, 3)
    w = _kaiming(kw, cin, cout)
    scale, shift = _bn_affine(kn, cout)
    if bias:
        b = 0.01 * jax.random.normal(kb, (cout,), jnp.float32)
        shift = b * scale + shift
    return w * scale[None, :], shift


def _init_branch(key, gred_out, pred_out, has_gred):
    ks = jax.random.split(key, 6)
    w_stem, s_stem = _conv_bn(ks[0], PC, FEAT)               # stem conv + BN (+ReLU)
    w1, s1 = _conv_bn(ks[1], FEAT, PLANES)                   # bottleneck 1x1
    kw2, kbn2 = jax.random.split(ks[2])                      # bottleneck 3x3 (9 taps)
    sc2, s2 = _bn_affine(kbn2, PLANES)
    w2 = _kaiming(kw2, 9 * PLANES, PLANES) * sc2[None, :]
    w3, s3 = _conv_bn(ks[3], PLANES, FEAT)                   # bottleneck 1x1
    if has_gred:
        wg, sg = _conv_bn(ks[4], FEAT, gred_out, bias=True)  # global_reduction
    else:
        # ResNet branch: global feature is just the pooled vector (ReLU is a
        # no-op since the pooled features are non-negative).
        wg = jnp.eye(FEAT, dtype=jnp.float32)
        sg = jnp.zeros((FEAT,), jnp.float32)
    wp, sp = _conv_bn(ks[5], FEAT, pred_out, bias=True)      # part_reduction
    return dict(w_stem=w_stem, s_stem=s_stem, w1=w1, s1=s1, w2=w2, s2=s2,
                w3=w3, s3=s3, wg=wg, sg=sg, wp=wp, sp=sp)


def _place_cols(w, start):
    return jnp.pad(w, ((0, 0), (start, NH - start - w.shape[1])))


def _place_vec(v, start):
    return jnp.pad(v, (start, NH - start - v.shape[0]))


def _build_shift_sel(batch, fh, fw):
    # one-hot neighbor-selection matrices for a 3x3 conv, pad=1, on the
    # flattened (batch*fh*fw) row layout; built once on the host.
    m = batch * fh * fw
    sel = np.zeros((9, m, m), np.float32)
    k = 0
    for dh in (-1, 0, 1):
        for dw in (-1, 0, 1):
            for b in range(batch):
                for h in range(fh):
                    for w in range(fw):
                        hh, ww = h + dh, w + dw
                        if 0 <= hh < fh and 0 <= ww < fw:
                            r = (b * fh + h) * fw + w
                            q = (b * fh + hh) * fw + ww
                            sel[k, r, q] = 1.0
            k += 1
    return sel.reshape(9 * m, m)


def init_params(key):
    k1, k2, k3 = jax.random.split(key, 3)
    b1 = _init_branch(k1, RED_SE, RED_SE, True)        # BagReID_SE_RESNEXT head
    b2 = _init_branch(k2, FEAT, PART_FEATS, False)     # BagReID_RESNET head
    b3 = _init_branch(k3, IBN_RED, IBN_RED, True)      # BagReID_IBN head

    # lane-dense fused head weights (NH = 384 columns, zero-padded):
    #  branch0: [gred(64) | pred(64)        | 0]
    #  branch1: [avgpool passthrough(128)   | pred(64) | 0]
    #  branch2: [gred(128)| part1 pred(128) | part2 pred(128)  (== part1, eval)]
    wg = jnp.stack([_place_cols(b1["wg"], 0),
                    _place_cols(b2["wg"], 0),
                    _place_cols(b3["wg"], 0)])
    wp = jnp.stack([_place_cols(b1["wp"], RED_SE),
                    _place_cols(b2["wp"], FEAT),
                    _place_cols(b3["wp"], IBN_RED) + _place_cols(b3["wp"], 2 * IBN_RED)])
    sh = jnp.stack([
        _place_vec(b1["sg"], 0) + _place_vec(b1["sp"], RED_SE),
        _place_vec(b2["sg"], 0) + _place_vec(b2["sp"], FEAT),
        _place_vec(b3["sg"], 0) + _place_vec(b3["sp"], IBN_RED)
        + _place_vec(b3["sp"], 2 * IBN_RED),
    ])

    def stack(name):
        return jnp.stack([b1[name], b2[name], b3[name]])

    bf = jnp.bfloat16
    return dict(
        w_stem=stack("w_stem").astype(bf), s_stem=stack("s_stem")[:, None, :],
        w1=stack("w1").astype(bf), s1=stack("s1")[:, None, :],
        w2=stack("w2").astype(bf), s2=stack("s2")[:, None, :],
        w3=stack("w3").astype(bf), s3=stack("s3")[:, None, :],
        wg_head=wg.astype(bf), wp_head=wp.astype(bf), s_head=sh[:, None, :],
        sel=jnp.asarray(_build_shift_sel(B_IMG, FH, FW), bf),
    )


# ----------------------------- main -------------------------------------------
if __name__ == "__main__":
    key = jax.random.PRNGKey(0)
    k_params, k_x = jax.random.split(key)
    params = init_params(k_params)
    x = jax.random.normal(k_x, (B_IMG, C_IN, IMG, IMG), jnp.float32)  # NCHW

    fwd = jax.jit(bag_reid_forward)
    out = jax.block_until_ready(fwd(params, x))

    expected_dim = 2 * RED_SE + (FEAT + PART_FEATS) + 3 * IBN_RED
    assert out.shape == (B_IMG, expected_dim), out.shape
    assert jnp.all(jnp.isfinite(out))
    print("KERNEL_OK")
</pallas_src>

<mosaic_0001>
module attributes {stable_mosaic.version = 11 : i64} {
  func.func @_bag_reid_branch_kernel(%arg0: i32, %arg1: memref<32x192xbf16, #tpu.memory_space<vmem>>, %arg2: memref<1x192x128xbf16, #tpu.memory_space<vmem>>, %arg3: memref<1x1x128xf32, #tpu.memory_space<vmem>>, %arg4: memref<1x128x32xbf16, #tpu.memory_space<vmem>>, %arg5: memref<1x1x32xf32, #tpu.memory_space<vmem>>, %arg6: memref<288x32xbf16, #tpu.memory_space<vmem>>, %arg7: memref<1x288x32xbf16, #tpu.memory_space<vmem>>, %arg8: memref<1x1x32xf32, #tpu.memory_space<vmem>>, %arg9: memref<1x32x128xbf16, #tpu.memory_space<vmem>>, %arg10: memref<1x1x128xf32, #tpu.memory_space<vmem>>, %arg11: memref<1x128x384xbf16, #tpu.memory_space<vmem>>, %arg12: memref<1x128x384xbf16, #tpu.memory_space<vmem>>, %arg13: memref<1x1x384xf32, #tpu.memory_space<vmem>>, %arg14: memref<1x2x384xf32, #tpu.memory_space<vmem>>, %arg15: memref<2x128xf32, #tpu.memory_space<vmem>>, %arg16: memref<2x128xf32, #tpu.memory_space<vmem>>) attributes {dimension_semantics = [#tpu.dimension_semantics<parallel>], iteration_bounds = array<i64: 3>, scalar_prefetch = 0 : i64, scratch_operands = 2 : i64, tpu.core_type = #tpu.core_type<tc>, window_params = [{pipeline_mode = #tpu.pipeline_mode<synchronous>, transform_indices = @transform_0, window_bounds = array<i64: 32, 192>}, {transform_indices = @transform_1, window_bounds = array<i64: 1, 192, 128>}, {transform_indices = @transform_2, window_bounds = array<i64: 1, 1, 128>}, {transform_indices = @transform_3, window_bounds = array<i64: 1, 128, 32>}, {transform_indices = @transform_4, window_bounds = array<i64: 1, 1, 32>}, {pipeline_mode = #tpu.pipeline_mode<synchronous>, transform_indices = @transform_5, window_bounds = array<i64: 288, 32>}, {transform_indices = @transform_6, window_bounds = array<i64: 1, 288, 32>}, {transform_indices = @transform_7, window_bounds = array<i64: 1, 1, 32>}, {transform_indices = @transform_8, window_bounds = array<i64: 1, 32, 128>}, {transform_indices = @transform_9, window_bounds = array<i64: 1, 1, 128>}, {transform_indices = @transform_10, window_bounds = array<i64: 1, 128, 384>}, {transform_indices = @transform_11, window_bounds = array<i64: 1, 128, 384>}, {transform_indices = @transform_12, window_bounds = array<i64: 1, 1, 384>}, {transform_indices = @transform_13, window_bounds = array<i64: 1, 2, 384>}]} {
    %c0 = arith.constant 0 : index
    %c0_0 = arith.constant 0 : index
    %0 = vector.load %arg1[%c0, %c0_0] : memref<32x192xbf16, #tpu.memory_space<vmem>>, vector<32x192xbf16>
    %c0_1 = arith.constant 0 : index
    %c0_2 = arith.constant 0 : index
    %c0_3 = arith.constant 0 : index
    %1 = vector.load %arg2[%c0_1, %c0_2, %c0_3] : memref<1x192x128xbf16, #tpu.memory_space<vmem>>, vector<1x192x128xbf16>
    %2 = vector.shape_cast %1 : vector<1x192x128xbf16> to vector<192x128xbf16>
    %cst = arith.constant dense<0.000000e+00> : vector<32x128xf32>
    %3 = tpu.matmul %0, %2, %cst {dimension_numbers = #tpu.dot_dimension_numbers<[1], [0], [0], [1], [0, 0, 1, 1], [], []>} : vector<32x192xbf16>, vector<192x128xbf16>, vector<32x128xf32> -> vector<32x128xf32>
    %c0_4 = arith.constant 0 : index
    %c0_5 = arith.constant 0 : index
    %c0_6 = arith.constant 0 : index
    %4 = vector.load %arg3[%c0_4, %c0_5, %c0_6] : memref<1x1x128xf32, #tpu.memory_space<vmem>>, vector<1x1x128xf32>
    %5 = vector.shape_cast %4 : vector<1x1x128xf32> to vector<1x128xf32>
    %6 = vector.broadcast %5 : vector<1x128xf32> to vector<32x128xf32>
    %7 = arith.addf %3, %6 : vector<32x128xf32>
    %cst_7 = arith.constant 0.000000e+00 : f32
    %8 = vector.broadcast %cst_7 : f32 to vector<32x128xf32>
    %9 = arith.maximumf %7, %8 : vector<32x128xf32>
    %10 = arith.truncf %9 : vector<32x128xf32> to vector<32x128xbf16>
    %11 = vector.extract_strided_slice %9 {offsets = [0, 0], sizes = [16, 128], strides = [1, 1]} : vector<32x128xf32> to vector<16x128xf32>
    %cst_8 = arith.constant dense<0.000000e+00> : vector<128xf32>
    %12 = vector.multi_reduction <add>, %11, %cst_8 [0] : vector<16x128xf32> to vector<128xf32>
    %13 = vector.shape_cast %12 : vector<128xf32> to vector<1x128xf32>
    %cst_9 = arith.constant 1.600000e+01 : f32
    %14 = vector.broadcast %cst_9 : f32 to vector<1x128xf32>
    %15 = arith.divf %13, %14 : vector<1x128xf32>
    %c0_10 = arith.constant 0 : index
    %c0_11 = arith.constant 0 : index
    %16 = vector.load %arg15[%c0_10, %c0_11] : memref<2x128xf32, #tpu.memory_space<vmem>>, vector<1x128xf32>
    tpu.vector_store %arg15[%c0_10, %c0_11], %15 {strides = array<i32>} : memref<2x128xf32, #tpu.memory_space<vmem>>, vector<1x128xf32>,
    %17 = vector.extract_strided_slice %9 {offsets = [16, 0], sizes = [16, 128], strides = [1, 1]} : vector<32x128xf32> to vector<16x128xf32>
    %cst_12 = arith.constant dense<0.000000e+00> : vector<128xf32>
    %18 = vector.multi_reduction <add>, %17, %cst_12 [0] : vector<16x128xf32> to vector<128xf32>
    %19 = vector.shape_cast %18 : vector<128xf32> to vector<1x128xf32>
    %cst_13 = arith.constant 1.600000e+01 : f32
    %20 = vector.broadcast %cst_13 : f32 to vector<1x128xf32>
    %21 = arith.divf %19, %20 : vector<1x128xf32>
    %c1 = arith.constant 1 : index
    %c0_14 = arith.constant 0 : index
    %22 = vector.load %arg15[%c1, %c0_14] : memref<2x128xf32, #tpu.memory_space<vmem>>, vector<1x128xf32>
    tpu.vector_store %arg15[%c1, %c0_14], %21 {strides = array<i32>} : memref<2x128xf32, #tpu.memory_space<vmem>>, vector<1x128xf32>,
    %c0_15 = arith.constant 0 : index
    %c0_16 = arith.constant 0 : index
    %c0_17 = arith.constant 0 : index
    %23 = vector.load %arg4[%c0_15, %c0_16, %c0_17] : memref<1x128x32xbf16, #tpu.memory_space<vmem>>, vector<1x128x32xbf16>
    %24 = vector.shape_cast %23 : vector<1x128x32xbf16> to vector<128x32xbf16>
    %cst_18 = arith.constant dense<0.000000e+00> : vector<32x32xf32>
    %25 = tpu.matmul %10, %24, %cst_18 {dimension_numbers = #tpu.dot_dimension_numbers<[1], [0], [0], [1], [0, 0, 1, 1], [], []>} : vector<32x128xbf16>, vector<128x32xbf16>, vector<32x32xf32> -> vector<32x32xf32>
    %c0_19 = arith.constant 0 : index
    %c0_20 = arith.constant 0 : index
    %c0_21 = arith.constant 0 : index
    %26 = vector.load %arg5[%c0_19, %c0_20, %c0_21] : memref<1x1x32xf32, #tpu.memory_space<vmem>>, vector<1x1x32xf32>
    %27 = vector.shape_cast %26 : vector<1x1x32xf32> to vector<1x32xf32>
    %28 = vector.broadcast %27 : vector<1x32xf32> to vector<32x32xf32>
    %29 = arith.addf %25, %28 : vector<32x32xf32>
    %cst_22 = arith.constant 0.000000e+00 : f32
    %30 = vector.broadcast %cst_22 : f32 to vector<32x32xf32>
    %31 = arith.maximumf %29, %30 : vector<32x32xf32>
    %32 = arith.truncf %31 : vector<32x32xf32> to vector<32x32xbf16>
    %c0_23 = arith.constant 0 : index
    %c0_24 = arith.constant 0 : index
    %c0_25 = arith.constant 0 : index
    %33 = vector.load %arg7[%c0_23, %c0_24, %c0_25] : memref<1x288x32xbf16, #tpu.memory_space<vmem>>, vector<1x288x32xbf16>
    %34 = vector.shape_cast %33 : vector<1x288x32xbf16> to vector<288x32xbf16>
    %c0_26 = arith.constant 0 : index
    %c0_27 = arith.constant 0 : index
    %35 = vector.load %arg6[%c0_26, %c0_27] : memref<288x32xbf16, #tpu.memory_space<vmem>>, vector<288x32xbf16>
    %cst_28 = arith.constant 0.000000e+00 : f32
    %36 = vector.broadcast %cst_28 : f32 to vector<32x32xf32>
    %37 = vector.extract_strided_slice %35 {offsets = [0, 0], sizes = [32, 32], strides = [1, 1]} : vector<288x32xbf16> to vector<32x32xbf16>
    %cst_29 = arith.constant dense<0.000000e+00> : vector<32x32xf32>
    %38 = tpu.matmul %37, %32, %cst_29 {dimension_numbers = #tpu.dot_dimension_numbers<[1], [0], [0], [1], [0, 0, 1, 1], [], []>} : vector<32x32xbf16>, vector<32x32xbf16>, vector<32x32xf32> -> vector<32x32xf32>
    %39 = arith.truncf %38 : vector<32x32xf32> to vector<32x32xbf16>
    %40 = vector.extract_strided_slice %34 {offsets = [0, 0], sizes = [32, 32], strides = [1, 1]} : vector<288x32xbf16> to vector<32x32xbf16>
    %cst_30 = arith.constant dense<0.000000e+00> : vector<32x32xf32>
    %41 = tpu.matmul %39, %40, %cst_30 {dimension_numbers = #tpu.dot_dimension_numbers<[1], [0], [0], [1], [0, 0, 1, 1], [], []>} : vector<32x32xbf16>, vector<32x32xbf16>, vector<32x32xf32> -> vector<32x32xf32>
    %42 = arith.addf %36, %41 : vector<32x32xf32>
    %43 = vector.extract_strided_slice %35 {offsets = [32, 0], sizes = [32, 32], strides = [1, 1]} : vector<288x32xbf16> to vector<32x32xbf16>
    %cst_31 = arith.constant dense<0.000000e+00> : vector<32x32xf32>
    %44 = tpu.matmul %43, %32, %cst_31 {dimension_numbers = #tpu.dot_dimension_numbers<[1], [0], [0], [1], [0, 0, 1, 1], [], []>} : vector<32x32xbf16>, vector<32x32xbf16>, vector<32x32xf32> -> vector<32x32xf32>
    %45 = arith.truncf %44 : vector<32x32xf32> to vector<32x32xbf16>
    %46 = vector.extract_strided_slice %34 {offsets = [32, 0], sizes = [32, 32], strides = [1, 1]} : vector<288x32xbf16> to vector<32x32xbf16>
    %cst_32 = arith.constant dense<0.000000e+00> : vector<32x32xf32>
    %47 = tpu.matmul %45, %46, %cst_32 {dimension_numbers = #tpu.dot_dimension_numbers<[1], [0], [0], [1], [0, 0, 1, 1], [], []>} : vector<32x32xbf16>, vector<32x32xbf16>, vector<32x32xf32> -> vector<32x32xf32>
    %48 = arith.addf %42, %47 : vector<32x32xf32>
    %49 = vector.extract_strided_slice %35 {offsets = [64, 0], sizes = [32, 32], strides = [1, 1]} : vector<288x32xbf16> to vector<32x32xbf16>
    %cst_33 = arith.constant dense<0.000000e+00> : vector<32x32xf32>
    %50 = tpu.matmul %49, %32, %cst_33 {dimension_numbers = #tpu.dot_dimension_numbers<[1], [0], [0], [1], [0, 0, 1, 1], [], []>} : vector<32x32xbf16>, vector<32x32xbf16>, vector<32x32xf32> -> vector<32x32xf32>
    %51 = arith.truncf %50 : vector<32x32xf32> to vector<32x32xbf16>
    %52 = vector.extract_strided_slice %34 {offsets = [64, 0], sizes = [32, 32], strides = [1, 1]} : vector<288x32xbf16> to vector<32x32xbf16>
    %cst_34 = arith.constant dense<0.000000e+00> : vector<32x32xf32>
    %53 = tpu.matmul %51, %52, %cst_34 {dimension_numbers = #tpu.dot_dimension_numbers<[1], [0], [0], [1], [0, 0, 1, 1], [], []>} : vector<32x32xbf16>, vector<32x32xbf16>, vector<32x32xf32> -> vector<32x32xf32>
    %54 = arith.addf %48, %53 : vector<32x32xf32>
    %55 = vector.extract_strided_slice %35 {offsets = [96, 0], sizes = [32, 32], strides = [1, 1]} : vector<288x32xbf16> to vector<32x32xbf16>
    %cst_35 = arith.constant dense<0.000000e+00> : vector<32x32xf32>
    %56 = tpu.matmul %55, %32, %cst_35 {dimension_numbers = #tpu.dot_dimension_numbers<[1], [0], [0], [1], [0, 0, 1, 1], [], []>} : vector<32x32xbf16>, vector<32x32xbf16>, vector<32x32xf32> -> vector<32x32xf32>
    %57 = arith.truncf %56 : vector<32x32xf32> to vector<32x32xbf16>
    %58 = vector.extract_strided_slice %34 {offsets = [96, 0], sizes = [32, 32], strides = [1, 1]} : vector<288x32xbf16> to vector<32x32xbf16>
    %cst_36 = arith.constant dense<0.000000e+00> : vector<32x32xf32>
    %59 = tpu.matmul %57, %58, %cst_36 {dimension_numbers = #tpu.dot_dimension_numbers<[1], [0], [0], [1], [0, 0, 1, 1], [], []>} : vector<32x32xbf16>, vector<32x32xbf16>, vector<32x32xf32> -> vector<32x32xf32>
    %60 = arith.addf %54, %59 : vector<32x32xf32>
    %61 = vector.extract_strided_slice %35 {offsets = [128, 0], sizes = [32, 32], strides = [1, 1]} : vector<288x32xbf16> to vector<32x32xbf16>
    %cst_37 = arith.constant dense<0.000000e+00> : vector<32x32xf32>
    %62 = tpu.matmul %61, %32, %cst_37 {dimension_numbers = #tpu.dot_dimension_numbers<[1], [0], [0], [1], [0, 0, 1, 1], [], []>} : vector<32x32xbf16>, vector<32x32xbf16>, vector<32x32xf32> -> vector<32x32xf32>
    %63 = arith.truncf %62 : vector<32x32xf32> to vector<32x32xbf16>
    %64 = vector.extract_strided_slice %34 {offsets = [128, 0], sizes = [32, 32], strides = [1, 1]} : vector<288x32xbf16> to vector<32x32xbf16>
    %cst_38 = arith.constant dense<0.000000e+00> : vector<32x32xf32>
    %65 = tpu.matmul %63, %64, %cst_38 {dimension_numbers = #tpu.dot_dimension_numbers<[1], [0], [0], [1], [0, 0, 1, 1], [], []>} : vector<32x32xbf16>, vector<32x32xbf16>, vector<32x32xf32> -> vector<32x32xf32>
    %66 = arith.addf %60, %65 : vector<32x32xf32>
    %67 = vector.extract_strided_slice %35 {offsets = [160, 0], sizes = [32, 32], strides = [1, 1]} : vector<288x32xbf16> to vector<32x32xbf16>
    %cst_39 = arith.constant dense<0.000000e+00> : vector<32x32xf32>
    %68 = tpu.matmul %67, %32, %cst_39 {dimension_numbers = #tpu.dot_dimension_numbers<[1], [0], [0], [1], [0, 0, 1, 1], [], []>} : vector<32x32xbf16>, vector<32x32xbf16>, vector<32x32xf32> -> vector<32x32xf32>
    %69 = arith.truncf %68 : vector<32x32xf32> to vector<32x32xbf16>
    %70 = vector.extract_strided_slice %34 {offsets = [160, 0], sizes = [32, 32], strides = [1, 1]} : vector<288x32xbf16> to vector<32x32xbf16>
    %cst_40 = arith.constant dense<0.000000e+00> : vector<32x32xf32>
    %71 = tpu.matmul %69, %70, %cst_40 {dimension_numbers = #tpu.dot_dimension_numbers<[1], [0], [0], [1], [0, 0, 1, 1], [], []>} : vector<32x32xbf16>, vector<32x32xbf16>, vector<32x32xf32> -> vector<32x32xf32>
    %72 = arith.addf %66, %71 : vector<32x32xf32>
    %73 = vector.extract_strided_slice %35 {offsets = [192, 0], sizes = [32, 32], strides = [1, 1]} : vector<288x32xbf16> to vector<32x32xbf16>
    %cst_41 = arith.constant dense<0.000000e+00> : vector<32x32xf32>
    %74 = tpu.matmul %73, %32, %cst_41 {dimension_numbers = #tpu.dot_dimension_numbers<[1], [0], [0], [1], [0, 0, 1, 1], [], []>} : vector<32x32xbf16>, vector<32x32xbf16>, vector<32x32xf32> -> vector<32x32xf32>
    %75 = arith.truncf %74 : vector<32x32xf32> to vector<32x32xbf16>
    %76 = vector.extract_strided_slice %34 {offsets = [192, 0], sizes = [32, 32], strides = [1, 1]} : vector<288x32xbf16> to vector<32x32xbf16>
    %cst_42 = arith.constant dense<0.000000e+00> : vector<32x32xf32>
    %77 = tpu.matmul %75, %76, %cst_42 {dimension_numbers = #tpu.dot_dimension_numbers<[1], [0], [0], [1], [0, 0, 1, 1], [], []>} : vector<32x32xbf16>, vector<32x32xbf16>, vector<32x32xf32> -> vector<32x32xf32>
    %78 = arith.addf %72, %77 : vector<32x32xf32>
    %79 = vector.extract_strided_slice %35 {offsets = [224, 0], sizes = [32, 32], strides = [1, 1]} : vector<288x32xbf16> to vector<32x32xbf16>
    %cst_43 = arith.constant dense<0.000000e+00> : vector<32x32xf32>
    %80 = tpu.matmul %79, %32, %cst_43 {dimension_numbers = #tpu.dot_dimension_numbers<[1], [0], [0], [1], [0, 0, 1, 1], [], []>} : vector<32x32xbf16>, vector<32x32xbf16>, vector<32x32xf32> -> vector<32x32xf32>
    %81 = arith.truncf %80 : vector<32x32xf32> to vector<32x32xbf16>
    %82 = vector.extract_strided_slice %34 {offsets = [224, 0], sizes = [32, 32], strides = [1, 1]} : vector<288x32xbf16> to vector<32x32xbf16>
    %cst_44 = arith.constant dense<0.000000e+00> : vector<32x32xf32>
    %83 = tpu.matmul %81, %82, %cst_44 {dimension_numbers = #tpu.dot_dimension_numbers<[1], [0], [0], [1], [0, 0, 1, 1], [], []>} : vector<32x32xbf16>, vector<32x32xbf16>, vector<32x32xf32> -> vector<32x32xf32>
    %84 = arith.addf %78, %83 : vector<32x32xf32>
    %85 = vector.extract_strided_slice %35 {offsets = [256, 0], sizes = [32, 32], strides = [1, 1]} : vector<288x32xbf16> to vector<32x32xbf16>
    %cst_45 = arith.constant dense<0.000000e+00> : vector<32x32xf32>
    %86 = tpu.matmul %85, %32, %cst_45 {dimension_numbers = #tpu.dot_dimension_numbers<[1], [0], [0], [1], [0, 0, 1, 1], [], []>} : vector<32x32xbf16>, vector<32x32xbf16>, vector<32x32xf32> -> vector<32x32xf32>
    %87 = arith.truncf %86 : vector<32x32xf32> to vector<32x32xbf16>
    %88 = vector.extract_strided_slice %34 {offsets = [256, 0], sizes = [32, 32], strides = [1, 1]} : vector<288x32xbf16> to vector<32x32xbf16>
    %cst_46 = arith.constant dense<0.000000e+00> : vector<32x32xf32>
    %89 = tpu.matmul %87, %88, %cst_46 {dimension_numbers = #tpu.dot_dimension_numbers<[1], [0], [0], [1], [0, 0, 1, 1], [], []>} : vector<32x32xbf16>, vector<32x32xbf16>, vector<32x32xf32> -> vector<32x32xf32>
    %90 = arith.addf %84, %89 : vector<32x32xf32>
    %c0_47 = arith.constant 0 : index
    %c0_48 = arith.constant 0 : index
    %c0_49 = arith.constant 0 : index
    %91 = vector.load %arg8[%c0_47, %c0_48, %c0_49] : memref<1x1x32xf32, #tpu.memory_space<vmem>>, vector<1x1x32xf32>
    %92 = vector.shape_cast %91 : vector<1x1x32xf32> to vector<1x32xf32>
    %93 = vector.broadcast %92 : vector<1x32xf32> to vector<32x32xf32>
    %94 = arith.addf %90, %93 : vector<32x32xf32>
    %cst_50 = arith.constant 0.000000e+00 : f32
    %95 = vector.broadcast %cst_50 : f32 to vector<32x32xf32>
    %96 = arith.maximumf %94, %95 : vector<32x32xf32>
    %97 = arith.truncf %96 : vector<32x32xf32> to vector<32x32xbf16>
    %c0_51 = arith.constant 0 : index
    %c0_52 = arith.constant 0 : index
    %c0_53 = arith.constant 0 : index
    %98 = vector.load %arg9[%c0_51, %c0_52, %c0_53] : memref<1x32x128xbf16, #tpu.memory_space<vmem>>, vector<1x32x128xbf16>
    %99 = vector.shape_cast %98 : vector<1x32x128xbf16> to vector<32x128xbf16>
    %cst_54 = arith.constant dense<0.000000e+00> : vector<32x128xf32>
    %100 = tpu.matmul %97, %99, %cst_54 {dimension_numbers = #tpu.dot_dimension_numbers<[1], [0], [0], [1], [0, 0, 1, 1], [], []>} : vector<32x32xbf16>, vector<32x128xbf16>, vector<32x128xf32> -> vector<32x128xf32>
    %c0_55 = arith.constant 0 : index
    %c0_56 = arith.constant 0 : index
    %c0_57 = arith.constant 0 : index
    %101 = vector.load %arg10[%c0_55, %c0_56, %c0_57] : memref<1x1x128xf32, #tpu.memory_space<vmem>>, vector<1x1x128xf32>
    %102 = vector.shape_cast %101 : vector<1x1x128xf32> to vector<1x128xf32>
    %103 = vector.broadcast %102 : vector<1x128xf32> to vector<32x128xf32>
    %104 = arith.addf %100, %103 : vector<32x128xf32>
    %105 = arith.addf %104, %9 : vector<32x128xf32>
    %cst_58 = arith.constant 0.000000e+00 : f32
    %106 = vector.broadcast %cst_58 : f32 to vector<32x128xf32>
    %107 = arith.maximumf %105, %106 : vector<32x128xf32>
    %108 = vector.extract_strided_slice %107 {offsets = [0, 0], sizes = [16, 128], strides = [1, 1]} : vector<32x128xf32> to vector<16x128xf32>
    %cst_59 = arith.constant dense<0xFF800000> : vector<128xf32>
    %109 = vector.multi_reduction <maximumf>, %108, %cst_59 [0] : vector<16x128xf32> to vector<128xf32>
    %110 = vector.shape_cast %109 : vector<128xf32> to vector<1x128xf32>
    %c0_60 = arith.constant 0 : index
    %c0_61 = arith.constant 0 : index
    %111 = vector.load %arg16[%c0_60, %c0_61] : memref<2x128xf32, #tpu.memory_space<vmem>>, vector<1x128xf32>
    tpu.vector_store %arg16[%c0_60, %c0_61], %110 {strides = array<i32>} : memref<2x128xf32, #tpu.memory_space<vmem>>, vector<1x128xf32>,
    %112 = vector.extract_strided_slice %107 {offsets = [16, 0], sizes = [16, 128], strides = [1, 1]} : vector<32x128xf32> to vector<16x128xf32>
    %cst_62 = arith.constant dense<0xFF800000> : vector<128xf32>
    %113 = vector.multi_reduction <maximumf>, %112, %cst_62 [0] : vector<16x128xf32> to vector<128xf32>
    %114 = vector.shape_cast %113 : vector<128xf32> to vector<1x128xf32>
    %c1_63 = arith.constant 1 : index
    %c0_64 = arith.constant 0 : index
    %115 = vector.load %arg16[%c1_63, %c0_64] : memref<2x128xf32, #tpu.memory_space<vmem>>, vector<1x128xf32>
    tpu.vector_store %arg16[%c1_63, %c0_64], %114 {strides = array<i32>} : memref<2x128xf32, #tpu.memory_space<vmem>>, vector<1x128xf32>,
    %c0_65 = arith.constant 0 : index
    %c0_66 = arith.constant 0 : index
    %116 = vector.load %arg15[%c0_65, %c0_66] : memref<2x128xf32, #tpu.memory_space<vmem>>, vector<2x128xf32>
    %117 = arith.truncf %116 : vector<2x128xf32> to vector<2x128xbf16>
    %c0_67 = arith.constant 0 : index
    %c0_68 = arith.constant 0 : index
    %118 = vector.load %arg16[%c0_67, %c0_68] : memref<2x128xf32, #tpu.memory_space<vmem>>, vector<2x128xf32>
    %119 = arith.truncf %118 : vector<2x128xf32> to vector<2x128xbf16>
    %c0_69 = arith.constant 0 : index
    %c0_70 = arith.constant 0 : index
    %c0_71 = arith.constant 0 : index
    %120 = vector.load %arg11[%c0_69, %c0_70, %c0_71] : memref<1x128x384xbf16, #tpu.memory_space<vmem>>, vector<1x128x384xbf16>
    %121 = vector.shape_cast %120 : vector<1x128x384xbf16> to vector<128x384xbf16>
    %cst_72 = arith.constant dense<0.000000e+00> : vector<2x384xf32>
    %122 = tpu.matmul %117, %121, %cst_72 {dimension_numbers = #tpu.dot_dimension_numbers<[1], [0], [0], [1], [0, 0, 1, 1], [], []>} : vector<2x128xbf16>, vector<128x384xbf16>, vector<2x384xf32> -> vector<2x384xf32>
    %c0_73 = arith.constant 0 : index
    %c0_74 = arith.constant 0 : index
    %c0_75 = arith.constant 0 : index
    %123 = vector.load %arg12[%c0_73, %c0_74, %c0_75] : memref<1x128x384xbf16, #tpu.memory_space<vmem>>, vector<1x128x384xbf16>
    %124 = vector.shape_cast %123 : vector<1x128x384xbf16> to vector<128x384xbf16>
    %cst_76 = arith.constant dense<0.000000e+00> : vector<2x384xf32>
    %125 = tpu.matmul %119, %124, %cst_76 {dimension_numbers = #tpu.dot_dimension_numbers<[1], [0], [0], [1], [0, 0, 1, 1], [], []>} : vector<2x128xbf16>, vector<128x384xbf16>, vector<2x384xf32> -> vector<2x384xf32>
    %126 = arith.addf %122, %125 : vector<2x384xf32>
    %c0_77 = arith.constant 0 : index
    %c0_78 = arith.constant 0 : index
    %c0_79 = arith.constant 0 : index
    %127 = vector.load %arg13[%c0_77, %c0_78, %c0_79] : memref<1x1x384xf32, #tpu.memory_space<vmem>>, vector<1x1x384xf32>
    %128 = vector.shape_cast %127 : vector<1x1x384xf32> to vector<1x384xf32>
    %129 = vector.broadcast %128 : vector<1x384xf32> to vector<2x384xf32>
    %130 = arith.addf %126, %129 : vector<2x384xf32>
    %cst_80 = arith.constant 0.000000e+00 : f32
    %131 = vector.broadcast %cst_80 : f32 to vector<2x384xf32>
    %132 = arith.maximumf %130, %131 : vector<2x384xf32>
    %c0_81 = arith.constant 0 : index
    %c0_82 = arith.constant 0 : index
    %c0_83 = arith.constant 0 : index
    %133 = vector.load %arg14[%c0_81, %c0_82, %c0_83] : memref<1x2x384xf32, #tpu.memory_space<vmem>>, vector<1x2x384xf32>
    %134 = vector.shape_cast %133 : vector<1x2x384xf32> to vector<2x384xf32>
    %135 = vector.shape_cast %132 : vector<2x384xf32> to vector<1x2x384xf32>
    tpu.vector_store %arg14[%c0_81, %c0_82, %c0_83], %135 {strides = array<i32>} : memref<1x2x384xf32, #tpu.memory_space<vmem>>, vector<1x2x384xf32>,
    return
  }
  func.func @transform_0(%arg0: i32) -> (i32, i32) {
    %c0_i32 = arith.constant 0 : i32
    %c0_i32_0 = arith.constant 0 : i32
    %c0_i32_1 = arith.constant 0 : i32
    return %c0_i32, %c0_i32_0 : i32, i32
  }
  func.func @transform_1(%arg0: i32) -> (i32, i32, i32) {
    %c0_i32 = arith.constant 0 : i32
    %c0_i32_0 = arith.constant 0 : i32
    %c0_i32_1 = arith.constant 0 : i32
    return %arg0, %c0_i32, %c0_i32_0 : i32, i32, i32
  }
  func.func @transform_2(%arg0: i32) -> (i32, i32, i32) {
    %c0_i32 = arith.constant 0 : i32
    %c0_i32_0 = arith.constant 0 : i32
    %c0_i32_1 = arith.constant 0 : i32
    return %arg0, %c0_i32, %c0_i32_0 : i32, i32, i32
  }
  func.func @transform_3(%arg0: i32) -> (i32, i32, i32) {
    %c0_i32 = arith.constant 0 : i32
    %c0_i32_0 = arith.constant 0 : i32
    %c0_i32_1 = arith.constant 0 : i32
    return %arg0, %c0_i32, %c0_i32_0 : i32, i32, i32
  }
  func.func @transform_4(%arg0: i32) -> (i32, i32, i32) {
    %c0_i32 = arith.constant 0 : i32
    %c0_i32_0 = arith.constant 0 : i32
    %c0_i32_1 = arith.constant 0 : i32
    return %arg0, %c0_i32, %c0_i32_0 : i32, i32, i32
  }
  func.func @transform_5(%arg0: i32) -> (i32, i32) {
    %c0_i32 = arith.constant 0 : i32
    %c0_i32_0 = arith.constant 0 : i32
    %c0_i32_1 = arith.constant 0 : i32
    return %c0_i32, %c0_i32_0 : i32, i32
  }
  func.func @transform_6(%arg0: i32) -> (i32, i32, i32) {
    %c0_i32 = arith.constant 0 : i32
    %c0_i32_0 = arith.constant 0 : i32
    %c0_i32_1 = arith.constant 0 : i32
    return %arg0, %c0_i32, %c0_i32_0 : i32, i32, i32
  }
  func.func @transform_7(%arg0: i32) -> (i32, i32, i32) {
    %c0_i32 = arith.constant 0 : i32
    %c0_i32_0 = arith.constant 0 : i32
    %c0_i32_1 = arith.constant 0 : i32
    return %arg0, %c0_i32, %c0_i32_0 : i32, i32, i32
  }
  func.func @transform_8(%arg0: i32) -> (i32, i32, i32) {
    %c0_i32 = arith.constant 0 : i32
    %c0_i32_0 = arith.constant 0 : i32
    %c0_i32_1 = arith.constant 0 : i32
    return %arg0, %c0_i32, %c0_i32_0 : i32, i32, i32
  }
  func.func @transform_9(%arg0: i32) -> (i32, i32, i32) {
    %c0_i32 = arith.constant 0 : i32
    %c0_i32_0 = arith.constant 0 : i32
    %c0_i32_1 = arith.constant 0 : i32
    return %arg0, %c0_i32, %c0_i32_0 : i32, i32, i32
  }
  func.func @transform_10(%arg0: i32) -> (i32, i32, i32) {
    %c0_i32 = arith.constant 0 : i32
    %c0_i32_0 = arith.constant 0 : i32
    %c0_i32_1 = arith.constant 0 : i32
    return %arg0, %c0_i32, %c0_i32_0 : i32, i32, i32
  }
  func.func @transform_11(%arg0: i32) -> (i32, i32, i32) {
    %c0_i32 = arith.constant 0 : i32
    %c0_i32_0 = arith.constant 0 : i32
    %c0_i32_1 = arith.constant 0 : i32
    return %arg0, %c0_i32, %c0_i32_0 : i32, i32, i32
  }
  func.func @transform_12(%arg0: i32) -> (i32, i32, i32) {
    %c0_i32 = arith.constant 0 : i32
    %c0_i32_0 = arith.constant 0 : i32
    %c0_i32_1 = arith.constant 0 : i32
    return %arg0, %c0_i32, %c0_i32_0 : i32, i32, i32
  }
  func.func @transform_13(%arg0: i32) -> (i32, i32, i32) {
    %c0_i32 = arith.constant 0 : i32
    %c0_i32_0 = arith.constant 0 : i32
    %c0_i32_1 = arith.constant 0 : i32
    return %arg0, %c0_i32, %c0_i32_0 : i32, i32, i32
  }
}

</mosaic_0001>

<llo_original>
// kernel: bag_reid_forward.1
$region0: #{bag_reid_forward.1}
  #allocation0 [shape = 'u32[]', space=smem, size = 0x4, offset = 0x4, fixed_abs, tag = 'smem constant byte address 0x4 - core index']
  #allocation1 [shape = 'u32[144,128]{1,0:T(1,128)}', space=vmem, size = 0x12000, scoped, tag = 'internal scratch']
  #allocation2 [shape = 'f32[2,128]{1,0:T(2,128)}', space=vmem, size = 0x400, scoped, tag = 'scratch operand']
  #allocation3 [shape = 'f32[2,128]{1,0:T(2,128)}', space=vmem, size = 0x400, scoped, tag = 'scratch operand']
  %s0 = inlined_call_operand.vmem [shape: bf16[32,192], index: 0, kind: input, shape index: {}]
  %s1 = inlined_call_operand.vmem [shape: bf16[3,192,128], index: 1, kind: input, shape index: {}]
  %s2 = inlined_call_operand.vmem [shape: f32[3,1,128], index: 2, kind: input, shape index: {}]
  %s3 = inlined_call_operand.vmem [shape: bf16[3,128,32], index: 3, kind: input, shape index: {}]
  %s4 = inlined_call_operand.vmem [shape: f32[3,1,32], index: 4, kind: input, shape index: {}]
  %s5 = inlined_call_operand.vmem [shape: bf16[288,32], index: 5, kind: input, shape index: {}]
  %s6 = inlined_call_operand.vmem [shape: bf16[3,288,32], index: 6, kind: input, shape index: {}]
  %s7 = inlined_call_operand.vmem [shape: f32[3,1,32], index: 7, kind: input, shape index: {}]
  %s8 = inlined_call_operand.vmem [shape: bf16[3,32,128], index: 8, kind: input, shape index: {}]
  %s9 = inlined_call_operand.vmem [shape: f32[3,1,128], index: 9, kind: input, shape index: {}]
  %s10 = inlined_call_operand.vmem [shape: bf16[3,128,384], index: 10, kind: input, shape index: {}]
  %s11 = inlined_call_operand.vmem [shape: bf16[3,128,384], index: 11, kind: input, shape index: {}]
  %s12 = inlined_call_operand.vmem [shape: f32[3,1,384], index: 12, kind: input, shape index: {}]
  %s13 = inlined_call_operand.vmem [shape: f32[3,2,384], index: 13, kind: output, shape index: {}]
  %s14 = sld [smem:[#allocation0]]
  $region85: #{bag_reid_forward.1} parent=0
    _
  %s16 = ssub.s32 1, %s14
  %s17 = scalar_select 0, %s16, %s14
  loop: start=0, step=1, limit=5
  $region2: #{bag_reid_forward.1} parent=0 // loop_pre_header
    _
  $region3: #{bag_reid_forward.1} parent=0 // loop_header
    %s19 = sphi 0, %s23
    %p20 = scmp.ge.s32.totalorder %s19, 5
    %s27 = sphi 0, %s27
    %s29 = sphi 0, %s27
    %s30 = sphi 0, %s29
    %s44 = sphi 0, %s30
    %s50 = sphi 0, %s52
    %s53 = sphi 0, %s50
    %s54 = sphi 0, %s53
    %s70 = sphi 0, %s54
    %s76 = sphi 0, %s78
    %s79 = sphi 0, %s76
    %s80 = sphi 0, %s79
    %s96 = sphi 0, %s80
    %s102 = sphi 0, %s104
    %s105 = sphi 0, %s102
    %s106 = sphi 0, %s105
    %s122 = sphi 0, %s106
    %s128 = sphi 0, %s130
    %s131 = sphi 0, %s128
    %s132 = sphi 0, %s131
    %s148 = sphi 0, %s132
    %s152 = sphi 0, %s152
    %s154 = sphi 0, %s152
    %s155 = sphi 0, %s154
    %s169 = sphi 0, %s155
    %s175 = sphi 0, %s177
    %s178 = sphi 0, %s175
    %s179 = sphi 0, %s178
    %s195 = sphi 0, %s179
    %s201 = sphi 0, %s203
    %s204 = sphi 0, %s201
    %s205 = sphi 0, %s204
    %s221 = sphi 0, %s205
    %s227 = sphi 0, %s229
    %s230 = sphi 0, %s227
    %s231 = sphi 0, %s230
    %s247 = sphi 0, %s231
    %s253 = sphi 0, %s255
    %s256 = sphi 0, %s253
    %s257 = sphi 0, %s256
    %s273 = sphi 0, %s257
    %s279 = sphi 0, %s281
    %s282 = sphi 0, %s279
    %s283 = sphi 0, %s282
    %s299 = sphi 0, %s283
    %s305 = sphi 0, %s307
    %s308 = sphi 0, %s305
    %s309 = sphi 0, %s308
    %s325 = sphi 0, %s309
    %s331 = sphi 0, %s333
    %s334 = sphi 0, %s331
    %s335 = sphi 0, %s334
    %s351 = sphi 0, %s335
    %s357 = sphi 0, %s359
    %s360 = sphi 0, %s357
    %s361 = sphi 0, %s360
    %s377 = sphi 0, %s361
  $region4: #{bag_reid_forward.1} parent=0 // loop_header_branch
    %22 = sbr.rel (%p20) target = $region8
  $region5: #{bag_reid_forward.1} parent=0 // loop_body
    %s24 = ssub.s32 %s19, 1
    %s25 = ssub.s32 %s19, 2
    %s26 = sadd.s32 %s19, 1
    %s28 = sadd.s32 %s27, 1
    %p31 = scmp.eq.s32.totalorder %s19, 2
    %p32 = scmp.ne.s32.totalorder %s27, %s29
    %p33 = scmp.eq.s32.totalorder %s19, 0
    %p34 = por %p32, %p33
    %p35 = scmp.ne.s32.totalorder %s27, %s29
    %p36 = scmp.eq.s32.totalorder %s24, 2
    %p37 = por %p35, %p36
    %p38 = scmp.ne.s32.totalorder %s29, %s30
    %p39 = scmp.eq.s32.totalorder %s24, 0
    %p40 = por %p38, %p39
    %p41 = scmp.ne.s32.totalorder %s29, %s30
    %p42 = scmp.eq.s32.totalorder %s25, 2
    %p43 = por %p41, %p42
    %p45 = scmp.ne.s32.totalorder %s30, %s44
    %p46 = scmp.eq.s32.totalorder %s25, 0
    %p47 = por %p45, %p46
    %s48 = ssub.s32 %s19, %s26
    %p49 = scmp.eq.s32.totalorder %s48, 0
    %s51 = sadd.s32 %s50, 1
    %s52 = scalar_select %p49, %s50, %s51
    %p55 = pneg %p49
    %p56 = scmp.eq.s32.totalorder %s19, 2
    %p57 = por %p55, %p56
    %p58 = scmp.ne.s32.totalorder %s50, %s53
    %p59 = scmp.eq.s32.totalorder %s19, 0
    %p60 = por %p58, %p59
    %p61 = scmp.ne.s32.totalorder %s50, %s53
    %p62 = scmp.eq.s32.totalorder %s24, 2
    %p63 = por %p61, %p62
    %p64 = scmp.ne.s32.totalorder %s53, %s54
    %p65 = scmp.eq.s32.totalorder %s24, 0
    %p66 = por %p64, %p65
    %p67 = scmp.ne.s32.totalorder %s53, %s54
    %p68 = scmp.eq.s32.totalorder %s25, 2
    %p69 = por %p67, %p68
    %p71 = scmp.ne.s32.totalorder %s54, %s70
    %p72 = scmp.eq.s32.totalorder %s25, 0
    %p73 = por %p71, %p72
    %s74 = ssub.s32 %s19, %s26
    %p75 = scmp.eq.s32.totalorder %s74, 0
    %s77 = sadd.s32 %s76, 1
    %s78 = scalar_select %p75, %s76, %s77
    %p81 = pneg %p75
    %p82 = scmp.eq.s32.totalorder %s19, 2
    %p83 = por %p81, %p82
    %p84 = scmp.ne.s32.totalorder %s76, %s79
    %p85 = scmp.eq.s32.totalorder %s19, 0
    %p86 = por %p84, %p85
    %p87 = scmp.ne.s32.totalorder %s76, %s79
    %p88 = scmp.eq.s32.totalorder %s24, 2
    %p89 = por %p87, %p88
    %p90 = scmp.ne.s32.totalorder %s79, %s80
    %p91 = scmp.eq.s32.totalorder %s24, 0
    %p92 = por %p90, %p91
    %p93 = scmp.ne.s32.totalorder %s79, %s80
    %p94 = scmp.eq.s32.totalorder %s25, 2
    %p95 = por %p93, %p94
    %p97 = scmp.ne.s32.totalorder %s80, %s96
    %p98 = scmp.eq.s32.totalorder %s25, 0
    %p99 = por %p97, %p98
    %s100 = ssub.s32 %s19, %s26
    %p101 = scmp.eq.s32.totalorder %s100, 0
    %s103 = sadd.s32 %s102, 1
    %s104 = scalar_select %p101, %s102, %s103
    %p107 = pneg %p101
    %p108 = scmp.eq.s32.totalorder %s19, 2
    %p109 = por %p107, %p108
    %p110 = scmp.ne.s32.totalorder %s102, %s105
    %p111 = scmp.eq.s32.totalorder %s19, 0
    %p112 = por %p110, %p111
    %p113 = scmp.ne.s32.totalorder %s102, %s105
    %p114 = scmp.eq.s32.totalorder %s24, 2
    %p115 = por %p113, %p114
    %p116 = scmp.ne.s32.totalorder %s105, %s106
    %p117 = scmp.eq.s32.totalorder %s24, 0
    %p118 = por %p116, %p117
    %p119 = scmp.ne.s32.totalorder %s105, %s106
    %p120 = scmp.eq.s32.totalorder %s25, 2
    %p121 = por %p119, %p120
    %p123 = scmp.ne.s32.totalorder %s106, %s122
    %p124 = scmp.eq.s32.totalorder %s25, 0
    %p125 = por %p123, %p124
    %s126 = ssub.s32 %s19, %s26
    %p127 = scmp.eq.s32.totalorder %s126, 0
    %s129 = sadd.s32 %s128, 1
    %s130 = scalar_select %p127, %s128, %s129
    %p133 = pneg %p127
    %p134 = scmp.eq.s32.totalorder %s19, 2
    %p135 = por %p133, %p134
    %p136 = scmp.ne.s32.totalorder %s128, %s131
    %p137 = scmp.eq.s32.totalorder %s19, 0
    %p138 = por %p136, %p137
    %p139 = scmp.ne.s32.totalorder %s128, %s131
    %p140 = scmp.eq.s32.totalorder %s24, 2
    %p141 = por %p139, %p140
    %p142 = scmp.ne.s32.totalorder %s131, %s132
    %p143 = scmp.eq.s32.totalorder %s24, 0
    %p144 = por %p142, %p143
    %p145 = scmp.ne.s32.totalorder %s131, %s132
    %p146 = scmp.eq.s32.totalorder %s25, 2
    %p147 = por %p145, %p146
    %p149 = scmp.ne.s32.totalorder %s132, %s148
    %p150 = scmp.eq.s32.totalorder %s25, 0
    %p151 = por %p149, %p150
    %s153 = sadd.s32 %s152, 1
    %p156 = scmp.eq.s32.totalorder %s19, 2
    %p157 = scmp.ne.s32.totalorder %s152, %s154
    %p158 = scmp.eq.s32.totalorder %s19, 0
    %p159 = por %p157, %p158
    %p160 = scmp.ne.s32.totalorder %s152, %s154
    %p161 = scmp.eq.s32.totalorder %s24, 2
    %p162 = por %p160, %p161
    %p163 = scmp.ne.s32.totalorder %s154, %s155
    %p164 = scmp.eq.s32.totalorder %s24, 0
    %p165 = por %p163, %p164
    %p166 = scmp.ne.s32.totalorder %s154, %s155
    %p167 = scmp.eq.s32.totalorder %s25, 2
    %p168 = por %p166, %p167
    %p170 = scmp.ne.s32.totalorder %s155, %s169
    %p171 = scmp.eq.s32.totalorder %s25, 0
    %p172 = por %p170, %p171
    %s173 = ssub.s32 %s19, %s26
    %p174 = scmp.eq.s32.totalorder %s173, 0
    %s176 = sadd.s32 %s175, 1
    %s177 = scalar_select %p174, %s175, %s176
    %p180 = pneg %p174
    %p181 = scmp.eq.s32.totalorder %s19, 2
    %p182 = por %p180, %p181
    %p183 = scmp.ne.s32.totalorder %s175, %s178
    %p184 = scmp.eq.s32.totalorder %s19, 0
    %p185 = por %p183, %p184
    %p186 = scmp.ne.s32.totalorder %s175, %s178
    %p187 = scmp.eq.s32.totalorder %s24, 2
    %p188 = por %p186, %p187
    %p189 = scmp.ne.s32.totalorder %s178, %s179
    %p190 = scmp.eq.s32.totalorder %s24, 0
    %p191 = por %p189, %p190
    %p192 = scmp.ne.s32.totalorder %s178, %s179
    %p193 = scmp.eq.s32.totalorder %s25, 2
    %p194 = por %p192, %p193
    %p196 = scmp.ne.s32.totalorder %s179, %s195
    %p197 = scmp.eq.s32.totalorder %s25, 0
    %p198 = por %p196, %p197
    %s199 = ssub.s32 %s19, %s26
    %p200 = scmp.eq.s32.totalorder %s199, 0
    %s202 = sadd.s32 %s201, 1
    %s203 = scalar_select %p200, %s201, %s202
    %p206 = pneg %p200
    %p207 = scmp.eq.s32.totalorder %s19, 2
    %p208 = por %p206, %p207
    %p209 = scmp.ne.s32.totalorder %s201, %s204
    %p210 = scmp.eq.s32.totalorder %s19, 0
    %p211 = por %p209, %p210
    %p212 = scmp.ne.s32.totalorder %s201, %s204
    %p213 = scmp.eq.s32.totalorder %s24, 2
    %p214 = por %p212, %p213
    %p215 = scmp.ne.s32.totalorder %s204, %s205
    %p216 = scmp.eq.s32.totalorder %s24, 0
    %p217 = por %p215, %p216
    %p218 = scmp.ne.s32.totalorder %s204, %s205
    %p219 = scmp.eq.s32.totalorder %s25, 2
    %p220 = por %p218, %p219
    %p222 = scmp.ne.s32.totalorder %s205, %s221
    %p223 = scmp.eq.s32.totalorder %s25, 0
    %p224 = por %p222, %p223
    %s225 = ssub.s32 %s19, %s26
    %p226 = scmp.eq.s32.totalorder %s225, 0
    %s228 = sadd.s32 %s227, 1
    %s229 = scalar_select %p226, %s227, %s228
    %p232 = pneg %p226
    %p233 = scmp.eq.s32.totalorder %s19, 2
    %p234 = por %p232, %p233
    %p235 = scmp.ne.s32.totalorder %s227, %s230
    %p236 = scmp.eq.s32.totalorder %s19, 0
    %p237 = por %p235, %p236
    %p238 = scmp.ne.s32.totalorder %s227, %s230
    %p239 = scmp.eq.s32.totalorder %s24, 2
    %p240 = por %p238, %p239
    %p241 = scmp.ne.s32.totalorder %s230, %s231
    %p242 = scmp.eq.s32.totalorder %s24, 0
    %p243 = por %p241, %p242
    %p244 = scmp.ne.s32.totalorder %s230, %s231
    %p245 = scmp.eq.s32.totalorder %s25, 2
    %p246 = por %p244, %p245
    %p248 = scmp.ne.s32.totalorder %s231, %s247
    %p249 = scmp.eq.s32.totalorder %s25, 0
    %p250 = por %p248, %p249
    %s251 = ssub.s32 %s19, %s26
    %p252 = scmp.eq.s32.totalorder %s251, 0
    %s254 = sadd.s32 %s253, 1
    %s255 = scalar_select %p252, %s253, %s254
    %p258 = pneg %p252
    %p259 = scmp.eq.s32.totalorder %s19, 2
    %p260 = por %p258, %p259
    %p261 = scmp.ne.s32.totalorder %s253, %s256
    %p262 = scmp.eq.s32.totalorder %s19, 0
    %p263 = por %p261, %p262
    %p264 = scmp.ne.s32.totalorder %s253, %s256
    %p265 = scmp.eq.s32.totalorder %s24, 2
    %p266 = por %p264, %p265
    %p267 = scmp.ne.s32.totalorder %s256, %s257
    %p268 = scmp.eq.s32.totalorder %s24, 0
    %p269 = por %p267, %p268
    %p270 = scmp.ne.s32.totalorder %s256, %s257
    %p271 = scmp.eq.s32.totalorder %s25, 2
    %p272 = por %p270, %p271
    %p274 = scmp.ne.s32.totalorder %s257, %s273
    %p275 = scmp.eq.s32.totalorder %s25, 0
    %p276 = por %p274, %p275
    %s277 = ssub.s32 %s19, %s26
    %p278 = scmp.eq.s32.totalorder %s277, 0
    %s280 = sadd.s32 %s279, 1
    %s281 = scalar_select %p278, %s279, %s280
    %p284 = pneg %p278
    %p285 = scmp.eq.s32.totalorder %s19, 2
    %p286 = por %p284, %p285
    %p287 = scmp.ne.s32.totalorder %s279, %s282
    %p288 = scmp.eq.s32.totalorder %s19, 0
    %p289 = por %p287, %p288
    %p290 = scmp.ne.s32.totalorder %s279, %s282
    %p291 = scmp.eq.s32.totalorder %s24, 2
    %p292 = por %p290, %p291
    %p293 = scmp.ne.s32.totalorder %s282, %s283
    %p294 = scmp.eq.s32.totalorder %s24, 0
    %p295 = por %p293, %p294
    %p296 = scmp.ne.s32.totalorder %s282, %s283
    %p297 = scmp.eq.s32.totalorder %s25, 2
    %p298 = por %p296, %p297
    %p300 = scmp.ne.s32.totalorder %s283, %s299
    %p301 = scmp.eq.s32.totalorder %s25, 0
    %p302 = por %p300, %p301
    %s303 = ssub.s32 %s19, %s26
    %p304 = scmp.eq.s32.totalorder %s303, 0
    %s306 = sadd.s32 %s305, 1
    %s307 = scalar_select %p304, %s305, %s306
    %p310 = pneg %p304
    %p311 = scmp.eq.s32.totalorder %s19, 2
    %p312 = por %p310, %p311
    %p313 = scmp.ne.s32.totalorder %s305, %s308
    %p314 = scmp.eq.s32.totalorder %s19, 0
    %p315 = por %p313, %p314
    %p316 = scmp.ne.s32.totalorder %s305, %s308
    %p317 = scmp.eq.s32.totalorder %s24, 2
    %p318 = por %p316, %p317
    %p319 = scmp.ne.s32.totalorder %s308, %s309
    %p320 = scmp.eq.s32.totalorder %s24, 0
    %p321 = por %p319, %p320
    %p322 = scmp.ne.s32.totalorder %s308, %s309
    %p323 = scmp.eq.s32.totalorder %s25, 2
    %p324 = por %p322, %p323
    %p326 = scmp.ne.s32.totalorder %s309, %s325
    %p327 = scmp.eq.s32.totalorder %s25, 0
    %p328 = por %p326, %p327
    %s329 = ssub.s32 %s19, %s26
    %p330 = scmp.eq.s32.totalorder %s329, 0
    %s332 = sadd.s32 %s331, 1
    %s333 = scalar_select %p330, %s331, %s332
    %p336 = pneg %p330
    %p337 = scmp.eq.s32.totalorder %s19, 2
    %p338 = por %p336, %p337
    %p339 = scmp.ne.s32.totalorder %s331, %s334
    %p340 = scmp.eq.s32.totalorder %s19, 0
    %p341 = por %p339, %p340
    %p342 = scmp.ne.s32.totalorder %s331, %s334
    %p343 = scmp.eq.s32.totalorder %s24, 2
    %p344 = por %p342, %p343
    %p345 = scmp.ne.s32.totalorder %s334, %s335
    %p346 = scmp.eq.s32.totalorder %s24, 0
    %p347 = por %p345, %p346
    %p348 = scmp.ne.s32.totalorder %s334, %s335
    %p349 = scmp.eq.s32.totalorder %s25, 2
    %p350 = por %p348, %p349
    %p352 = scmp.ne.s32.totalorder %s335, %s351
    %p353 = scmp.eq.s32.totalorder %s25, 0
    %p354 = por %p352, %p353
    %s355 = ssub.s32 %s19, %s26
    %p356 = scmp.eq.s32.totalorder %s355, 0
    %s358 = sadd.s32 %s357, 1
    %s359 = scalar_select %p356, %s357, %s358
    %p362 = pneg %p356
    %p363 = scmp.eq.s32.totalorder %s19, 2
    %p364 = por %p362, %p363
    %p365 = scmp.ne.s32.totalorder %s357, %s360
    %p366 = scmp.eq.s32.totalorder %s19, 0
    %p367 = por %p365, %p366
    %p368 = scmp.ne.s32.totalorder %s357, %s360
    %p369 = scmp.eq.s32.totalorder %s24, 2
    %p370 = por %p368, %p369
    %p371 = scmp.ne.s32.totalorder %s360, %s361
    %p372 = scmp.eq.s32.totalorder %s24, 0
    %p373 = por %p371, %p372
    %p374 = scmp.ne.s32.totalorder %s360, %s361
    %p375 = scmp.eq.s32.totalorder %s25, 2
    %p376 = por %p374, %p375
    %p378 = scmp.ne.s32.totalorder %s361, %s377
    %p379 = scmp.eq.s32.totalorder %s25, 0
    %p380 = por %p378, %p379
    %p381 = scmp.le.s32.totalorder 1, %s19
    %p382 = scmp.lt.s32.totalorder %s19, 4
    %p383 = pnand %p381, %p382
    %p384 = pneg %p383
    // Predicated region
    $region9: #{bag_reid_forward.1} parent=5 // pred_check
      _
    $region10: #{bag_reid_forward.1} parent=5 // pred_check_branch
      %386 = sbr.rel (%p383) target = $region12
    $region11: #{bag_reid_forward.1} parent=5 // pred_region
      %s387 = ssub.s32 %s19, 1
      // Predicated region
      $region13: #{bag_reid_forward.1} parent=11 // pred_check
        %p388 = pneg %p40
      $region14: #{bag_reid_forward.1} parent=11 // pred_check_branch
        %390 = sbr.rel (%p388) target = $region16
      $region15: #{bag_reid_forward.1} parent=11 // pred_region
        _
      $region16: #{bag_reid_forward.1} parent=11 // pred_fallthru
        _
      // Predicated region
      $region17: #{bag_reid_forward.1} parent=11 // pred_check
        %p391 = pneg %p165
      $region18: #{bag_reid_forward.1} parent=11 // pred_check_branch
        %393 = sbr.rel (%p391) target = $region20
      $region19: #{bag_reid_forward.1} parent=11 // pred_region
        _
      $region20: #{bag_reid_forward.1} parent=11 // pred_fallthru
        _
    $region12: #{bag_reid_forward.1} parent=5 // pred_fallthru
      _
    %p394 = scmp.lt.s32.totalorder %s19, 3
    // Predicated region
    $region21: #{bag_reid_forward.1} parent=5 // pred_check
      %p395 = pneg %p394
    $region22: #{bag_reid_forward.1} parent=5 // pred_check_branch
      %397 = sbr.rel (%p395) target = $region24
    $region23: #{bag_reid_forward.1} parent=5 // pred_region
      // Predicated region
      $region25: #{bag_reid_forward.1} parent=23 // pred_check
        %p398 = pneg %p60
      $region26: #{bag_reid_forward.1} parent=23 // pred_check_branch
        %400 = sbr.rel (%p398) target = $region28
      $region27: #{bag_reid_forward.1} parent=23 // pred_region
        %p401 = scmp.lt.s32.totalorder %s19, 2
        %s402 = scalar_select %p401, %s19, 2
        %s403 = smul.addr %s402, 24
        %s404 = smul.addr %s403, 4
        %s405 = scalar_lea.vmem %s1, %s404
      $region28: #{bag_reid_forward.1} parent=23 // pred_fallthru
        _
      // Predicated region
      $region29: #{bag_reid_forward.1} parent=23 // pred_check
        %p406 = pneg %p86
      $region30: #{bag_reid_forward.1} parent=23 // pred_check_branch
        %408 = sbr.rel (%p406) target = $region32
      $region31: #{bag_reid_forward.1} parent=23 // pred_region
        %p409 = scmp.lt.s32.totalorder %s19, 2
        %s410 = scalar_select %p409, %s19, 2
        %s411 = scalar_lea.vmem %s2, %s410
      $region32: #{bag_reid_forward.1} parent=23 // pred_fallthru
        _
      // Predicated region
      $region33: #{bag_reid_forward.1} parent=23 // pred_check
        %p412 = pneg %p112
      $region34: #{bag_reid_forward.1} parent=23 // pred_check_branch
        %414 = sbr.rel (%p412) target = $region36
      $region35: #{bag_reid_forward.1} parent=23 // pred_region
        %p415 = scmp.lt.s32.totalorder %s19, 2
        %s416 = scalar_select %p415, %s19, 2
        %s417 = smul.addr %s416, 16
        %s418 = smul.addr %s417, 4
        %s419 = scalar_lea.vmem %s3, %s418
      $region36: #{bag_reid_forward.1} parent=23 // pred_fallthru
        _
      // Predicated region
      $region37: #{bag_reid_forward.1} parent=23 // pred_check
        %p420 = pneg %p138
      $region38: #{bag_reid_forward.1} parent=23 // pred_check_branch
        %422 = sbr.rel (%p420) target = $region40
      $region39: #{bag_reid_forward.1} parent=23 // pred_region
        %p423 = scmp.lt.s32.totalorder %s19, 2
        %s424 = scalar_select %p423, %s19, 2
        %s425 = scalar_lea.vmem %s4, %s424
      $region40: #{bag_reid_forward.1} parent=23 // pred_fallthru
        _
      // Predicated region
      $region41: #{bag_reid_forward.1} parent=23 // pred_check
        %p426 = pneg %p185
      $region42: #{bag_reid_forward.1} parent=23 // pred_check_branch
        %428 = sbr.rel (%p426) target = $region44
      $region43: #{bag_reid_forward.1} parent=23 // pred_region
        %p429 = scmp.lt.s32.totalorder %s19, 2
        %s430 = scalar_select %p429, %s19, 2
        %s431 = smul.addr %s430, 36
        %s432 = smul.addr %s431, 4
        %s433 = scalar_lea.vmem %s6, %s432
      $region44: #{bag_reid_forward.1} parent=23 // pred_fallthru
        _
      // Predicated region
      $region45: #{bag_reid_forward.1} parent=23 // pred_check
        %p434 = pneg %p211
      $region46: #{bag_reid_forward.1} parent=23 // pred_check_branch
        %436 = sbr.rel (%p434) target = $region48
      $region47: #{bag_reid_forward.1} parent=23 // pred_region
        %p437 = scmp.lt.s32.totalorder %s19, 2
        %s438 = scalar_select %p437, %s19, 2
        %s439 = scalar_lea.vmem %s7, %s438
      $region48: #{bag_reid_forward.1} parent=23 // pred_fallthru
        _
      // Predicated region
      $region49: #{bag_reid_forward.1} parent=23 // pred_check
        %p440 = pneg %p237
      $region50: #{bag_reid_forward.1} parent=23 // pred_check_branch
        %442 = sbr.rel (%p440) target = $region52
      $region51: #{bag_reid_forward.1} parent=23 // pred_region
        %p443 = scmp.lt.s32.totalorder %s19, 2
        %s444 = scalar_select %p443, %s19, 2
        %s445 = smul.addr %s444, 4
        %s446 = smul.addr %s445, 4
        %s447 = scalar_lea.vmem %s8, %s446
      $region52: #{bag_reid_forward.1} parent=23 // pred_fallthru
        _
      // Predicated region
      $region53: #{bag_reid_forward.1} parent=23 // pred_check
        %p448 = pneg %p263
      $region54: #{bag_reid_forward.1} parent=23 // pred_check_branch
        %450 = sbr.rel (%p448) target = $region56
      $region55: #{bag_reid_forward.1} parent=23 // pred_region
        %p451 = scmp.lt.s32.totalorder %s19, 2
        %s452 = scalar_select %p451, %s19, 2
        %s453 = scalar_lea.vmem %s9, %s452
      $region56: #{bag_reid_forward.1} parent=23 // pred_fallthru
        _
      // Predicated region
      $region57: #{bag_reid_forward.1} parent=23 // pred_check
        %p454 = pneg %p289
      $region58: #{bag_reid_forward.1} parent=23 // pred_check_branch
        %456 = sbr.rel (%p454) target = $region60
      $region59: #{bag_reid_forward.1} parent=23 // pred_region
        %p457 = scmp.lt.s32.totalorder %s19, 2
        %s458 = scalar_select %p457, %s19, 2
        %s459 = smul.addr %s458, 48
        %s460 = smul.addr %s459, 4
        %s461 = scalar_lea.vmem %s10, %s460
      $region60: #{bag_reid_forward.1} parent=23 // pred_fallthru
        _
      // Predicated region
      $region61: #{bag_reid_forward.1} parent=23 // pred_check
        %p462 = pneg %p315
      $region62: #{bag_reid_forward.1} parent=23 // pred_check_branch
        %464 = sbr.rel (%p462) target = $region64
      $region63: #{bag_reid_forward.1} parent=23 // pred_region
        %p465 = scmp.lt.s32.totalorder %s19, 2
        %s466 = scalar_select %p465, %s19, 2
        %s467 = smul.addr %s466, 48
        %s468 = smul.addr %s467, 4
        %s469 = scalar_lea.vmem %s11, %s468
      $region64: #{bag_reid_forward.1} parent=23 // pred_fallthru
        _
      // Predicated region
      $region65: #{bag_reid_forward.1} parent=23 // pred_check
        %p470 = pneg %p341
      $region66: #{bag_reid_forward.1} parent=23 // pred_check_branch
        %472 = sbr.rel (%p470) target = $region68
      $region67: #{bag_reid_forward.1} parent=23 // pred_region
        %p473 = scmp.lt.s32.totalorder %s19, 2
        %s474 = scalar_select %p473, %s19, 2
        %s475 = smul.addr %s474, 3
        %s476 = scalar_lea.vmem %s12, %s475
      $region68: #{bag_reid_forward.1} parent=23 // pred_fallthru
        _
    $region24: #{bag_reid_forward.1} parent=5 // pred_fallthru
      _
    %p477 = scmp.le.s32.totalorder 1, %s19
    %p478 = scmp.lt.s32.totalorder %s19, 4
    %p479 = pnand %p477, %p478
    %p480 = pneg %p479
    // Predicated region
    $region69: #{bag_reid_forward.1} parent=5 // pred_check
      _
    $region70: #{bag_reid_forward.1} parent=5 // pred_check_branch
      %482 = sbr.rel (%p479) target = $region72
    $region71: #{bag_reid_forward.1} parent=5 // pred_region
      %s483 = ssub.s32 %s19, 1
      %p484 = pneg %p40
      %p485 = pneg %p37
      %p486 = scmp.lt.s32.totalorder %s24, 2
      %s487 = scalar_select %p486, %s24, 2
      %s488 = smul.addr %s487, 24
      %s489 = smul.addr %s488, 4
      %s490 = scalar_lea.vmem %s1, %s489
      %p491 = pneg %p66
      %p492 = pneg %p63
      %p493 = scmp.lt.s32.totalorder %s24, 2
      %s494 = scalar_select %p493, %s24, 2
      %s495 = scalar_lea.vmem %s2, %s494
      %p496 = pneg %p92
      %p497 = pneg %p89
      %p498 = scmp.lt.s32.totalorder %s24, 2
      %s499 = scalar_select %p498, %s24, 2
      %s500 = smul.addr %s499, 16
      %s501 = smul.addr %s500, 4
      %s502 = scalar_lea.vmem %s3, %s501
      %p503 = pneg %p118
      %p504 = pneg %p115
      %p505 = scmp.lt.s32.totalorder %s24, 2
      %s506 = scalar_select %p505, %s24, 2
      %s507 = scalar_lea.vmem %s4, %s506
      %p508 = pneg %p144
      %p509 = pneg %p141
      %p510 = pneg %p165
      %p511 = pneg %p162
      %p512 = scmp.lt.s32.totalorder %s24, 2
      %s513 = scalar_select %p512, %s24, 2
      %s514 = smul.addr %s513, 36
      %s515 = smul.addr %s514, 4
      %s516 = scalar_lea.vmem %s6, %s515
      %p517 = pneg %p191
      %p518 = pneg %p188
      %p519 = scmp.lt.s32.totalorder %s24, 2
      %s520 = scalar_select %p519, %s24, 2
      %s521 = scalar_lea.vmem %s7, %s520
      %p522 = pneg %p217
      %p523 = pneg %p214
      %p524 = scmp.lt.s32.totalorder %s24, 2
      %s525 = scalar_select %p524, %s24, 2
      %s526 = smul.addr %s525, 4
      %s527 = smul.addr %s526, 4
      %s528 = scalar_lea.vmem %s8, %s527
      %p529 = pneg %p243
      %p530 = pneg %p240
      %p531 = scmp.lt.s32.totalorder %s24, 2
      %s532 = scalar_select %p531, %s24, 2
      %s533 = scalar_lea.vmem %s9, %s532
      %p534 = pneg %p269
      %p535 = pneg %p266
      %p536 = scmp.lt.s32.totalorder %s24, 2
      %s537 = scalar_select %p536, %s24, 2
      %s538 = smul.addr %s537, 48
      %s539 = smul.addr %s538, 4
      %s540 = scalar_lea.vmem %s10, %s539
      %p541 = pneg %p295
      %p542 = pneg %p292
      %p543 = scmp.lt.s32.totalorder %s24, 2
      %s544 = scalar_select %p543, %s24, 2
      %s545 = smul.addr %s544, 48
      %s546 = smul.addr %s545, 4
      %s547 = scalar_lea.vmem %s11, %s546
      %p548 = pneg %p321
      %p549 = pneg %p318
      %p550 = scmp.lt.s32.totalorder %s24, 2
      %s551 = scalar_select %p550, %s24, 2
      %s552 = smul.addr %s551, 3
      %s553 = scalar_lea.vmem %s12, %s552
      %p554 = pneg %p347
      %p555 = pneg %p344
      %p556 = pneg %p373
      %p557 = pneg %p370
      %p558 = scmp.lt.s32.totalorder %s24, 2
      %s559 = scalar_select %p558, %s24, 2
      %s560 = smul.addr %s559, 3
      %s561 = smul.addr %s560, 2
      %s562 = scalar_lea.vmem %s13, %s561
      %p563 = scmp.lt.s32.totalorder %s24, 2
      %s564 = scalar_select %p563, %s24, 2
      %s565 = smul.addr %s564, 24
      %s566 = smul.addr %s565, 4
      %s567 = scalar_lea.vmem %s1, %s566
      %p568 = scmp.lt.s32.totalorder %s24, 2
      %s569 = scalar_select %p568, %s24, 2
      %s570 = scalar_lea.vmem %s2, %s569
      %p571 = scmp.lt.s32.totalorder %s24, 2
      %s572 = scalar_select %p571, %s24, 2
      %s573 = smul.addr %s572, 16
      %s574 = smul.addr %s573, 4
      %s575 = scalar_lea.vmem %s3, %s574
      %p576 = scmp.lt.s32.totalorder %s24, 2
      %s577 = scalar_select %p576, %s24, 2
      %s578 = scalar_lea.vmem %s4, %s577
      %p579 = scmp.lt.s32.totalorder %s24, 2
      %s580 = scalar_select %p579, %s24, 2
      %s581 = smul.addr %s580, 36
      %s582 = smul.addr %s581, 4
      %s583 = scalar_lea.vmem %s6, %s582
      %p584 = scmp.lt.s32.totalorder %s24, 2
      %s585 = scalar_select %p584, %s24, 2
      %s586 = scalar_lea.vmem %s7, %s585
      %p587 = scmp.lt.s32.totalorder %s24, 2
      %s588 = scalar_select %p587, %s24, 2
      %s589 = smul.addr %s588, 4
      %s590 = smul.addr %s589, 4
      %s591 = scalar_lea.vmem %s8, %s590
      %p592 = scmp.lt.s32.totalorder %s24, 2
      %s593 = scalar_select %p592, %s24, 2
      %s594 = scalar_lea.vmem %s9, %s593
      %p595 = scmp.lt.s32.totalorder %s24, 2
      %s596 = scalar_select %p595, %s24, 2
      %s597 = smul.addr %s596, 48
      %s598 = smul.addr %s597, 4
      %s599 = scalar_lea.vmem %s10, %s598
      %p600 = scmp.lt.s32.totalorder %s24, 2
      %s601 = scalar_select %p600, %s24, 2
      %s602 = smul.addr %s601, 48
      %s603 = smul.addr %s602, 4
      %s604 = scalar_lea.vmem %s11, %s603
      %p605 = scmp.lt.s32.totalorder %s24, 2
      %s606 = scalar_select %p605, %s24, 2
      %s607 = smul.addr %s606, 3
      %s608 = scalar_lea.vmem %s12, %s607
      %p609 = scmp.lt.s32.totalorder %s24, 2
      %s610 = scalar_select %p609, %s24, 2
      %s611 = smul.addr %s610, 3
      %s612 = smul.addr %s611, 2
      %s613 = scalar_lea.vmem %s13, %s612
      %v615 = vld [vmem:[%s0] sm:$0xff]
      %v616 = vld [vmem:[%s0 + $0x8] sm:$0xff]
      %v617 = vld [vmem:[%s0 + $0x10] sm:$0xff]
      %v618 = vld [vmem:[%s0 + $0x18] sm:$0xff]
      %v619 = vld [vmem:[%s567] sm:$0xf]
      %v620 = vld [vmem:[%s567 + $0x4] sm:$0xf]
      %v621 = vld [vmem:[%s567 + $0x8] sm:$0xf]
      %v622 = vld [vmem:[%s567 + $0xc] sm:$0xf]
      %v623 = vld [vmem:[%s567 + $0x10] sm:$0xf]
      %v624 = vld [vmem:[%s567 + $0x14] sm:$0xf]
      %v625 = vld [vmem:[%s567 + $0x18] sm:$0xf]
      %v626 = vld [vmem:[%s567 + $0x1c] sm:$0xf]
      %v627 = vld [vmem:[%s567 + $0x20] sm:$0xf]
      %v628 = vld [vmem:[%s567 + $0x24] sm:$0xf]
      %v629 = vld [vmem:[%s567 + $0x28] sm:$0xf]
      %v630 = vld [vmem:[%s567 + $0x2c] sm:$0xf]
      %v631 = vld [vmem:[%s567 + $0x30] sm:$0xf]
      %v632 = vld [vmem:[%s567 + $0x34] sm:$0xf]
      %v633 = vld [vmem:[%s567 + $0x38] sm:$0xf]
      %v634 = vld [vmem:[%s567 + $0x3c] sm:$0xf]
      %v635 = vld [vmem:[%s567 + $0x40] sm:$0xf]
      %v636 = vld [vmem:[%s567 + $0x44] sm:$0xf]
      %v637 = vld [vmem:[%s567 + $0x48] sm:$0xf]
      %v638 = vld [vmem:[%s567 + $0x4c] sm:$0xf]
      %v639 = vld [vmem:[%s567 + $0x50] sm:$0xf]
      %v640 = vld [vmem:[%s567 + $0x54] sm:$0xf]
      %v641 = vld [vmem:[%s567 + $0x58] sm:$0xf]
      %v642 = vld [vmem:[%s567 + $0x5c] sm:$0xf]
      %v643 = vld [vmem:[%s570] sm:$0x1]
      %v645 = vlaneseq
      %v646 = vshrl.u32 %v645, 7
      %v647 = vsub.s32 0, %v646
      %v648 = vrot.slane %v643, %v647
      %v654 = vunpack.c.l.b16 %v615
      %v655 = vunpack.c.h.b16 %v615
      %v656 = vunpack.c.l.b16 %v616
      %v657 = vunpack.c.h.b16 %v616
      %v658 = vunpack.c.l.b16 %v617
      %v659 = vunpack.c.h.b16 %v617
      %v660 = vunpack.c.l.b16 %v618
      %v661 = vunpack.c.h.b16 %v618
      %v662 = vpack.c.b16 %v656, %v654
      %v663 = vpack.c.b16 %v657, %v655
      %v664 = vpack.c.b16 %v660, %v658
      %v665 = vpack.c.b16 %v661, %v659
      %v692 = vunpack.c.l.b16 %v619
      %v693 = vunpack.c.l.b16 %v620
      %v694 = vunpack.c.l.b16 %v621
      %v695 = vunpack.c.l.b16 %v622
      %v696 = vunpack.c.l.b16 %v623
      %v697 = vunpack.c.l.b16 %v624
      %v698 = vunpack.c.l.b16 %v625
      %v699 = vunpack.c.l.b16 %v626
      %v700 = vunpack.c.l.b16 %v627
      %v701 = vunpack.c.l.b16 %v628
      %v702 = vunpack.c.l.b16 %v629
      %v703 = vunpack.c.l.b16 %v630
      %v704 = vunpack.c.l.b16 %v631
      %v705 = vunpack.c.l.b16 %v632
      %v706 = vunpack.c.l.b16 %v633
      %v707 = vunpack.c.l.b16 %v634
      %v708 = vunpack.c.l.b16 %v635
      %v709 = vunpack.c.l.b16 %v636
      %v710 = vunpack.c.l.b16 %v637
      %v711 = vunpack.c.l.b16 %v638
      %v712 = vunpack.c.l.b16 %v639
      %v713 = vunpack.c.l.b16 %v640
      %v714 = vunpack.c.l.b16 %v641
      %v715 = vunpack.c.l.b16 %v642
      %v716 = vpack.c.b16 %v693, %v692
      %v717 = vpack.c.b16 %v695, %v694
      %v718 = vpack.c.b16 %v697, %v696
      %v719 = vpack.c.b16 %v699, %v698
      %v720 = vpack.c.b16 %v701, %v700
      %v721 = vpack.c.b16 %v703, %v702
      %v722 = vpack.c.b16 %v705, %v704
      %v723 = vpack.c.b16 %v707, %v706
      %v724 = vpack.c.b16 %v709, %v708
      %v725 = vpack.c.b16 %v711, %v710
      %v726 = vpack.c.b16 %v713, %v712
      %v727 = vpack.c.b16 %v715, %v714
      %vm740 = vcmask 523264
      %v742 = vsel %vm740, %v663, 0
      %v745 = vsel %vm740, %v665, 0
      %747 = vmatprep.subr.bf16.mxu0 0
      %748 = vmatpush1.bf16.msra.mxu0 %v723
      %749 = vmatprep.subr.bf16.mxu0 0
      %750 = vmatpush1.bf16.msra.mxu0 %v722
      %751 = vmatprep.subr.bf16.mxu0 0
      %752 = vmatpush1.bf16.msra.mxu0 %v721
      %753 = vmatprep.subr.bf16.mxu0 0
      %754 = vmatpush1.bf16.msra.mxu0 %v720
      %755 = vmatprep.subr.bf16.mxu0 0
      %756 = vmatpush1.bf16.msra.mxu0 %v719
      %757 = vmatprep.subr.bf16.mxu0 0
      %758 = vmatpush1.bf16.msra.mxu0 %v718
      %759 = vmatprep.subr.bf16.mxu0 0
      %760 = vmatpush1.bf16.msra.mxu0 %v717
      %761 = vmatprep.subr.bf16.mxu0 0
      %762 = vmatpush1.bf16.msra.mxu0 %v716
      %763 = vmatprep.subr.bf16.mxu0 0
      %764 = vmatpush2.bf16.msra.mxu0 0
      %765 = vmatprep.subr.bf16.mxu0 0
      %766 = vmatpush2.bf16.msra.mxu0 0
      %767 = vmatprep.subr.bf16.mxu0 0
      %768 = vmatpush2.bf16.msra.mxu0 0
      %769 = vmatprep.subr.bf16.mxu0 0
      %770 = vmatpush2.bf16.msra.mxu0 0
      %771 = vmatprep.subr.bf16.mxu0 0
      %772 = vmatpush2.bf16.msra.mxu0 %v727
      %773 = vmatprep.subr.bf16.mxu0 0
      %774 = vmatpush2.bf16.msra.mxu0 %v726
      %775 = vmatprep.subr.bf16.mxu0 0
      %776 = vmatpush2.bf16.msra.mxu0 %v725
      %777 = vmatprep.subr.bf16.mxu0 0
      %778 = vmatpush2.bf16.msra.mxu0 %v724
      %779 = vmatprep.mubr.bf16.mxu0 %v742
      %780 = vmatmul.mubr.bf16.gmra.mxu0 %v662
      %v781 = vpop.f32.mrf.mxu0
      %v782 = vadd.f32 %v648, %v781
      %v783 = vpop.f32.mrf.mxu0
      %v784 = vpop.f32.mrf.mxu0
      %v785 = vadd.f32 %v648, %v784
      %v786 = vpop.f32.mrf.mxu0
      %787 = vmatprep.mubr.bf16.mxu0 %v745
      %788 = vmatmul.mubr.bf16.gmra.mxu0 %v664
      %v789 = vpop.f32.mrf.mxu0
      %v790 = vadd.f32 %v648, %v789
      %v791 = vpop.f32.mrf.mxu0
      %v792 = vpop.f32.mrf.mxu0
      %v793 = vadd.f32 %v648, %v792
      %v794 = vpop.f32.mrf.mxu0
      %795 = vdwg.mxu0
      %v796 = vmax.f32 %v782, 0.0
      %v797 = vmax.f32 %v785, 0.0
      %v798 = vmax.f32 %v790, 0.0
      %v799 = vmax.f32 %v793, 0.0
      %v800 = vpack.c.bf16 %v797, %v796
      %v801 = vpack.c.bf16 %v799, %v798
      %v802 = vadd.f32 %v796, %v797
      %v803 = vrot.slane %v802, 4
      %v804 = vadd.f32 %v802, %v803
      %v805 = vrot.slane %v804, 2
      %v806 = vadd.f32 %v804, %v805
      %v807 = vrot.slane %v806, 1
      %v808 = vadd.f32 %v806, %v807
      %v809 = vrcp.pop 16.0
      %v810 = vmul.f32 %v808, %v809
      %811 = vst [vmem:[#allocation2] sm:$0x1] %v810
      %v812 = vadd.f32 %v798, %v799
      %v813 = vrot.slane %v812, 4
      %v814 = vadd.f32 %v812, %v813
      %v815 = vrot.slane %v814, 2
      %v816 = vadd.f32 %v814, %v815
      %v817 = vrot.slane %v816, 1
      %v818 = vadd.f32 %v816, %v817
      %v819 = vmul.f32 %v818, %v809
      %820 = vst [vmem:[#allocation2 + $0x1] sm:$0x1] %v819
      %v821 = vld [vmem:[%s575] sm:$0xf]
      %v822 = vld [vmem:[%s575 + $0x4] sm:$0xf]
      %v823 = vld [vmem:[%s575 + $0x8] sm:$0xf]
      %v824 = vld [vmem:[%s575 + $0xc] sm:$0xf]
      %v825 = vld [vmem:[%s575 + $0x10] sm:$0xf]
      %v826 = vld [vmem:[%s575 + $0x14] sm:$0xf]
      %v827 = vld [vmem:[%s575 + $0x18] sm:$0xf]
      %v828 = vld [vmem:[%s575 + $0x1c] sm:$0xf]
      %v829 = vld [vmem:[%s575 + $0x20] sm:$0xf]
      %v830 = vld [vmem:[%s575 + $0x24] sm:$0xf]
      %v831 = vld [vmem:[%s575 + $0x28] sm:$0xf]
      %v832 = vld [vmem:[%s575 + $0x2c] sm:$0xf]
      %v833 = vld [vmem:[%s575 + $0x30] sm:$0xf]
      %v834 = vld [vmem:[%s575 + $0x34] sm:$0xf]
      %v835 = vld [vmem:[%s575 + $0x38] sm:$0xf]
      %v836 = vld [vmem:[%s575 + $0x3c] sm:$0xf]
      %v837 = vld [vmem:[%s578] sm:$0x1]
      %v839 = vlaneseq
      %v840 = vshrl.u32 %v839, 7
      %v841 = vsub.s32 0, %v840
      %v842 = vrot.slane %v837, %v841
      %v860 = vunpack.c.l.b16 %v821
      %v861 = vunpack.c.l.b16 %v822
      %v862 = vunpack.c.l.b16 %v823
      %v863 = vunpack.c.l.b16 %v824
      %v864 = vunpack.c.l.b16 %v825
      %v865 = vunpack.c.l.b16 %v826
      %v866 = vunpack.c.l.b16 %v827
      %v867 = vunpack.c.l.b16 %v828
      %v868 = vunpack.c.l.b16 %v829
      %v869 = vunpack.c.l.b16 %v830
      %v870 = vunpack.c.l.b16 %v831
      %v871 = vunpack.c.l.b16 %v832
      %v872 = vunpack.c.l.b16 %v833
      %v873 = vunpack.c.l.b16 %v834
      %v874 = vunpack.c.l.b16 %v835
      %v875 = vunpack.c.l.b16 %v836
      %v876 = vpack.c.b16 %v861, %v860
      %v877 = vpack.c.b16 %v863, %v862
      %v878 = vpack.c.b16 %v865, %v864
      %v879 = vpack.c.b16 %v867, %v866
      %v880 = vpack.c.b16 %v869, %v868
      %v881 = vpack.c.b16 %v871, %v870
      %v882 = vpack.c.b16 %v873, %v872
      %v883 = vpack.c.b16 %v875, %v874
      %892 = vmatprep.subr.bf16.mxu0 0
      %893 = vmatpush1.bf16.msra.mxu0 %v883
      %894 = vmatprep.subr.bf16.mxu0 0
      %895 = vmatpush1.bf16.msra.mxu0 %v882
      %896 = vmatprep.subr.bf16.mxu0 0
      %897 = vmatpush1.bf16.msra.mxu0 %v881
      %898 = vmatprep.subr.bf16.mxu0 0
      %899 = vmatpush1.bf16.msra.mxu0 %v880
      %900 = vmatprep.subr.bf16.mxu0 0
      %901 = vmatpush1.bf16.msra.mxu0 %v879
      %902 = vmatprep.subr.bf16.mxu0 0
      %903 = vmatpush1.bf16.msra.mxu0 %v878
      %904 = vmatprep.subr.bf16.mxu0 0
      %905 = vmatpush1.bf16.msra.mxu0 %v877
      %906 = vmatprep.subr.bf16.mxu0 0
      %907 = vmatpush1.bf16.msra.mxu0 %v876
      %908 = vmatprep.subr.bf16.mxu0 0
      %909 = vmatpush2.bf16.msra.mxu0 0
      %910 = vmatprep.subr.bf16.mxu0 0
      %911 = vmatpush2.bf16.msra.mxu0 0
      %912 = vmatprep.subr.bf16.mxu0 0
      %913 = vmatpush2.bf16.msra.mxu0 0
      %914 = vmatprep.subr.bf16.mxu0 0
      %915 = vmatpush2.bf16.msra.mxu0 0
      %916 = vmatprep.subr.bf16.mxu0 0
      %917 = vmatpush2.bf16.msra.mxu0 0
      %918 = vmatprep.subr.bf16.mxu0 0
      %919 = vmatpush2.bf16.msra.mxu0 0
      %920 = vmatprep.subr.bf16.mxu0 0
      %921 = vmatpush2.bf16.msra.mxu0 0
      %922 = vmatprep.subr.bf16.mxu0 0
      %923 = vmatpush2.bf16.msra.mxu0 0
      %924 = vmatprep.mubr.bf16.mxu0 0
      %925 = vmatmul.mubr.bf16.gmra.mxu0 %v800
      %v926 = vpop.f32.mrf.mxu0
      %v927 = vadd.f32 %v842, %v926
      %v928 = vpop.f32.mrf.mxu0
      %v929 = vpop.f32.mrf.mxu0
      %v930 = vadd.f32 %v842, %v929
      %v931 = vpop.f32.mrf.mxu0
      %932 = vmatprep.mubr.bf16.mxu0 0
      %933 = vmatmul.mubr.bf16.gmra.mxu0 %v801
      %v934 = vpop.f32.mrf.mxu0
      %v935 = vadd.f32 %v842, %v934
      %v936 = vpop.f32.mrf.mxu0
      %v937 = vpop.f32.mrf.mxu0
      %v938 = vadd.f32 %v842, %v937
      %v939 = vpop.f32.mrf.mxu0
      %940 = vdwg.mxu0
      %v941 = vmax.f32 %v927, 0.0
      %v942 = vmax.f32 %v930, 0.0
      %v943 = vmax.f32 %v935, 0.0
      %v944 = vmax.f32 %v938, 0.0
      %v945 = vpack.c.bf16 %v942, %v941
      %v946 = vpack.c.bf16 %v944, %v943
      %v947 = vld [vmem:[%s583] sm:$0xf]
      %v948 = vld [vmem:[%s583 + $0x4] sm:$0xf]
      %v949 = vld [vmem:[%s583 + $0x8] sm:$0xf]
      %v950 = vld [vmem:[%s583 + $0xc] sm:$0xf]
      %v951 = vld [vmem:[%s583 + $0x10] sm:$0xf]
      %v952 = vld [vmem:[%s583 + $0x14] sm:$0xf]
      %v953 = vld [vmem:[%s583 + $0x18] sm:$0xf]
      %v954 = vld [vmem:[%s583 + $0x1c] sm:$0xf]
      %v955 = vld [vmem:[%s583 + $0x20] sm:$0xf]
      %v956 = vld [vmem:[%s583 + $0x24] sm:$0xf]
      %v957 = vld [vmem:[%s583 + $0x28] sm:$0xf]
      %v958 = vld [vmem:[%s583 + $0x2c] sm:$0xf]
      %v959 = vld [vmem:[%s583 + $0x30] sm:$0xf]
      %v960 = vld [vmem:[%s583 + $0x34] sm:$0xf]
      %v961 = vld [vmem:[%s583 + $0x38] sm:$0xf]
      %v962 = vld [vmem:[%s583 + $0x3c] sm:$0xf]
      %v963 = vld [vmem:[%s583 + $0x40] sm:$0xf]
      %v964 = vld [vmem:[%s583 + $0x44] sm:$0xf]
      %v965 = vld [vmem:[%s583 + $0x48] sm:$0xf]
      %v966 = vld [vmem:[%s583 + $0x4c] sm:$0xf]
      %v967 = vld [vmem:[%s583 + $0x50] sm:$0xf]
      %v968 = vld [vmem:[%s583 + $0x54] sm:$0xf]
      %v969 = vld [vmem:[%s583 + $0x58] sm:$0xf]
      %v970 = vld [vmem:[%s583 + $0x5c] sm:$0xf]
      %v971 = vld [vmem:[%s583 + $0x60] sm:$0xf]
      %v972 = vld [vmem:[%s583 + $0x64] sm:$0xf]
      %v973 = vld [vmem:[%s583 + $0x68] sm:$0xf]
      %v974 = vld [vmem:[%s583 + $0x6c] sm:$0xf]
      %v975 = vld [vmem:[%s583 + $0x70] sm:$0xf]
      %v976 = vld [vmem:[%s583 + $0x74] sm:$0xf]
      %v977 = vld [vmem:[%s583 + $0x78] sm:$0xf]
      %v978 = vld [vmem:[%s583 + $0x7c] sm:$0xf]
      %v979 = vld [vmem:[%s583 + $0x80] sm:$0xf]
      %v980 = vld [vmem:[%s583 + $0x84] sm:$0xf]
      %v981 = vld [vmem:[%s583 + $0x88] sm:$0xf]
      %v982 = vld [vmem:[%s583 + $0x8c] sm:$0xf]
      %v983 = vld [vmem:[%s5] sm:$0xf]
      %v984 = vld [vmem:[%s5 + $0x4] sm:$0xf]
      %v985 = vld [vmem:[%s5 + $0x8] sm:$0xf]
      %v986 = vld [vmem:[%s5 + $0xc] sm:$0xf]
      %v987 = vld [vmem:[%s5 + $0x10] sm:$0xf]
      %v988 = vld [vmem:[%s5 + $0x14] sm:$0xf]
      %v989 = vld [vmem:[%s5 + $0x18] sm:$0xf]
      %v990 = vld [vmem:[%s5 + $0x1c] sm:$0xf]
      %v991 = vld [vmem:[%s5 + $0x20] sm:$0xf]
      %v992 = vld [vmem:[%s5 + $0x24] sm:$0xf]
      %v993 = vld [vmem:[%s5 + $0x28] sm:$0xf]
      %v994 = vld [vmem:[%s5 + $0x2c] sm:$0xf]
      %v995 = vld [vmem:[%s5 + $0x30] sm:$0xf]
      %v996 = vld [vmem:[%s5 + $0x34] sm:$0xf]
      %v997 = vld [vmem:[%s5 + $0x38] sm:$0xf]
      %v998 = vld [vmem:[%s5 + $0x3c] sm:$0xf]
      %v999 = vld [vmem:[%s5 + $0x40] sm:$0xf]
      %v1000 = vld [vmem:[%s5 + $0x44] sm:$0xf]
      %v1001 = vld [vmem:[%s5 + $0x48] sm:$0xf]
      %v1002 = vld [vmem:[%s5 + $0x4c] sm:$0xf]
      %v1003 = vld [vmem:[%s5 + $0x50] sm:$0xf]
      %v1004 = vld [vmem:[%s5 + $0x54] sm:$0xf]
      %v1005 = vld [vmem:[%s5 + $0x58] sm:$0xf]
      %v1006 = vld [vmem:[%s5 + $0x5c] sm:$0xf]
      %v1007 = vld [vmem:[%s5 + $0x60] sm:$0xf]
      %v1008 = vld [vmem:[%s5 + $0x64] sm:$0xf]
      %v1009 = vld [vmem:[%s5 + $0x68] sm:$0xf]
      %v1010 = vld [vmem:[%s5 + $0x6c] sm:$0xf]
      %v1011 = vld [vmem:[%s5 + $0x70] sm:$0xf]
      %v1012 = vld [vmem:[%s5 + $0x74] sm:$0xf]
      %v1013 = vld [vmem:[%s5 + $0x78] sm:$0xf]
      %v1014 = vld [vmem:[%s5 + $0x7c] sm:$0xf]
      %v1015 = vld [vmem:[%s5 + $0x80] sm:$0xf]
      %v1016 = vld [vmem:[%s5 + $0x84] sm:$0xf]
      %v1017 = vld [vmem:[%s5 + $0x88] sm:$0xf]
      %v1018 = vld [vmem:[%s5 + $0x8c] sm:$0xf]
      %v1023 = vunpack.c.l.b16 %v983
      %v1024 = vunpack.c.l.b16 %v984
      %v1025 = vunpack.c.l.b16 %v985
      %v1026 = vunpack.c.l.b16 %v986
      %v1027 = vpack.c.b16 %v1024, %v1023
      %v1028 = vpack.c.b16 %v1026, %v1025
      %vm1029 = vcmask 261120
      %v1031 = vsel %vm1029, %v1027, 0
      %v1034 = vsel %vm1029, %v1028, 0
      %1036 = vmatprep.subr.bf16.mxu0 0
      %1037 = vmatpush1.bf16.msra.mxu0 0
      %1038 = vmatprep.subr.bf16.mxu0 0
      %1039 = vmatpush1.bf16.msra.mxu0 0
      %1040 = vmatprep.subr.bf16.mxu0 0
      %1041 = vmatpush1.bf16.msra.mxu0 0
      %1042 = vmatprep.subr.bf16.mxu0 0
      %1043 = vmatpush1.bf16.msra.mxu0 0
      %1044 = vmatprep.subr.bf16.mxu0 0
      %1045 = vmatpush1.bf16.msra.mxu0 0
      %1046 = vmatprep.subr.bf16.mxu0 0
      %1047 = vmatpush1.bf16.msra.mxu0 0
      %1048 = vmatprep.subr.bf16.mxu0 0
      %1049 = vmatpush1.bf16.msra.mxu0 %v946
      %1050 = vmatprep.subr.bf16.mxu0 0
      %1051 = vmatpush1.bf16.msra.mxu0 %v945
      %1052 = vmatprep.subr.bf16.mxu0 0
      %1053 = vmatpush2.bf16.msra.mxu0 0
      %1054 = vmatprep.subr.bf16.mxu0 0
      %1055 = vmatpush2.bf16.msra.mxu0 0
      %1056 = vmatprep.subr.bf16.mxu0 0
      %1057 = vmatpush2.bf16.msra.mxu0 0
      %1058 = vmatprep.subr.bf16.mxu0 0
      %1059 = vmatpush2.bf16.msra.mxu0 0
      %1060 = vmatprep.subr.bf16.mxu0 0
      %1061 = vmatpush2.bf16.msra.mxu0 0
      %1062 = vmatprep.subr.bf16.mxu0 0
      %1063 = vmatpush2.bf16.msra.mxu0 0
      %1064 = vmatprep.subr.bf16.mxu0 0
      %1065 = vmatpush2.bf16.msra.mxu0 0
      %1066 = vmatprep.subr.bf16.mxu0 0
      %1067 = vmatpush2.bf16.msra.mxu0 0
      %1068 = vmatprep.mubr.bf16.mxu0 0
      %1069 = vmatmul.mubr.bf16.gmra.mxu0 %v1031
      %v1070 = vpop.f32.mrf.mxu0
      %v1071 = vadd.f32 0.0, %v1070
      %v1072 = vpop.f32.mrf.mxu0
      %v1073 = vpop.f32.mrf.mxu0
      %v1074 = vadd.f32 0.0, %v1073
      %v1075 = vpop.f32.mrf.mxu0
      %1076 = vmatprep.mubr.bf16.mxu0 0
      %1077 = vmatmul.mubr.bf16.gmra.mxu0 %v1034
      %v1078 = vpop.f32.mrf.mxu0
      %v1079 = vadd.f32 0.0, %v1078
      %v1080 = vpop.f32.mrf.mxu0
      %v1081 = vpop.f32.mrf.mxu0
      %v1082 = vadd.f32 0.0, %v1081
      %v1083 = vpop.f32.mrf.mxu0
      %1084 = vdwg.mxu0
      %v1085 = vpack.c.bf16 %v1074, %v1071
      %v1086 = vpack.c.bf16 %v1082, %v1079
      %v1091 = vunpack.c.l.b16 %v987
      %v1092 = vunpack.c.l.b16 %v988
      %v1093 = vunpack.c.l.b16 %v989
      %v1094 = vunpack.c.l.b16 %v990
      %v1095 = vpack.c.b16 %v1092, %v1091
      %v1096 = vpack.c.b16 %v1094, %v1093
      %v1098 = vsel %vm1029, %v1095, 0
      %v1101 = vsel %vm1029, %v1096, 0
      %1103 = vmatprep.subr.bf16.mxu0 0
      %1104 = vmatpush1.bf16.msra.mxu0 0
      %1105 = vmatprep.subr.bf16.mxu0 0
      %1106 = vmatpush1.bf16.msra.mxu0 0
      %1107 = vmatprep.subr.bf16.mxu0 0
      %1108 = vmatpush1.bf16.msra.mxu0 0
      %1109 = vmatprep.subr.bf16.mxu0 0
      %1110 = vmatpush1.bf16.msra.mxu0 0
      %1111 = vmatprep.subr.bf16.mxu0 0
      %1112 = vmatpush1.bf16.msra.mxu0 0
      %1113 = vmatprep.subr.bf16.mxu0 0
      %1114 = vmatpush1.bf16.msra.mxu0 0
      %1115 = vmatprep.subr.bf16.mxu0 0
      %1116 = vmatpush1.bf16.msra.mxu0 %v946
      %1117 = vmatprep.subr.bf16.mxu0 0
      %1118 = vmatpush1.bf16.msra.mxu0 %v945
      %1119 = vmatprep.subr.bf16.mxu0 0
      %1120 = vmatpush2.bf16.msra.mxu0 0
      %1121 = vmatprep.subr.bf16.mxu0 0
      %1122 = vmatpush2.bf16.msra.mxu0 0
      %1123 = vmatprep.subr.bf16.mxu0 0
      %1124 = vmatpush2.bf16.msra.mxu0 0
      %1125 = vmatprep.subr.bf16.mxu0 0
      %1126 = vmatpush2.bf16.msra.mxu0 0
      %1127 = vmatprep.subr.bf16.mxu0 0
      %1128 = vmatpush2.bf16.msra.mxu0 0
      %1129 = vmatprep.subr.bf16.mxu0 0
      %1130 = vmatpush2.bf16.msra.mxu0 0
      %1131 = vmatprep.subr.bf16.mxu0 0
      %1132 = vmatpush2.bf16.msra.mxu0 0
      %1133 = vmatprep.subr.bf16.mxu0 0
      %1134 = vmatpush2.bf16.msra.mxu0 0
      %1135 = vmatprep.mubr.bf16.mxu0 0
      %1136 = vmatmul.mubr.bf16.gmra.mxu0 %v1098
      %v1137 = vpop.f32.mrf.mxu0
      %v1138 = vadd.f32 0.0, %v1137
      %v1139 = vpop.f32.mrf.mxu0
      %v1140 = vpop.f32.mrf.mxu0
      %v1141 = vadd.f32 0.0, %v1140
      %v1142 = vpop.f32.mrf.mxu0
      %1143 = vmatprep.mubr.bf16.mxu0 0
      %1144 = vmatmul.mubr.bf16.gmra.mxu0 %v1101
      %v1145 = vpop.f32.mrf.mxu0
      %v1146 = vadd.f32 0.0, %v1145
      %v1147 = vpop.f32.mrf.mxu0
      %v1148 = vpop.f32.mrf.mxu0
      %v1149 = vadd.f32 0.0, %v1148
      %v1150 = vpop.f32.mrf.mxu0
      %1151 = vdwg.mxu0
      %v1152 = vpack.c.bf16 %v1141, %v1138
      %v1153 = vpack.c.bf16 %v1149, %v1146
      %v1158 = vunpack.c.l.b16 %v951
      %v1159 = vunpack.c.l.b16 %v952
      %v1160 = vunpack.c.l.b16 %v953
      %v1161 = vunpack.c.l.b16 %v954
      %v1162 = vpack.c.b16 %v1159, %v1158
      %v1163 = vpack.c.b16 %v1161, %v1160
      %v1167 = vsel %vm1029, %v1152, 0
      %v1170 = vsel %vm1029, %v1153, 0
      %1172 = vmatprep.subr.bf16.mxu0 0
      %1173 = vmatpush1.bf16.msra.mxu0 0
      %1174 = vmatprep.subr.bf16.mxu0 0
      %1175 = vmatpush1.bf16.msra.mxu0 0
      %1176 = vmatprep.subr.bf16.mxu0 0
      %1177 = vmatpush1.bf16.msra.mxu0 0
      %1178 = vmatprep.subr.bf16.mxu0 0
      %1179 = vmatpush1.bf16.msra.mxu0 0
      %1180 = vmatprep.subr.bf16.mxu0 0
      %1181 = vmatpush1.bf16.msra.mxu0 0
      %1182 = vmatprep.subr.bf16.mxu0 0
      %1183 = vmatpush1.bf16.msra.mxu0 0
      %1184 = vmatprep.subr.bf16.mxu0 0
      %1185 = vmatpush1.bf16.msra.mxu0 %v1163
      %1186 = vmatprep.subr.bf16.mxu0 0
      %1187 = vmatpush1.bf16.msra.mxu0 %v1162
      %1188 = vmatprep.subr.bf16.mxu0 0
      %1189 = vmatpush2.bf16.msra.mxu0 0
      %1190 = vmatprep.subr.bf16.mxu0 0
      %1191 = vmatpush2.bf16.msra.mxu0 0
      %1192 = vmatprep.subr.bf16.mxu0 0
      %1193 = vmatpush2.bf16.msra.mxu0 0
      %1194 = vmatprep.subr.bf16.mxu0 0
      %1195 = vmatpush2.bf16.msra.mxu0 0
      %1196 = vmatprep.subr.bf16.mxu0 0
      %1197 = vmatpush2.bf16.msra.mxu0 0
      %1198 = vmatprep.subr.bf16.mxu0 0
      %1199 = vmatpush2.bf16.msra.mxu0 0
      %1200 = vmatprep.subr.bf16.mxu0 0
      %1201 = vmatpush2.bf16.msra.mxu0 0
      %1202 = vmatprep.subr.bf16.mxu0 0
      %1203 = vmatpush2.bf16.msra.mxu0 0
      %1204 = vmatprep.mubr.bf16.mxu0 0
      %1205 = vmatmul.mubr.bf16.gmra.mxu0 %v1167
      %v1206 = vpop.f32.mrf.mxu0
      %v1207 = vadd.f32 0.0, %v1206
      %v1208 = vpop.f32.mrf.mxu0
      %v1209 = vpop.f32.mrf.mxu0
      %v1210 = vadd.f32 0.0, %v1209
      %v1211 = vpop.f32.mrf.mxu0
      %1212 = vmatprep.mubr.bf16.mxu0 0
      %1213 = vmatmul.mubr.bf16.gmra.mxu0 %v1170
      %v1214 = vpop.f32.mrf.mxu0
      %v1215 = vadd.f32 0.0, %v1214
      %v1216 = vpop.f32.mrf.mxu0
      %v1217 = vpop.f32.mrf.mxu0
      %v1218 = vadd.f32 0.0, %v1217
      %v1219 = vpop.f32.mrf.mxu0
      %1220 = vdwg.mxu0
      %v1225 = vunpack.c.l.b16 %v947
      %v1226 = vunpack.c.l.b16 %v948
      %v1227 = vunpack.c.l.b16 %v949
      %v1228 = vunpack.c.l.b16 %v950
      %v1229 = vpack.c.b16 %v1226, %v1225
      %v1230 = vpack.c.b16 %v1228, %v1227
      %v1234 = vsel %vm1029, %v1085, 0
      %v1237 = vsel %vm1029, %v1086, 0
      %1239 = vmatprep.subr.bf16.mxu0 0
      %1240 = vmatpush1.bf16.msra.mxu0 0
      %1241 = vmatprep.subr.bf16.mxu0 0
      %1242 = vmatpush1.bf16.msra.mxu0 0
      %1243 = vmatprep.subr.bf16.mxu0 0
      %1244 = vmatpush1.bf16.msra.mxu0 0
      %1245 = vmatprep.subr.bf16.mxu0 0
      %1246 = vmatpush1.bf16.msra.mxu0 0
      %1247 = vmatprep.subr.bf16.mxu0 0
      %1248 = vmatpush1.bf16.msra.mxu0 0
      %1249 = vmatprep.subr.bf16.mxu0 0
      %1250 = vmatpush1.bf16.msra.mxu0 0
      %1251 = vmatprep.subr.bf16.mxu0 0
      %1252 = vmatpush1.bf16.msra.mxu0 %v1230
      %1253 = vmatprep.subr.bf16.mxu0 0
      %1254 = vmatpush1.bf16.msra.mxu0 %v1229
      %1255 = vmatprep.subr.bf16.mxu0 0
      %1256 = vmatpush2.bf16.msra.mxu0 0
      %1257 = vmatprep.subr.bf16.mxu0 0
      %1258 = vmatpush2.bf16.msra.mxu0 0
      %1259 = vmatprep.subr.bf16.mxu0 0
      %1260 = vmatpush2.bf16.msra.mxu0 0
      %1261 = vmatprep.subr.bf16.mxu0 0
      %1262 = vmatpush2.bf16.msra.mxu0 0
      %1263 = vmatprep.subr.bf16.mxu0 0
      %1264 = vmatpush2.bf16.msra.mxu0 0
      %1265 = vmatprep.subr.bf16.mxu0 0
      %1266 = vmatpush2.bf16.msra.mxu0 0
      %1267 = vmatprep.subr.bf16.mxu0 0
      %1268 = vmatpush2.bf16.msra.mxu0 0
      %1269 = vmatprep.subr.bf16.mxu0 0
      %1270 = vmatpush2.bf16.msra.mxu0 0
      %1271 = vmatprep.mubr.bf16.mxu0 0
      %1272 = vmatmul.mubr.bf16.gmra.mxu0 %v1234
      %v1273 = vpop.f32.mrf.mxu0
      %v1274 = vadd.f32 %v1207, %v1273
      %v1275 = vpop.f32.mrf.mxu0
      %v1276 = vpop.f32.mrf.mxu0
      %v1277 = vadd.f32 %v1210, %v1276
      %v1278 = vpop.f32.mrf.mxu0
      %1279 = vmatprep.mubr.bf16.mxu0 0
      %1280 = vmatmul.mubr.bf16.gmra.mxu0 %v1237
      %v1281 = vpop.f32.mrf.mxu0
      %v1282 = vadd.f32 %v1215, %v1281
      %v1283 = vpop.f32.mrf.mxu0
      %v1284 = vpop.f32.mrf.mxu0
      %v1285 = vadd.f32 %v1218, %v1284
      %v1286 = vpop.f32.mrf.mxu0
      %1287 = vdwg.mxu0
      %v1292 = vunpack.c.l.b16 %v991
      %v1293 = vunpack.c.l.b16 %v992
      %v1294 = vunpack.c.l.b16 %v993
      %v1295 = vunpack.c.l.b16 %v994
      %v1296 = vpack.c.b16 %v1293, %v1292
      %v1297 = vpack.c.b16 %v1295, %v1294
      %v1299 = vsel %vm1029, %v1296, 0
      %v1302 = vsel %vm1029, %v1297, 0
      %1304 = vmatprep.subr.bf16.mxu0 0
      %1305 = vmatpush1.bf16.msra.mxu0 0
      %1306 = vmatprep.subr.bf16.mxu0 0
      %1307 = vmatpush1.bf16.msra.mxu0 0
      %1308 = vmatprep.subr.bf16.mxu0 0
      %1309 = vmatpush1.bf16.msra.mxu0 0
      %1310 = vmatprep.subr.bf16.mxu0 0
      %1311 = vmatpush1.bf16.msra.mxu0 0
      %1312 = vmatprep.subr.bf16.mxu0 0
      %1313 = vmatpush1.bf16.msra.mxu0 0
      %1314 = vmatprep.subr.bf16.mxu0 0
      %1315 = vmatpush1.bf16.msra.mxu0 0
      %1316 = vmatprep.subr.bf16.mxu0 0
      %1317 = vmatpush1.bf16.msra.mxu0 %v946
      %1318 = vmatprep.subr.bf16.mxu0 0
      %1319 = vmatpush1.bf16.msra.mxu0 %v945
      %1320 = vmatprep.subr.bf16.mxu0 0
      %1321 = vmatpush2.bf16.msra.mxu0 0
      %1322 = vmatprep.subr.bf16.mxu0 0
      %1323 = vmatpush2.bf16.msra.mxu0 0
      %1324 = vmatprep.subr.bf16.mxu0 0
      %1325 = vmatpush2.bf16.msra.mxu0 0
      %1326 = vmatprep.subr.bf16.mxu0 0
      %1327 = vmatpush2.bf16.msra.mxu0 0
      %1328 = vmatprep.subr.bf16.mxu0 0
      %1329 = vmatpush2.bf16.msra.mxu0 0
      %1330 = vmatprep.subr.bf16.mxu0 0
      %1331 = vmatpush2.bf16.msra.mxu0 0
      %1332 = vmatprep.subr.bf16.mxu0 0
      %1333 = vmatpush2.bf16.msra.mxu0 0
      %1334 = vmatprep.subr.bf16.mxu0 0
      %1335 = vmatpush2.bf16.msra.mxu0 0
      %1336 = vmatprep.mubr.bf16.mxu0 0
      %1337 = vmatmul.mubr.bf16.gmra.mxu0 %v1299
      %v1338 = vpop.f32.mrf.mxu0
      %v1339 = vadd.f32 0.0, %v1338
      %v1340 = vpop.f32.mrf.mxu0
      %v1341 = vpop.f32.mrf.mxu0
      %v1342 = vadd.f32 0.0, %v1341
      %v1343 = vpop.f32.mrf.mxu0
      %1344 = vmatprep.mubr.bf16.mxu0 0
      %1345 = vmatmul.mubr.bf16.gmra.mxu0 %v1302
      %v1346 = vpop.f32.mrf.mxu0
      %v1347 = vadd.f32 0.0, %v1346
      %v1348 = vpop.f32.mrf.mxu0
      %v1349 = vpop.f32.mrf.mxu0
      %v1350 = vadd.f32 0.0, %v1349
      %v1351 = vpop.f32.mrf.mxu0
      %1352 = vdwg.mxu0
      %v1353 = vpack.c.bf16 %v1342, %v1339
      %v1354 = vpack.c.bf16 %v1350, %v1347
      %v1359 = vunpack.c.l.b16 %v955
      %v1360 = vunpack.c.l.b16 %v956
      %v1361 = vunpack.c.l.b16 %v957
      %v1362 = vunpack.c.l.b16 %v958
      %v1363 = vpack.c.b16 %v1360, %v1359
      %v1364 = vpack.c.b16 %v1362, %v1361
      %v1368 = vsel %vm1029, %v1353, 0
      %v1371 = vsel %vm1029, %v1354, 0
      %1373 = vmatprep.subr.bf16.mxu0 0
      %1374 = vmatpush1.bf16.msra.mxu0 0
      %1375 = vmatprep.subr.bf16.mxu0 0
      %1376 = vmatpush1.bf16.msra.mxu0 0
      %1377 = vmatprep.subr.bf16.mxu0 0
      %1378 = vmatpush1.bf16.msra.mxu0 0
      %1379 = vmatprep.subr.bf16.mxu0 0
      %1380 = vmatpush1.bf16.msra.mxu0 0
      %1381 = vmatprep.subr.bf16.mxu0 0
      %1382 = vmatpush1.bf16.msra.mxu0 0
      %1383 = vmatprep.subr.bf16.mxu0 0
      %1384 = vmatpush1.bf16.msra.mxu0 0
      %1385 = vmatprep.subr.bf16.mxu0 0
      %1386 = vmatpush1.bf16.msra.mxu0 %v1364
      %1387 = vmatprep.subr.bf16.mxu0 0
      %1388 = vmatpush1.bf16.msra.mxu0 %v1363
      %1389 = vmatprep.subr.bf16.mxu0 0
      %1390 = vmatpush2.bf16.msra.mxu0 0
      %1391 = vmatprep.subr.bf16.mxu0 0
      %1392 = vmatpush2.bf16.msra.mxu0 0
      %1393 = vmatprep.subr.bf16.mxu0 0
      %1394 = vmatpush2.bf16.msra.mxu0 0
      %1395 = vmatprep.subr.bf16.mxu0 0
      %1396 = vmatpush2.bf16.msra.mxu0 0
      %1397 = vmatprep.subr.bf16.mxu0 0
      %1398 = vmatpush2.bf16.msra.mxu0 0
      %1399 = vmatprep.subr.bf16.mxu0 0
      %1400 = vmatpush2.bf16.msra.mxu0 0
      %1401 = vmatprep.subr.bf16.mxu0 0
      %1402 = vmatpush2.bf16.msra.mxu0 0
      %1403 = vmatprep.subr.bf16.mxu0 0
      %1404 = vmatpush2.bf16.msra.mxu0 0
      %1405 = vmatprep.mubr.bf16.mxu0 0
      %1406 = vmatmul.mubr.bf16.gmra.mxu0 %v1368
      %v1407 = vpop.f32.mrf.mxu0
      %v1408 = vadd.f32 0.0, %v1407
      %v1409 = vpop.f32.mrf.mxu0
      %v1410 = vpop.f32.mrf.mxu0
      %v1411 = vadd.f32 0.0, %v1410
      %v1412 = vpop.f32.mrf.mxu0
      %1413 = vmatprep.mubr.bf16.mxu0 0
      %1414 = vmatmul.mubr.bf16.gmra.mxu0 %v1371
      %v1415 = vpop.f32.mrf.mxu0
      %v1416 = vadd.f32 0.0, %v1415
      %v1417 = vpop.f32.mrf.mxu0
      %v1418 = vpop.f32.mrf.mxu0
      %v1419 = vadd.f32 0.0, %v1418
      %v1420 = vpop.f32.mrf.mxu0
      %1421 = vdwg.mxu0
      %v1422 = vadd.f32 %v1274, %v1408
      %v1423 = vadd.f32 %v1277, %v1411
      %v1424 = vadd.f32 %v1282, %v1416
      %v1425 = vadd.f32 %v1285, %v1419
      %v1430 = vunpack.c.l.b16 %v995
      %v1431 = vunpack.c.l.b16 %v996
      %v1432 = vunpack.c.l.b16 %v997
      %v1433 = vunpack.c.l.b16 %v998
      %v1434 = vpack.c.b16 %v1431, %v1430
      %v1435 = vpack.c.b16 %v1433, %v1432
      %v1437 = vsel %vm1029, %v1434, 0
      %v1440 = vsel %vm1029, %v1435, 0
      %1442 = vmatprep.subr.bf16.mxu0 0
      %1443 = vmatpush1.bf16.msra.mxu0 0
      %1444 = vmatprep.subr.bf16.mxu0 0
      %1445 = vmatpush1.bf16.msra.mxu0 0
      %1446 = vmatprep.subr.bf16.mxu0 0
      %1447 = vmatpush1.bf16.msra.mxu0 0
      %1448 = vmatprep.subr.bf16.mxu0 0
      %1449 = vmatpush1.bf16.msra.mxu0 0
      %1450 = vmatprep.subr.bf16.mxu0 0
      %1451 = vmatpush1.bf16.msra.mxu0 0
      %1452 = vmatprep.subr.bf16.mxu0 0
      %1453 = vmatpush1.bf16.msra.mxu0 0
      %1454 = vmatprep.subr.bf16.mxu0 0
      %1455 = vmatpush1.bf16.msra.mxu0 %v946
      %1456 = vmatprep.subr.bf16.mxu0 0
      %1457 = vmatpush1.bf16.msra.mxu0 %v945
      %1458 = vmatprep.subr.bf16.mxu0 0
      %1459 = vmatpush2.bf16.msra.mxu0 0
      %1460 = vmatprep.subr.bf16.mxu0 0
      %1461 = vmatpush2.bf16.msra.mxu0 0
      %1462 = vmatprep.subr.bf16.mxu0 0
      %1463 = vmatpush2.bf16.msra.mxu0 0
      %1464 = vmatprep.subr.bf16.mxu0 0
      %1465 = vmatpush2.bf16.msra.mxu0 0
      %1466 = vmatprep.subr.bf16.mxu0 0
      %1467 = vmatpush2.bf16.msra.mxu0 0
      %1468 = vmatprep.subr.bf16.mxu0 0
      %1469 = vmatpush2.bf16.msra.mxu0 0
      %1470 = vmatprep.subr.bf16.mxu0 0
      %1471 = vmatpush2.bf16.msra.mxu0 0
      %1472 = vmatprep.subr.bf16.mxu0 0
      %1473 = vmatpush2.bf16.msra.mxu0 0
      %1474 = vmatprep.mubr.bf16.mxu0 0
      %1475 = vmatmul.mubr.bf16.gmra.mxu0 %v1437
      %v1476 = vpop.f32.mrf.mxu0
      %v1477 = vadd.f32 0.0, %v1476
      %v1478 = vpop.f32.mrf.mxu0
      %v1479 = vpop.f32.mrf.mxu0
      %v1480 = vadd.f32 0.0, %v1479
      %v1481 = vpop.f32.mrf.mxu0
      %1482 = vmatprep.mubr.bf16.mxu0 0
      %1483 = vmatmul.mubr.bf16.gmra.mxu0 %v1440
      %v1484 = vpop.f32.mrf.mxu0
      %v1485 = vadd.f32 0.0, %v1484
      %v1486 = vpop.f32.mrf.mxu0
      %v1487 = vpop.f32.mrf.mxu0
      %v1488 = vadd.f32 0.0, %v1487
      %v1489 = vpop.f32.mrf.mxu0
      %1490 = vdwg.mxu0
      %v1491 = vpack.c.bf16 %v1480, %v1477
      %v1492 = vpack.c.bf16 %v1488, %v1485
      %v1497 = vunpack.c.l.b16 %v959
      %v1498 = vunpack.c.l.b16 %v960
      %v1499 = vunpack.c.l.b16 %v961
      %v1500 = vunpack.c.l.b16 %v962
      %v1501 = vpack.c.b16 %v1498, %v1497
      %v1502 = vpack.c.b16 %v1500, %v1499
      %v1506 = vsel %vm1029, %v1491, 0
      %v1509 = vsel %vm1029, %v1492, 0
      %1511 = vmatprep.subr.bf16.mxu0 0
      %1512 = vmatpush1.bf16.msra.mxu0 0
      %1513 = vmatprep.subr.bf16.mxu0 0
      %1514 = vmatpush1.bf16.msra.mxu0 0
      %1515 = vmatprep.subr.bf16.mxu0 0
      %1516 = vmatpush1.bf16.msra.mxu0 0
      %1517 = vmatprep.subr.bf16.mxu0 0
      %1518 = vmatpush1.bf16.msra.mxu0 0
      %1519 = vmatprep.subr.bf16.mxu0 0
      %1520 = vmatpush1.bf16.msra.mxu0 0
      %1521 = vmatprep.subr.bf16.mxu0 0
      %1522 = vmatpush1.bf16.msra.mxu0 0
      %1523 = vmatprep.subr.bf16.mxu0 0
      %1524 = vmatpush1.bf16.msra.mxu0 %v1502
      %1525 = vmatprep.subr.bf16.mxu0 0
      %1526 = vmatpush1.bf16.msra.mxu0 %v1501
      %1527 = vmatprep.subr.bf16.mxu0 0
      %1528 = vmatpush2.bf16.msra.mxu0 0
      %1529 = vmatprep.subr.bf16.mxu0 0
      %1530 = vmatpush2.bf16.msra.mxu0 0
      %1531 = vmatprep.subr.bf16.mxu0 0
      %1532 = vmatpush2.bf16.msra.mxu0 0
      %1533 = vmatprep.subr.bf16.mxu0 0
      %1534 = vmatpush2.bf16.msra.mxu0 0
      %1535 = vmatprep.subr.bf16.mxu0 0
      %1536 = vmatpush2.bf16.msra.mxu0 0
      %1537 = vmatprep.subr.bf16.mxu0 0
      %1538 = vmatpush2.bf16.msra.mxu0 0
      %1539 = vmatprep.subr.bf16.mxu0 0
      %1540 = vmatpush2.bf16.msra.mxu0 0
      %1541 = vmatprep.subr.bf16.mxu0 0
      %1542 = vmatpush2.bf16.msra.mxu0 0
      %1543 = vmatprep.mubr.bf16.mxu0 0
      %1544 = vmatmul.mubr.bf16.gmra.mxu0 %v1506
      %v1545 = vpop.f32.mrf.mxu0
      %v1546 = vadd.f32 0.0, %v1545
      %v1547 = vpop.f32.mrf.mxu0
      %v1548 = vpop.f32.mrf.mxu0
      %v1549 = vadd.f32 0.0, %v1548
      %v1550 = vpop.f32.mrf.mxu0
      %1551 = vmatprep.mubr.bf16.mxu0 0
      %1552 = vmatmul.mubr.bf16.gmra.mxu0 %v1509
      %v1553 = vpop.f32.mrf.mxu0
      %v1554 = vadd.f32 0.0, %v1553
      %v1555 = vpop.f32.mrf.mxu0
      %v1556 = vpop.f32.mrf.mxu0
      %v1557 = vadd.f32 0.0, %v1556
      %v1558 = vpop.f32.mrf.mxu0
      %1559 = vdwg.mxu0
      %v1560 = vadd.f32 %v1422, %v1546
      %v1561 = vadd.f32 %v1423, %v1549
      %v1562 = vadd.f32 %v1424, %v1554
      %v1563 = vadd.f32 %v1425, %v1557
      %v1568 = vunpack.c.l.b16 %v999
      %v1569 = vunpack.c.l.b16 %v1000
      %v1570 = vunpack.c.l.b16 %v1001
      %v1571 = vunpack.c.l.b16 %v1002
      %v1572 = vpack.c.b16 %v1569, %v1568
      %v1573 = vpack.c.b16 %v1571, %v1570
      %v1575 = vsel %vm1029, %v1572, 0
      %v1578 = vsel %vm1029, %v1573, 0
      %1580 = vmatprep.subr.bf16.mxu0 0
      %1581 = vmatpush1.bf16.msra.mxu0 0
      %1582 = vmatprep.subr.bf16.mxu0 0
      %1583 = vmatpush1.bf16.msra.mxu0 0
      %1584 = vmatprep.subr.bf16.mxu0 0
      %1585 = vmatpush1.bf16.msra.mxu0 0
      %1586 = vmatprep.subr.bf16.mxu0 0
      %1587 = vmatpush1.bf16.msra.mxu0 0
      %1588 = vmatprep.subr.bf16.mxu0 0
      %1589 = vmatpush1.bf16.msra.mxu0 0
      %1590 = vmatprep.subr.bf16.mxu0 0
      %1591 = vmatpush1.bf16.msra.mxu0 0
      %1592 = vmatprep.subr.bf16.mxu0 0
      %1593 = vmatpush1.bf16.msra.mxu0 %v946
      %1594 = vmatprep.subr.bf16.mxu0 0
      %1595 = vmatpush1.bf16.msra.mxu0 %v945
      %1596 = vmatprep.subr.bf16.mxu0 0
      %1597 = vmatpush2.bf16.msra.mxu0 0
      %1598 = vmatprep.subr.bf16.mxu0 0
      %1599 = vmatpush2.bf16.msra.mxu0 0
      %1600 = vmatprep.subr.bf16.mxu0 0
      %1601 = vmatpush2.bf16.msra.mxu0 0
      %1602 = vmatprep.subr.bf16.mxu0 0
      %1603 = vmatpush2.bf16.msra.mxu0 0
      %1604 = vmatprep.subr.bf16.mxu0 0
      %1605 = vmatpush2.bf16.msra.mxu0 0
      %1606 = vmatprep.subr.bf16.mxu0 0
      %1607 = vmatpush2.bf16.msra.mxu0 0
      %1608 = vmatprep.subr.bf16.mxu0 0
      %1609 = vmatpush2.bf16.msra.mxu0 0
      %1610 = vmatprep.subr.bf16.mxu0 0
      %1611 = vmatpush2.bf16.msra.mxu0 0
      %1612 = vmatprep.mubr.bf16.mxu0 0
      %1613 = vmatmul.mubr.bf16.gmra.mxu0 %v1575
      %v1614 = vpop.f32.mrf.mxu0
      %v1615 = vadd.f32 0.0, %v1614
      %v1616 = vpop.f32.mrf.mxu0
      %v1617 = vpop.f32.mrf.mxu0
      %v1618 = vadd.f32 0.0, %v1617
      %v1619 = vpop.f32.mrf.mxu0
      %1620 = vmatprep.mubr.bf16.mxu0 0
      %1621 = vmatmul.mubr.bf16.gmra.mxu0 %v1578
      %v1622 = vpop.f32.mrf.mxu0
      %v1623 = vadd.f32 0.0, %v1622
      %v1624 = vpop.f32.mrf.mxu0
      %v1625 = vpop.f32.mrf.mxu0
      %v1626 = vadd.f32 0.0, %v1625
      %v1627 = vpop.f32.mrf.mxu0
      %1628 = vdwg.mxu0
      %v1629 = vpack.c.bf16 %v1618, %v1615
      %v1630 = vpack.c.bf16 %v1626, %v1623
      %v1635 = vunpack.c.l.b16 %v963
      %v1636 = vunpack.c.l.b16 %v964
      %v1637 = vunpack.c.l.b16 %v965
      %v1638 = vunpack.c.l.b16 %v966
      %v1639 = vpack.c.b16 %v1636, %v1635
      %v1640 = vpack.c.b16 %v1638, %v1637
      %v1644 = vsel %vm1029, %v1629, 0
      %v1647 = vsel %vm1029, %v1630, 0
      %1649 = vmatprep.subr.bf16.mxu0 0
      %1650 = vmatpush1.bf16.msra.mxu0 0
      %1651 = vmatprep.subr.bf16.mxu0 0
      %1652 = vmatpush1.bf16.msra.mxu0 0
      %1653 = vmatprep.subr.bf16.mxu0 0
      %1654 = vmatpush1.bf16.msra.mxu0 0
      %1655 = vmatprep.subr.bf16.mxu0 0
      %1656 = vmatpush1.bf16.msra.mxu0 0
      %1657 = vmatprep.subr.bf16.mxu0 0
      %1658 = vmatpush1.bf16.msra.mxu0 0
      %1659 = vmatprep.subr.bf16.mxu0 0
      %1660 = vmatpush1.bf16.msra.mxu0 0
      %1661 = vmatprep.subr.bf16.mxu0 0
      %1662 = vmatpush1.bf16.msra.mxu0 %v1640
      %1663 = vmatprep.subr.bf16.mxu0 0
      %1664 = vmatpush1.bf16.msra.mxu0 %v1639
      %1665 = vmatprep.subr.bf16.mxu0 0
      %1666 = vmatpush2.bf16.msra.mxu0 0
      %1667 = vmatprep.subr.bf16.mxu0 0
      %1668 = vmatpush2.bf16.msra.mxu0 0
      %1669 = vmatprep.subr.bf16.mxu0 0
      %1670 = vmatpush2.bf16.msra.mxu0 0
      %1671 = vmatprep.subr.bf16.mxu0 0
      %1672 = vmatpush2.bf16.msra.mxu0 0
      %1673 = vmatprep.subr.bf16.mxu0 0
      %1674 = vmatpush2.bf16.msra.mxu0 0
      %1675 = vmatprep.subr.bf16.mxu0 0
      %1676 = vmatpush2.bf16.msra.mxu0 0
      %1677 = vmatprep.subr.bf16.mxu0 0
      %1678 = vmatpush2.bf16.msra.mxu0 0
      %1679 = vmatprep.subr.bf16.mxu0 0
      %1680 = vmatpush2.bf16.msra.mxu0 0
      %1681 = vmatprep.mubr.bf16.mxu0 0
      %1682 = vmatmul.mubr.bf16.gmra.mxu0 %v1644
      %v1683 = vpop.f32.mrf.mxu0
      %v1684 = vadd.f32 0.0, %v1683
      %v1685 = vpop.f32.mrf.mxu0
      %v1686 = vpop.f32.mrf.mxu0
      %v1687 = vadd.f32 0.0, %v1686
      %v1688 = vpop.f32.mrf.mxu0
      %1689 = vmatprep.mubr.bf16.mxu0 0
      %1690 = vmatmul.mubr.bf16.gmra.mxu0 %v1647
      %v1691 = vpop.f32.mrf.mxu0
      %v1692 = vadd.f32 0.0, %v1691
      %v1693 = vpop.f32.mrf.mxu0
      %v1694 = vpop.f32.mrf.mxu0
      %v1695 = vadd.f32 0.0, %v1694
      %v1696 = vpop.f32.mrf.mxu0
      %1697 = vdwg.mxu0
      %v1698 = vadd.f32 %v1560, %v1684
      %v1699 = vadd.f32 %v1561, %v1687
      %v1700 = vadd.f32 %v1562, %v1692
      %v1701 = vadd.f32 %v1563, %v1695
      %v1706 = vunpack.c.l.b16 %v1003
      %v1707 = vunpack.c.l.b16 %v1004
      %v1708 = vunpack.c.l.b16 %v1005
      %v1709 = vunpack.c.l.b16 %v1006
      %v1710 = vpack.c.b16 %v1707, %v1706
      %v1711 = vpack.c.b16 %v1709, %v1708
      %v1713 = vsel %vm1029, %v1710, 0
      %v1716 = vsel %vm1029, %v1711, 0
      %1718 = vmatprep.subr.bf16.mxu0 0
      %1719 = vmatpush1.bf16.msra.mxu0 0
      %1720 = vmatprep.subr.bf16.mxu0 0
      %1721 = vmatpush1.bf16.msra.mxu0 0
      %1722 = vmatprep.subr.bf16.mxu0 0
      %1723 = vmatpush1.bf16.msra.mxu0 0
      %1724 = vmatprep.subr.bf16.mxu0 0
      %1725 = vmatpush1.bf16.msra.mxu0 0
      %1726 = vmatprep.subr.bf16.mxu0 0
      %1727 = vmatpush1.bf16.msra.mxu0 0
      %1728 = vmatprep.subr.bf16.mxu0 0
      %1729 = vmatpush1.bf16.msra.mxu0 0
      %1730 = vmatprep.subr.bf16.mxu0 0
      %1731 = vmatpush1.bf16.msra.mxu0 %v946
      %1732 = vmatprep.subr.bf16.mxu0 0
      %1733 = vmatpush1.bf16.msra.mxu0 %v945
      %1734 = vmatprep.subr.bf16.mxu0 0
      %1735 = vmatpush2.bf16.msra.mxu0 0
      %1736 = vmatprep.subr.bf16.mxu0 0
      %1737 = vmatpush2.bf16.msra.mxu0 0
      %1738 = vmatprep.subr.bf16.mxu0 0
      %1739 = vmatpush2.bf16.msra.mxu0 0
      %1740 = vmatprep.subr.bf16.mxu0 0
      %1741 = vmatpush2.bf16.msra.mxu0 0
      %1742 = vmatprep.subr.bf16.mxu0 0
      %1743 = vmatpush2.bf16.msra.mxu0 0
      %1744 = vmatprep.subr.bf16.mxu0 0
      %1745 = vmatpush2.bf16.msra.mxu0 0
      %1746 = vmatprep.subr.bf16.mxu0 0
      %1747 = vmatpush2.bf16.msra.mxu0 0
      %1748 = vmatprep.subr.bf16.mxu0 0
      %1749 = vmatpush2.bf16.msra.mxu0 0
      %1750 = vmatprep.mubr.bf16.mxu0 0
      %1751 = vmatmul.mubr.bf16.gmra.mxu0 %v1713
      %v1752 = vpop.f32.mrf.mxu0
      %v1753 = vadd.f32 0.0, %v1752
      %v1754 = vpop.f32.mrf.mxu0
      %v1755 = vpop.f32.mrf.mxu0
      %v1756 = vadd.f32 0.0, %v1755
      %v1757 = vpop.f32.mrf.mxu0
      %1758 = vmatprep.mubr.bf16.mxu0 0
      %1759 = vmatmul.mubr.bf16.gmra.mxu0 %v1716
      %v1760 = vpop.f32.mrf.mxu0
      %v1761 = vadd.f32 0.0, %v1760
      %v1762 = vpop.f32.mrf.mxu0
      %v1763 = vpop.f32.mrf.mxu0
      %v1764 = vadd.f32 0.0, %v1763
      %v1765 = vpop.f32.mrf.mxu0
      %1766 = vdwg.mxu0
      %v1767 = vpack.c.bf16 %v1756, %v1753
      %v1768 = vpack.c.bf16 %v1764, %v1761
      %v1773 = vunpack.c.l.b16 %v967
      %v1774 = vunpack.c.l.b16 %v968
      %v1775 = vunpack.c.l.b16 %v969
      %v1776 = vunpack.c.l.b16 %v970
      %v1777 = vpack.c.b16 %v1774, %v1773
      %v1778 = vpack.c.b16 %v1776, %v1775
      %v1782 = vsel %vm1029, %v1767, 0
      %v1785 = vsel %vm1029, %v1768, 0
      %1787 = vmatprep.subr.bf16.mxu0 0
      %1788 = vmatpush1.bf16.msra.mxu0 0
      %1789 = vmatprep.subr.bf16.mxu0 0
      %1790 = vmatpush1.bf16.msra.mxu0 0
      %1791 = vmatprep.subr.bf16.mxu0 0
      %1792 = vmatpush1.bf16.msra.mxu0 0
      %1793 = vmatprep.subr.bf16.mxu0 0
      %1794 = vmatpush1.bf16.msra.mxu0 0
      %1795 = vmatprep.subr.bf16.mxu0 0
      %1796 = vmatpush1.bf16.msra.mxu0 0
      %1797 = vmatprep.subr.bf16.mxu0 0
      %1798 = vmatpush1.bf16.msra.mxu0 0
      %1799 = vmatprep.subr.bf16.mxu0 0
      %1800 = vmatpush1.bf16.msra.mxu0 %v1778
      %1801 = vmatprep.subr.bf16.mxu0 0
      %1802 = vmatpush1.bf16.msra.mxu0 %v1777
      %1803 = vmatprep.subr.bf16.mxu0 0
      %1804 = vmatpush2.bf16.msra.mxu0 0
      %1805 = vmatprep.subr.bf16.mxu0 0
      %1806 = vmatpush2.bf16.msra.mxu0 0
      %1807 = vmatprep.subr.bf16.mxu0 0
      %1808 = vmatpush2.bf16.msra.mxu0 0
      %1809 = vmatprep.subr.bf16.mxu0 0
      %1810 = vmatpush2.bf16.msra.mxu0 0
      %1811 = vmatprep.subr.bf16.mxu0 0
      %1812 = vmatpush2.bf16.msra.mxu0 0
      %1813 = vmatprep.subr.bf16.mxu0 0
      %1814 = vmatpush2.bf16.msra.mxu0 0
      %1815 = vmatprep.subr.bf16.mxu0 0
      %1816 = vmatpush2.bf16.msra.mxu0 0
      %1817 = vmatprep.subr.bf16.mxu0 0
      %1818 = vmatpush2.bf16.msra.mxu0 0
      %1819 = vmatprep.mubr.bf16.mxu0 0
      %1820 = vmatmul.mubr.bf16.gmra.mxu0 %v1782
      %v1821 = vpop.f32.mrf.mxu0
      %v1822 = vadd.f32 0.0, %v1821
      %v1823 = vpop.f32.mrf.mxu0
      %v1824 = vpop.f32.mrf.mxu0
      %v1825 = vadd.f32 0.0, %v1824
      %v1826 = vpop.f32.mrf.mxu0
      %1827 = vmatprep.mubr.bf16.mxu0 0
      %1828 = vmatmul.mubr.bf16.gmra.mxu0 %v1785
      %v1829 = vpop.f32.mrf.mxu0
      %v1830 = vadd.f32 0.0, %v1829
      %v1831 = vpop.f32.mrf.mxu0
      %v1832 = vpop.f32.mrf.mxu0
      %v1833 = vadd.f32 0.0, %v1832
      %v1834 = vpop.f32.mrf.mxu0
      %1835 = vdwg.mxu0
      %v1836 = vadd.f32 %v1698, %v1822
      %v1837 = vadd.f32 %v1699, %v1825
      %v1838 = vadd.f32 %v1700, %v1830
      %v1839 = vadd.f32 %v1701, %v1833
      %v1844 = vunpack.c.l.b16 %v1007
      %v1845 = vunpack.c.l.b16 %v1008
      %v1846 = vunpack.c.l.b16 %v1009
      %v1847 = vunpack.c.l.b16 %v1010
      %v1848 = vpack.c.b16 %v1845, %v1844
      %v1849 = vpack.c.b16 %v1847, %v1846
      %v1851 = vsel %vm1029, %v1848, 0
      %v1854 = vsel %vm1029, %v1849, 0
      %1856 = vmatprep.subr.bf16.mxu0 0
      %1857 = vmatpush1.bf16.msra.mxu0 0
      %1858 = vmatprep.subr.bf16.mxu0 0
      %1859 = vmatpush1.bf16.msra.mxu0 0
      %1860 = vmatprep.subr.bf16.mxu0 0
      %1861 = vmatpush1.bf16.msra.mxu0 0
      %1862 = vmatprep.subr.bf16.mxu0 0
      %1863 = vmatpush1.bf16.msra.mxu0 0
      %1864 = vmatprep.subr.bf16.mxu0 0
      %1865 = vmatpush1.bf16.msra.mxu0 0
      %1866 = vmatprep.subr.bf16.mxu0 0
      %1867 = vmatpush1.bf16.msra.mxu0 0
      %1868 = vmatprep.subr.bf16.mxu0 0
      %1869 = vmatpush1.bf16.msra.mxu0 %v946
      %1870 = vmatprep.subr.bf16.mxu0 0
      %1871 = vmatpush1.bf16.msra.mxu0 %v945
      %1872 = vmatprep.subr.bf16.mxu0 0
      %1873 = vmatpush2.bf16.msra.mxu0 0
      %1874 = vmatprep.subr.bf16.mxu0 0
      %1875 = vmatpush2.bf16.msra.mxu0 0
      %1876 = vmatprep.subr.bf16.mxu0 0
      %1877 = vmatpush2.bf16.msra.mxu0 0
      %1878 = vmatprep.subr.bf16.mxu0 0
      %1879 = vmatpush2.bf16.msra.mxu0 0
      %1880 = vmatprep.subr.bf16.mxu0 0
      %1881 = vmatpush2.bf16.msra.mxu0 0
      %1882 = vmatprep.subr.bf16.mxu0 0
      %1883 = vmatpush2.bf16.msra.mxu0 0
      %1884 = vmatprep.subr.bf16.mxu0 0
      %1885 = vmatpush2.bf16.msra.mxu0 0
      %1886 = vmatprep.subr.bf16.mxu0 0
      %1887 = vmatpush2.bf16.msra.mxu0 0
      %1888 = vmatprep.mubr.bf16.mxu0 0
      %1889 = vmatmul.mubr.bf16.gmra.mxu0 %v1851
      %v1890 = vpop.f32.mrf.mxu0
      %v1891 = vadd.f32 0.0, %v1890
      %v1892 = vpop.f32.mrf.mxu0
      %v1893 = vpop.f32.mrf.mxu0
      %v1894 = vadd.f32 0.0, %v1893
      %v1895 = vpop.f32.mrf.mxu0
      %1896 = vmatprep.mubr.bf16.mxu0 0
      %1897 = vmatmul.mubr.bf16.gmra.mxu0 %v1854
      %v1898 = vpop.f32.mrf.mxu0
      %v1899 = vadd.f32 0.0, %v1898
      %v1900 = vpop.f32.mrf.mxu0
      %v1901 = vpop.f32.mrf.mxu0
      %v1902 = vadd.f32 0.0, %v1901
      %v1903 = vpop.f32.mrf.mxu0
      %1904 = vdwg.mxu0
      %v1905 = vpack.c.bf16 %v1894, %v1891
      %v1906 = vpack.c.bf16 %v1902, %v1899
      %v1911 = vunpack.c.l.b16 %v971
      %v1912 = vunpack.c.l.b16 %v972
      %v1913 = vunpack.c.l.b16 %v973
      %v1914 = vunpack.c.l.b16 %v974
      %v1915 = vpack.c.b16 %v1912, %v1911
      %v1916 = vpack.c.b16 %v1914, %v1913
      %v1920 = vsel %vm1029, %v1905, 0
      %v1923 = vsel %vm1029, %v1906, 0
      %1925 = vmatprep.subr.bf16.mxu0 0
      %1926 = vmatpush1.bf16.msra.mxu0 0
      %1927 = vmatprep.subr.bf16.mxu0 0
      %1928 = vmatpush1.bf16.msra.mxu0 0
      %1929 = vmatprep.subr.bf16.mxu0 0
      %1930 = vmatpush1.bf16.msra.mxu0 0
      %1931 = vmatprep.subr.bf16.mxu0 0
      %1932 = vmatpush1.bf16.msra.mxu0 0
      %1933 = vmatprep.subr.bf16.mxu0 0
      %1934 = vmatpush1.bf16.msra.mxu0 0
      %1935 = vmatprep.subr.bf16.mxu0 0
      %1936 = vmatpush1.bf16.msra.mxu0 0
      %1937 = vmatprep.subr.bf16.mxu0 0
      %1938 = vmatpush1.bf16.msra.mxu0 %v1916
      %1939 = vmatprep.subr.bf16.mxu0 0
      %1940 = vmatpush1.bf16.msra.mxu0 %v1915
      %1941 = vmatprep.subr.bf16.mxu0 0
      %1942 = vmatpush2.bf16.msra.mxu0 0
      %1943 = vmatprep.subr.bf16.mxu0 0
      %1944 = vmatpush2.bf16.msra.mxu0 0
      %1945 = vmatprep.subr.bf16.mxu0 0
      %1946 = vmatpush2.bf16.msra.mxu0 0
      %1947 = vmatprep.subr.bf16.mxu0 0
      %1948 = vmatpush2.bf16.msra.mxu0 0
      %1949 = vmatprep.subr.bf16.mxu0 0
      %1950 = vmatpush2.bf16.msra.mxu0 0
      %1951 = vmatprep.subr.bf16.mxu0 0
      %1952 = vmatpush2.bf16.msra.mxu0 0
      %1953 = vmatprep.subr.bf16.mxu0 0
      %1954 = vmatpush2.bf16.msra.mxu0 0
      %1955 = vmatprep.subr.bf16.mxu0 0
      %1956 = vmatpush2.bf16.msra.mxu0 0
      %1957 = vmatprep.mubr.bf16.mxu0 0
      %1958 = vmatmul.mubr.bf16.gmra.mxu0 %v1920
      %v1959 = vpop.f32.mrf.mxu0
      %v1960 = vadd.f32 0.0, %v1959
      %v1961 = vpop.f32.mrf.mxu0
      %v1962 = vpop.f32.mrf.mxu0
      %v1963 = vadd.f32 0.0, %v1962
      %v1964 = vpop.f32.mrf.mxu0
      %1965 = vmatprep.mubr.bf16.mxu0 0
      %1966 = vmatmul.mubr.bf16.gmra.mxu0 %v1923
      %v1967 = vpop.f32.mrf.mxu0
      %v1968 = vadd.f32 0.0, %v1967
      %v1969 = vpop.f32.mrf.mxu0
      %v1970 = vpop.f32.mrf.mxu0
      %v1971 = vadd.f32 0.0, %v1970
      %v1972 = vpop.f32.mrf.mxu0
      %1973 = vdwg.mxu0
      %v1974 = vadd.f32 %v1836, %v1960
      %v1975 = vadd.f32 %v1837, %v1963
      %v1976 = vadd.f32 %v1838, %v1968
      %v1977 = vadd.f32 %v1839, %v1971
      %v1982 = vunpack.c.l.b16 %v1011
      %v1983 = vunpack.c.l.b16 %v1012
      %v1984 = vunpack.c.l.b16 %v1013
      %v1985 = vunpack.c.l.b16 %v1014
      %v1986 = vpack.c.b16 %v1983, %v1982
      %v1987 = vpack.c.b16 %v1985, %v1984
      %v1989 = vsel %vm1029, %v1986, 0
      %v1992 = vsel %vm1029, %v1987, 0
      %1994 = vmatprep.subr.bf16.mxu0 0
      %1995 = vmatpush1.bf16.msra.mxu0 0
      %1996 = vmatprep.subr.bf16.mxu0 0
      %1997 = vmatpush1.bf16.msra.mxu0 0
      %1998 = vmatprep.subr.bf16.mxu0 0
      %1999 = vmatpush1.bf16.msra.mxu0 0
      %2000 = vmatprep.subr.bf16.mxu0 0
      %2001 = vmatpush1.bf16.msra.mxu0 0
      %2002 = vmatprep.subr.bf16.mxu0 0
      %2003 = vmatpush1.bf16.msra.mxu0 0
      %2004 = vmatprep.subr.bf16.mxu0 0
      %2005 = vmatpush1.bf16.msra.mxu0 0
      %2006 = vmatprep.subr.bf16.mxu0 0
      %2007 = vmatpush1.bf16.msra.mxu0 %v946
      %2008 = vmatprep.subr.bf16.mxu0 0
      %2009 = vmatpush1.bf16.msra.mxu0 %v945
      %2010 = vmatprep.subr.bf16.mxu0 0
      %2011 = vmatpush2.bf16.msra.mxu0 0
      %2012 = vmatprep.subr.bf16.mxu0 0
      %2013 = vmatpush2.bf16.msra.mxu0 0
      %2014 = vmatprep.subr.bf16.mxu0 0
      %2015 = vmatpush2.bf16.msra.mxu0 0
      %2016 = vmatprep.subr.bf16.mxu0 0
      %2017 = vmatpush2.bf16.msra.mxu0 0
      %2018 = vmatprep.subr.bf16.mxu0 0
      %2019 = vmatpush2.bf16.msra.mxu0 0
      %2020 = vmatprep.subr.bf16.mxu0 0
      %2021 = vmatpush2.bf16.msra.mxu0 0
      %2022 = vmatprep.subr.bf16.mxu0 0
      %2023 = vmatpush2.bf16.msra.mxu0 0
      %2024 = vmatprep.subr.bf16.mxu0 0
      %2025 = vmatpush2.bf16.msra.mxu0 0
      %2026 = vmatprep.mubr.bf16.mxu0 0
      %2027 = vmatmul.mubr.bf16.gmra.mxu0 %v1989
      %v2028 = vpop.f32.mrf.mxu0
      %v2029 = vadd.f32 0.0, %v2028
      %v2030 = vpop.f32.mrf.mxu0
      %v2031 = vpop.f32.mrf.mxu0
      %v2032 = vadd.f32 0.0, %v2031
      %v2033 = vpop.f32.mrf.mxu0
      %2034 = vmatprep.mubr.bf16.mxu0 0
      %2035 = vmatmul.mubr.bf16.gmra.mxu0 %v1992
      %v2036 = vpop.f32.mrf.mxu0
      %v2037 = vadd.f32 0.0, %v2036
      %v2038 = vpop.f32.mrf.mxu0
      %v2039 = vpop.f32.mrf.mxu0
      %v2040 = vadd.f32 0.0, %v2039
      %v2041 = vpop.f32.mrf.mxu0
      %2042 = vdwg.mxu0
      %v2043 = vpack.c.bf16 %v2032, %v2029
      %v2044 = vpack.c.bf16 %v2040, %v2037
      %v2049 = vunpack.c.l.b16 %v975
      %v2050 = vunpack.c.l.b16 %v976
      %v2051 = vunpack.c.l.b16 %v977
      %v2052 = vunpack.c.l.b16 %v978
      %v2053 = vpack.c.b16 %v2050, %v2049
      %v2054 = vpack.c.b16 %v2052, %v2051
      %v2058 = vsel %vm1029, %v2043, 0
      %v2061 = vsel %vm1029, %v2044, 0
      %2063 = vmatprep.subr.bf16.mxu0 0
      %2064 = vmatpush1.bf16.msra.mxu0 0
      %2065 = vmatprep.subr.bf16.mxu0 0
      %2066 = vmatpush1.bf16.msra.mxu0 0
      %2067 = vmatprep.subr.bf16.mxu0 0
      %2068 = vmatpush1.bf16.msra.mxu0 0
      %2069 = vmatprep.subr.bf16.mxu0 0
      %2070 = vmatpush1.bf16.msra.mxu0 0
      %2071 = vmatprep.subr.bf16.mxu0 0
      %2072 = vmatpush1.bf16.msra.mxu0 0
      %2073 = vmatprep.subr.bf16.mxu0 0
      %2074 = vmatpush1.bf16.msra.mxu0 0
      %2075 = vmatprep.subr.bf16.mxu0 0
      %2076 = vmatpush1.bf16.msra.mxu0 %v2054
      %2077 = vmatprep.subr.bf16.mxu0 0
      %2078 = vmatpush1.bf16.msra.mxu0 %v2053
      %2079 = vmatprep.subr.bf16.mxu0 0
      %2080 = vmatpush2.bf16.msra.mxu0 0
      %2081 = vmatprep.subr.bf16.mxu0 0
      %2082 = vmatpush2.bf16.msra.mxu0 0
      %2083 = vmatprep.subr.bf16.mxu0 0
      %2084 = vmatpush2.bf16.msra.mxu0 0
      %2085 = vmatprep.subr.bf16.mxu0 0
      %2086 = vmatpush2.bf16.msra.mxu0 0
      %2087 = vmatprep.subr.bf16.mxu0 0
      %2088 = vmatpush2.bf16.msra.mxu0 0
      %2089 = vmatprep.subr.bf16.mxu0 0
      %2090 = vmatpush2.bf16.msra.mxu0 0
      %2091 = vmatprep.subr.bf16.mxu0 0
      %2092 = vmatpush2.bf16.msra.mxu0 0
      %2093 = vmatprep.subr.bf16.mxu0 0
      %2094 = vmatpush2.bf16.msra.mxu0 0
      %2095 = vmatprep.mubr.bf16.mxu0 0
      %2096 = vmatmul.mubr.bf16.gmra.mxu0 %v2058
      %v2097 = vpop.f32.mrf.mxu0
      %v2098 = vadd.f32 0.0, %v2097
      %v2099 = vpop.f32.mrf.mxu0
      %v2100 = vpop.f32.mrf.mxu0
      %v2101 = vadd.f32 0.0, %v2100
      %v2102 = vpop.f32.mrf.mxu0
      %2103 = vmatprep.mubr.bf16.mxu0 0
      %2104 = vmatmul.mubr.bf16.gmra.mxu0 %v2061
      %v2105 = vpop.f32.mrf.mxu0
      %v2106 = vadd.f32 0.0, %v2105
      %v2107 = vpop.f32.mrf.mxu0
      %v2108 = vpop.f32.mrf.mxu0
      %v2109 = vadd.f32 0.0, %v2108
      %v2110 = vpop.f32.mrf.mxu0
      %2111 = vdwg.mxu0
      %v2112 = vadd.f32 %v1974, %v2098
      %v2113 = vadd.f32 %v1975, %v2101
      %v2114 = vadd.f32 %v1976, %v2106
      %v2115 = vadd.f32 %v1977, %v2109
      %v2120 = vunpack.c.l.b16 %v1015
      %v2121 = vunpack.c.l.b16 %v1016
      %v2122 = vunpack.c.l.b16 %v1017
      %v2123 = vunpack.c.l.b16 %v1018
      %v2124 = vpack.c.b16 %v2121, %v2120
      %v2125 = vpack.c.b16 %v2123, %v2122
      %v2127 = vsel %vm1029, %v2124, 0
      %v2130 = vsel %vm1029, %v2125, 0
      %2132 = vmatprep.subr.bf16.mxu0 0
      %2133 = vmatpush1.bf16.msra.mxu0 0
      %2134 = vmatprep.subr.bf16.mxu0 0
      %2135 = vmatpush1.bf16.msra.mxu0 0
      %2136 = vmatprep.subr.bf16.mxu0 0
      %2137 = vmatpush1.bf16.msra.mxu0 0
      %2138 = vmatprep.subr.bf16.mxu0 0
      %2139 = vmatpush1.bf16.msra.mxu0 0
      %2140 = vmatprep.subr.bf16.mxu0 0
      %2141 = vmatpush1.bf16.msra.mxu0 0
      %2142 = vmatprep.subr.bf16.mxu0 0
      %2143 = vmatpush1.bf16.msra.mxu0 0
      %2144 = vmatprep.subr.bf16.mxu0 0
      %2145 = vmatpush1.bf16.msra.mxu0 %v946
      %2146 = vmatprep.subr.bf16.mxu0 0
      %2147 = vmatpush1.bf16.msra.mxu0 %v945
      %2148 = vmatprep.subr.bf16.mxu0 0
      %2149 = vmatpush2.bf16.msra.mxu0 0
      %2150 = vmatprep.subr.bf16.mxu0 0
      %2151 = vmatpush2.bf16.msra.mxu0 0
      %2152 = vmatprep.subr.bf16.mxu0 0
      %2153 = vmatpush2.bf16.msra.mxu0 0
      %2154 = vmatprep.subr.bf16.mxu0 0
      %2155 = vmatpush2.bf16.msra.mxu0 0
      %2156 = vmatprep.subr.bf16.mxu0 0
      %2157 = vmatpush2.bf16.msra.mxu0 0
      %2158 = vmatprep.subr.bf16.mxu0 0
      %2159 = vmatpush2.bf16.msra.mxu0 0
      %2160 = vmatprep.subr.bf16.mxu0 0
      %2161 = vmatpush2.bf16.msra.mxu0 0
      %2162 = vmatprep.subr.bf16.mxu0 0
      %2163 = vmatpush2.bf16.msra.mxu0 0
      %2164 = vmatprep.mubr.bf16.mxu0 0
      %2165 = vmatmul.mubr.bf16.gmra.mxu0 %v2127
      %v2166 = vpop.f32.mrf.mxu0
      %v2167 = vadd.f32 0.0, %v2166
      %v2168 = vpop.f32.mrf.mxu0
      %v2169 = vpop.f32.mrf.mxu0
      %v2170 = vadd.f32 0.0, %v2169
      %v2171 = vpop.f32.mrf.mxu0
      %2172 = vmatprep.mubr.bf16.mxu0 0
      %2173 = vmatmul.mubr.bf16.gmra.mxu0 %v2130
      %v2174 = vpop.f32.mrf.mxu0
      %v2175 = vadd.f32 0.0, %v2174
      %v2176 = vpop.f32.mrf.mxu0
      %v2177 = vpop.f32.mrf.mxu0
      %v2178 = vadd.f32 0.0, %v2177
      %v2179 = vpop.f32.mrf.mxu0
      %2180 = vdwg.mxu0
      %v2181 = vpack.c.bf16 %v2170, %v2167
      %v2182 = vpack.c.bf16 %v2178, %v2175
      %v2187 = vunpack.c.l.b16 %v979
      %v2188 = vunpack.c.l.b16 %v980
      %v2189 = vunpack.c.l.b16 %v981
      %v2190 = vunpack.c.l.b16 %v982
      %v2191 = vpack.c.b16 %v2188, %v2187
      %v2192 = vpack.c.b16 %v2190, %v2189
      %v2196 = vsel %vm1029, %v2181, 0
      %v2199 = vsel %vm1029, %v2182, 0
      %2201 = vmatprep.subr.bf16.mxu0 0
      %2202 = vmatpush1.bf16.msra.mxu0 0
      %2203 = vmatprep.subr.bf16.mxu0 0
      %2204 = vmatpush1.bf16.msra.mxu0 0
      %2205 = vmatprep.subr.bf16.mxu0 0
      %2206 = vmatpush1.bf16.msra.mxu0 0
      %2207 = vmatprep.subr.bf16.mxu0 0
      %2208 = vmatpush1.bf16.msra.mxu0 0
      %2209 = vmatprep.subr.bf16.mxu0 0
      %2210 = vmatpush1.bf16.msra.mxu0 0
      %2211 = vmatprep.subr.bf16.mxu0 0
      %2212 = vmatpush1.bf16.msra.mxu0 0
      %2213 = vmatprep.subr.bf16.mxu0 0
      %2214 = vmatpush1.bf16.msra.mxu0 %v2192
      %2215 = vmatprep.subr.bf16.mxu0 0
      %2216 = vmatpush1.bf16.msra.mxu0 %v2191
      %2217 = vmatprep.subr.bf16.mxu0 0
      %2218 = vmatpush2.bf16.msra.mxu0 0
      %2219 = vmatprep.subr.bf16.mxu0 0
      %2220 = vmatpush2.bf16.msra.mxu0 0
      %2221 = vmatprep.subr.bf16.mxu0 0
      %2222 = vmatpush2.bf16.msra.mxu0 0
      %2223 = vmatprep.subr.bf16.mxu0 0
      %2224 = vmatpush2.bf16.msra.mxu0 0
      %2225 = vmatprep.subr.bf16.mxu0 0
      %2226 = vmatpush2.bf16.msra.mxu0 0
      %2227 = vmatprep.subr.bf16.mxu0 0
      %2228 = vmatpush2.bf16.msra.mxu0 0
      %2229 = vmatprep.subr.bf16.mxu0 0
      %2230 = vmatpush2.bf16.msra.mxu0 0
      %2231 = vmatprep.subr.bf16.mxu0 0
      %2232 = vmatpush2.bf16.msra.mxu0 0
      %2233 = vmatprep.mubr.bf16.mxu0 0
      %2234 = vmatmul.mubr.bf16.gmra.mxu0 %v2196
      %v2235 = vpop.f32.mrf.mxu0
      %v2236 = vadd.f32 0.0, %v2235
      %v2237 = vpop.f32.mrf.mxu0
      %v2238 = vpop.f32.mrf.mxu0
      %v2239 = vadd.f32 0.0, %v2238
      %v2240 = vpop.f32.mrf.mxu0
      %2241 = vmatprep.mubr.bf16.mxu0 0
      %2242 = vmatmul.mubr.bf16.gmra.mxu0 %v2199
      %v2243 = vpop.f32.mrf.mxu0
      %v2244 = vadd.f32 0.0, %v2243
      %v2245 = vpop.f32.mrf.mxu0
      %v2246 = vpop.f32.mrf.mxu0
      %v2247 = vadd.f32 0.0, %v2246
      %v2248 = vpop.f32.mrf.mxu0
      %2249 = vdwg.mxu0
      %v2250 = vadd.f32 %v2112, %v2236
      %v2251 = vadd.f32 %v2113, %v2239
      %v2252 = vadd.f32 %v2114, %v2244
      %v2253 = vadd.f32 %v2115, %v2247
      %v2254 = vld [vmem:[%s586] sm:$0x1]
      %v2256 = vlaneseq
      %v2257 = vshrl.u32 %v2256, 7
      %v2258 = vsub.s32 0, %v2257
      %v2259 = vrot.slane %v2254, %v2258
      %v2261 = vadd.f32 %v2250, %v2259
      %v2262 = vadd.f32 %v2251, %v2259
      %v2263 = vadd.f32 %v2252, %v2259
      %v2264 = vadd.f32 %v2253, %v2259
      %v2265 = vmax.f32 %v2261, 0.0
      %v2266 = vmax.f32 %v2262, 0.0
      %v2267 = vmax.f32 %v2263, 0.0
      %v2268 = vmax.f32 %v2264, 0.0
      %v2269 = vpack.c.bf16 %v2266, %v2265
      %v2270 = vpack.c.bf16 %v2268, %v2267
      %v2271 = vld [vmem:[%s591] sm:$0xf]
      %v2272 = vld [vmem:[%s591 + $0x4] sm:$0xf]
      %v2273 = vld [vmem:[%s591 + $0x8] sm:$0xf]
      %v2274 = vld [vmem:[%s591 + $0xc] sm:$0xf]
      %v2275 = vld [vmem:[%s594] sm:$0x1]
      %v2277 = vlaneseq
      %v2278 = vshrl.u32 %v2277, 7
      %v2279 = vsub.s32 0, %v2278
      %v2280 = vrot.slane %v2275, %v2279
      %v2286 = vunpack.c.l.b16 %v2271
      %v2287 = vunpack.c.l.b16 %v2272
      %v2288 = vunpack.c.l.b16 %v2273
      %v2289 = vunpack.c.l.b16 %v2274
      %v2290 = vpack.c.b16 %v2287, %v2286
      %v2291 = vpack.c.b16 %v2289, %v2288
      %v2295 = vsel %vm1029, %v2269, 0
      %v2298 = vsel %vm1029, %v2270, 0
      %2300 = vmatprep.subr.bf16.mxu0 0
      %2301 = vmatpush1.bf16.msra.mxu0 0
      %2302 = vmatprep.subr.bf16.mxu0 0
      %2303 = vmatpush1.bf16.msra.mxu0 0
      %2304 = vmatprep.subr.bf16.mxu0 0
      %2305 = vmatpush1.bf16.msra.mxu0 0
      %2306 = vmatprep.subr.bf16.mxu0 0
      %2307 = vmatpush1.bf16.msra.mxu0 0
      %2308 = vmatprep.subr.bf16.mxu0 0
      %2309 = vmatpush1.bf16.msra.mxu0 0
      %2310 = vmatprep.subr.bf16.mxu0 0
      %2311 = vmatpush1.bf16.msra.mxu0 0
      %2312 = vmatprep.subr.bf16.mxu0 0
      %2313 = vmatpush1.bf16.msra.mxu0 %v2291
      %2314 = vmatprep.subr.bf16.mxu0 0
      %2315 = vmatpush1.bf16.msra.mxu0 %v2290
      %2316 = vmatprep.subr.bf16.mxu0 0
      %2317 = vmatpush2.bf16.msra.mxu0 0
      %2318 = vmatprep.subr.bf16.mxu0 0
      %2319 = vmatpush2.bf16.msra.mxu0 0
      %2320 = vmatprep.subr.bf16.mxu0 0
      %2321 = vmatpush2.bf16.msra.mxu0 0
      %2322 = vmatprep.subr.bf16.mxu0 0
      %2323 = vmatpush2.bf16.msra.mxu0 0
      %2324 = vmatprep.subr.bf16.mxu0 0
      %2325 = vmatpush2.bf16.msra.mxu0 0
      %2326 = vmatprep.subr.bf16.mxu0 0
      %2327 = vmatpush2.bf16.msra.mxu0 0
      %2328 = vmatprep.subr.bf16.mxu0 0
      %2329 = vmatpush2.bf16.msra.mxu0 0
      %2330 = vmatprep.subr.bf16.mxu0 0
      %2331 = vmatpush2.bf16.msra.mxu0 0
      %2332 = vmatprep.mubr.bf16.mxu0 0
      %2333 = vmatmul.mubr.bf16.gmra.mxu0 %v2295
      %v2334 = vpop.f32.mrf.mxu0
      %v2335 = vadd.f32 %v2280, %v2334
      %v2336 = vpop.f32.mrf.mxu0
      %v2337 = vpop.f32.mrf.mxu0
      %v2338 = vadd.f32 %v2280, %v2337
      %v2339 = vpop.f32.mrf.mxu0
      %2340 = vmatprep.mubr.bf16.mxu0 0
      %2341 = vmatmul.mubr.bf16.gmra.mxu0 %v2298
      %v2342 = vpop.f32.mrf.mxu0
      %v2343 = vadd.f32 %v2280, %v2342
      %v2344 = vpop.f32.mrf.mxu0
      %v2345 = vpop.f32.mrf.mxu0
      %v2346 = vadd.f32 %v2280, %v2345
      %v2347 = vpop.f32.mrf.mxu0
      %2348 = vdwg.mxu0
      %v2349 = vadd.f32 %v2335, %v796
      %v2350 = vadd.f32 %v2338, %v797
      %v2351 = vadd.f32 %v2343, %v798
      %v2352 = vadd.f32 %v2346, %v799
      %v2353 = vmax.f32 %v2349, 0.0
      %v2354 = vmax.f32 %v2350, 0.0
      %v2355 = vmax.f32 %v2351, 0.0
      %v2356 = vmax.f32 %v2352, 0.0
      %v2357 = vmax.f32 %v2353, %v2354
      %v2358 = vrot.slane %v2357, 4
      %v2359 = vmax.f32 %v2357, %v2358
      %v2360 = vrot.slane %v2359, 2
      %v2361 = vmax.f32 %v2359, %v2360
      %v2362 = vrot.slane %v2361, 1
      %v2363 = vmax.f32 %v2361, %v2362
      %2364 = vst [vmem:[#allocation3] sm:$0x1] %v2363
      %v2365 = vmax.f32 %v2355, %v2356
      %v2366 = vrot.slane %v2365, 4
      %v2367 = vmax.f32 %v2365, %v2366
      %v2368 = vrot.slane %v2367, 2
      %v2369 = vmax.f32 %v2367, %v2368
      %v2370 = vrot.slane %v2369, 1
      %v2371 = vmax.f32 %v2369, %v2370
      %2372 = vst [vmem:[#allocation3 + $0x1] sm:$0x1] %v2371
      %v2373 = vld [vmem:[#allocation2] sm:$0x3]
      %v2374 = vpack.c.bf16 %v2373, %v2373
      %v2375 = vld [vmem:[#allocation3] sm:$0x3]
      %v2376 = vpack.c.bf16 %v2375, %v2375
      %v2377 = vld [vmem:[%s599] sm:$0xff]
      %v2378 = vld [vmem:[%s599 + $0x8] sm:$0xf]
      %v2379 = vld [vmem:[%s599 + $0xc] sm:$0xff]
      %v2380 = vld [vmem:[%s599 + $0x14] sm:$0xf]
      %v2381 = vld [vmem:[%s599 + $0x18] sm:$0xff]
      %v2382 = vld [vmem:[%s599 + $0x20] sm:$0xf]
      %v2383 = vld [vmem:[%s599 + $0x24] sm:$0xff]
      %v2384 = vld [vmem:[%s599 + $0x2c] sm:$0xf]
      %v2385 = vld [vmem:[%s599 + $0x30] sm:$0xff]
      %v2386 = vld [vmem:[%s599 + $0x38] sm:$0xf]
      %v2387 = vld [vmem:[%s599 + $0x3c] sm:$0xff]
      %v2388 = vld [vmem:[%s599 + $0x44] sm:$0xf]
      %v2389 = vld [vmem:[%s599 + $0x48] sm:$0xff]
      %v2390 = vld [vmem:[%s599 + $0x50] sm:$0xf]
      %v2391 = vld [vmem:[%s599 + $0x54] sm:$0xff]
      %v2392 = vld [vmem:[%s599 + $0x5c] sm:$0xf]
      %v2393 = vld [vmem:[%s599 + $0x60] sm:$0xff]
      %v2394 = vld [vmem:[%s599 + $0x68] sm:$0xf]
      %v2395 = vld [vmem:[%s599 + $0x6c] sm:$0xff]
      %v2396 = vld [vmem:[%s599 + $0x74] sm:$0xf]
      %v2397 = vld [vmem:[%s599 + $0x78] sm:$0xff]
      %v2398 = vld [vmem:[%s599 + $0x80] sm:$0xf]
      %v2399 = vld [vmem:[%s599 + $0x84] sm:$0xff]
      %v2400 = vld [vmem:[%s599 + $0x8c] sm:$0xf]
      %v2401 = vld [vmem:[%s599 + $0x90] sm:$0xff]
      %v2402 = vld [vmem:[%s599 + $0x98] sm:$0xf]
      %v2403 = vld [vmem:[%s599 + $0x9c] sm:$0xff]
      %v2404 = vld [vmem:[%s599 + $0xa4] sm:$0xf]
      %v2405 = vld [vmem:[%s599 + $0xa8] sm:$0xff]
      %v2406 = vld [vmem:[%s599 + $0xb0] sm:$0xf]
      %v2407 = vld [vmem:[%s599 + $0xb4] sm:$0xff]
      %v2408 = vld [vmem:[%s599 + $0xbc] sm:$0xf]
      %v2409 = vld [vmem:[%s604] sm:$0xff]
      %v2410 = vld [vmem:[%s604 + $0x8] sm:$0xf]
      %v2411 = vld [vmem:[%s604 + $0xc] sm:$0xff]
      %v2412 = vld [vmem:[%s604 + $0x14] sm:$0xf]
      %v2413 = vld [vmem:[%s604 + $0x18] sm:$0xff]
      %v2414 = vld [vmem:[%s604 + $0x20] sm:$0xf]
      %v2415 = vld [vmem:[%s604 + $0x24] sm:$0xff]
      %v2416 = vld [vmem:[%s604 + $0x2c] sm:$0xf]
      %v2417 = vld [vmem:[%s604 + $0x30] sm:$0xff]
      %v2418 = vld [vmem:[%s604 + $0x38] sm:$0xf]
      %v2419 = vld [vmem:[%s604 + $0x3c] sm:$0xff]
      %v2420 = vld [vmem:[%s604 + $0x44] sm:$0xf]
      %v2421 = vld [vmem:[%s604 + $0x48] sm:$0xff]
      %v2422 = vld [vmem:[%s604 + $0x50] sm:$0xf]
      %v2423 = vld [vmem:[%s604 + $0x54] sm:$0xff]
      %v2424 = vld [vmem:[%s604 + $0x5c] sm:$0xf]
      %v2425 = vld [vmem:[%s604 + $0x60] sm:$0xff]
      %v2426 = vld [vmem:[%s604 + $0x68] sm:$0xf]
      %v2427 = vld [vmem:[%s604 + $0x6c] sm:$0xff]
      %v2428 = vld [vmem:[%s604 + $0x74] sm:$0xf]
      %v2429 = vld [vmem:[%s604 + $0x78] sm:$0xff]
      %v2430 = vld [vmem:[%s604 + $0x80] sm:$0xf]
      %v2431 = vld [vmem:[%s604 + $0x84] sm:$0xff]
      %v2432 = vld [vmem:[%s604 + $0x8c] sm:$0xf]
      %v2433 = vld [vmem:[%s604 + $0x90] sm:$0xff]
      %v2434 = vld [vmem:[%s604 + $0x98] sm:$0xf]
      %v2435 = vld [vmem:[%s604 + $0x9c] sm:$0xff]
      %v2436 = vld [vmem:[%s604 + $0xa4] sm:$0xf]
      %v2437 = vld [vmem:[%s604 + $0xa8] sm:$0xff]
      %v2438 = vld [vmem:[%s604 + $0xb0] sm:$0xf]
      %v2439 = vld [vmem:[%s604 + $0xb4] sm:$0xff]
      %v2440 = vld [vmem:[%s604 + $0xbc] sm:$0xf]
      %v2473 = vunpack.c.l.b16 %v2409
      %v2474 = vunpack.c.h.b16 %v2409
      %v2475 = vunpack.c.l.b16 %v2410
      %v2476 = vunpack.c.l.b16 %v2411
      %v2477 = vunpack.c.h.b16 %v2411
      %v2478 = vunpack.c.l.b16 %v2412
      %v2479 = vunpack.c.l.b16 %v2413
      %v2480 = vunpack.c.h.b16 %v2413
      %v2481 = vunpack.c.l.b16 %v2414
      %v2482 = vunpack.c.l.b16 %v2415
      %v2483 = vunpack.c.h.b16 %v2415
      %v2484 = vunpack.c.l.b16 %v2416
      %v2485 = vunpack.c.l.b16 %v2417
      %v2486 = vunpack.c.h.b16 %v2417
      %v2487 = vunpack.c.l.b16 %v2418
      %v2488 = vunpack.c.l.b16 %v2419
      %v2489 = vunpack.c.h.b16 %v2419
      %v2490 = vunpack.c.l.b16 %v2420
      %v2491 = vunpack.c.l.b16 %v2421
      %v2492 = vunpack.c.h.b16 %v2421
      %v2493 = vunpack.c.l.b16 %v2422
      %v2494 = vunpack.c.l.b16 %v2423
      %v2495 = vunpack.c.h.b16 %v2423
      %v2496 = vunpack.c.l.b16 %v2424
      %v2497 = vunpack.c.l.b16 %v2425
      %v2498 = vunpack.c.h.b16 %v2425
      %v2499 = vunpack.c.l.b16 %v2426
      %v2500 = vunpack.c.l.b16 %v2427
      %v2501 = vunpack.c.h.b16 %v2427
      %v2502 = vunpack.c.l.b16 %v2428
      %v2503 = vunpack.c.l.b16 %v2429
      %v2504 = vunpack.c.h.b16 %v2429
      %v2505 = vunpack.c.l.b16 %v2430
      %v2506 = vunpack.c.l.b16 %v2431
      %v2507 = vunpack.c.h.b16 %v2431
      %v2508 = vunpack.c.l.b16 %v2432
      %v2509 = vunpack.c.l.b16 %v2433
      %v2510 = vunpack.c.h.b16 %v2433
      %v2511 = vunpack.c.l.b16 %v2434
      %v2512 = vunpack.c.l.b16 %v2435
      %v2513 = vunpack.c.h.b16 %v2435
      %v2514 = vunpack.c.l.b16 %v2436
      %v2515 = vunpack.c.l.b16 %v2437
      %v2516 = vunpack.c.h.b16 %v2437
      %v2517 = vunpack.c.l.b16 %v2438
      %v2518 = vunpack.c.l.b16 %v2439
      %v2519 = vunpack.c.h.b16 %v2439
      %v2520 = vunpack.c.l.b16 %v2440
      %v2521 = vpack.c.b16 %v2476, %v2473
      %v2522 = vpack.c.b16 %v2477, %v2474
      %v2523 = vpack.c.b16 %v2478, %v2475
      %v2524 = vpack.c.b16 %v2482, %v2479
      %v2525 = vpack.c.b16 %v2483, %v2480
      %v2526 = vpack.c.b16 %v2484, %v2481
      %v2527 = vpack.c.b16 %v2488, %v2485
      %v2528 = vpack.c.b16 %v2489, %v2486
      %v2529 = vpack.c.b16 %v2490, %v2487
      %v2530 = vpack.c.b16 %v2494, %v2491
      %v2531 = vpack.c.b16 %v2495, %v2492
      %v2532 = vpack.c.b16 %v2496, %v2493
      %v2533 = vpack.c.b16 %v2500, %v2497
      %v2534 = vpack.c.b16 %v2501, %v2498
      %v2535 = vpack.c.b16 %v2502, %v2499
      %v2536 = vpack.c.b16 %v2506, %v2503
      %v2537 = vpack.c.b16 %v2507, %v2504
      %v2538 = vpack.c.b16 %v2508, %v2505
      %v2539 = vpack.c.b16 %v2512, %v2509
      %v2540 = vpack.c.b16 %v2513, %v2510
      %v2541 = vpack.c.b16 %v2514, %v2511
      %v2542 = vpack.c.b16 %v2518, %v2515
      %v2543 = vpack.c.b16 %v2519, %v2516
      %v2544 = vpack.c.b16 %v2520, %v2517
      %2569 = vmatprep.subr.bf16.mxu0 %v2543
      %2570 = vmatpush1.bf16.msra.mxu0 %v2542
      %2571 = vmatprep.subr.bf16.mxu0 %v2540
      %2572 = vmatpush1.bf16.msra.mxu0 %v2539
      %2573 = vmatprep.subr.bf16.mxu0 %v2537
      %2574 = vmatpush1.bf16.msra.mxu0 %v2536
      %2575 = vmatprep.subr.bf16.mxu0 %v2534
      %2576 = vmatpush1.bf16.msra.mxu0 %v2533
      %2577 = vmatprep.subr.bf16.mxu0 %v2531
      %2578 = vmatpush1.bf16.msra.mxu0 %v2530
      %2579 = vmatprep.subr.bf16.mxu0 %v2528
      %2580 = vmatpush1.bf16.msra.mxu0 %v2527
      %2581 = vmatprep.subr.bf16.mxu0 %v2525
      %2582 = vmatpush1.bf16.msra.mxu0 %v2524
      %2583 = vmatprep.subr.bf16.mxu0 %v2522
      %2584 = vmatpush1.bf16.msra.mxu0 %v2521
      %2585 = vmatprep.subr.bf16.mxu0 0
      %2586 = vmatpush2.bf16.msra.mxu0 0
      %2587 = vmatprep.subr.bf16.mxu0 0
      %2588 = vmatpush2.bf16.msra.mxu0 0
      %2589 = vmatprep.subr.bf16.mxu0 0
      %2590 = vmatpush2.bf16.msra.mxu0 0
      %2591 = vmatprep.subr.bf16.mxu0 0
      %2592 = vmatpush2.bf16.msra.mxu0 0
      %2593 = vmatprep.subr.bf16.mxu0 0
      %2594 = vmatpush2.bf16.msra.mxu0 0
      %2595 = vmatprep.subr.bf16.mxu0 0
      %2596 = vmatpush2.bf16.msra.mxu0 0
      %2597 = vmatprep.subr.bf16.mxu0 0
      %2598 = vmatpush2.bf16.msra.mxu0 0
      %2599 = vmatprep.subr.bf16.mxu0 0
      %2600 = vmatpush2.bf16.msra.mxu0 0
      %2601 = vmatprep.mubr.bf16.mxu0 0
      %2602 = vmatmul.mubr.bf16.gmra.mxu0 %v2376
      %v2603 = vpop.f32.mrf.mxu0
      %v2604 = vadd.f32 0.0, %v2603
      %v2605 = vpop.f32.mrf.mxu0
      %v2606 = vadd.f32 0.0, %v2605
      %v2607 = vpop.f32.mrf.mxu0
      %v2608 = vpop.f32.mrf.mxu0
      %2609 = vdwg.mxu0
      %2610 = vmatprep.subr.bf16.mxu0 0
      %2611 = vmatpush1.bf16.msra.mxu0 %v2544
      %2612 = vmatprep.subr.bf16.mxu0 0
      %2613 = vmatpush1.bf16.msra.mxu0 %v2541
      %2614 = vmatprep.subr.bf16.mxu0 0
      %2615 = vmatpush1.bf16.msra.mxu0 %v2538
      %2616 = vmatprep.subr.bf16.mxu0 0
      %2617 = vmatpush1.bf16.msra.mxu0 %v2535
      %2618 = vmatprep.subr.bf16.mxu0 0
      %2619 = vmatpush1.bf16.msra.mxu0 %v2532
      %2620 = vmatprep.subr.bf16.mxu0 0
      %2621 = vmatpush1.bf16.msra.mxu0 %v2529
      %2622 = vmatprep.subr.bf16.mxu0 0
      %2623 = vmatpush1.bf16.msra.mxu0 %v2526
      %2624 = vmatprep.subr.bf16.mxu0 0
      %2625 = vmatpush1.bf16.msra.mxu0 %v2523
      %2626 = vmatprep.subr.bf16.mxu0 0
      %2627 = vmatpush2.bf16.msra.mxu0 0
      %2628 = vmatprep.subr.bf16.mxu0 0
      %2629 = vmatpush2.bf16.msra.mxu0 0
      %2630 = vmatprep.subr.bf16.mxu0 0
      %2631 = vmatpush2.bf16.msra.mxu0 0
      %2632 = vmatprep.subr.bf16.mxu0 0
      %2633 = vmatpush2.bf16.msra.mxu0 0
      %2634 = vmatprep.subr.bf16.mxu0 0
      %2635 = vmatpush2.bf16.msra.mxu0 0
      %2636 = vmatprep.subr.bf16.mxu0 0
      %2637 = vmatpush2.bf16.msra.mxu0 0
      %2638 = vmatprep.subr.bf16.mxu0 0
      %2639 = vmatpush2.bf16.msra.mxu0 0
      %2640 = vmatprep.subr.bf16.mxu0 0
      %2641 = vmatpush2.bf16.msra.mxu0 0
      %2642 = vmatprep.mubr.bf16.mxu0 0
      %2643 = vmatmul.mubr.bf16.gmra.mxu0 %v2376
      %v2644 = vpop.f32.mrf.mxu0
      %v2645 = vadd.f32 0.0, %v2644
      %v2646 = vpop.f32.mrf.mxu0
      %v2647 = vpop.f32.mrf.mxu0
      %v2648 = vpop.f32.mrf.mxu0
      %2649 = vdwg.mxu0
      %v2682 = vunpack.c.l.b16 %v2377
      %v2683 = vunpack.c.h.b16 %v2377
      %v2684 = vunpack.c.l.b16 %v2378
      %v2685 = vunpack.c.l.b16 %v2379
      %v2686 = vunpack.c.h.b16 %v2379
      %v2687 = vunpack.c.l.b16 %v2380
      %v2688 = vunpack.c.l.b16 %v2381
      %v2689 = vunpack.c.h.b16 %v2381
      %v2690 = vunpack.c.l.b16 %v2382
      %v2691 = vunpack.c.l.b16 %v2383
      %v2692 = vunpack.c.h.b16 %v2383
      %v2693 = vunpack.c.l.b16 %v2384
      %v2694 = vunpack.c.l.b16 %v2385
      %v2695 = vunpack.c.h.b16 %v2385
      %v2696 = vunpack.c.l.b16 %v2386
      %v2697 = vunpack.c.l.b16 %v2387
      %v2698 = vunpack.c.h.b16 %v2387
      %v2699 = vunpack.c.l.b16 %v2388
      %v2700 = vunpack.c.l.b16 %v2389
      %v2701 = vunpack.c.h.b16 %v2389
      %v2702 = vunpack.c.l.b16 %v2390
      %v2703 = vunpack.c.l.b16 %v2391
      %v2704 = vunpack.c.h.b16 %v2391
      %v2705 = vunpack.c.l.b16 %v2392
      %v2706 = vunpack.c.l.b16 %v2393
      %v2707 = vunpack.c.h.b16 %v2393
      %v2708 = vunpack.c.l.b16 %v2394
      %v2709 = vunpack.c.l.b16 %v2395
      %v2710 = vunpack.c.h.b16 %v2395
      %v2711 = vunpack.c.l.b16 %v2396
      %v2712 = vunpack.c.l.b16 %v2397
      %v2713 = vunpack.c.h.b16 %v2397
      %v2714 = vunpack.c.l.b16 %v2398
      %v2715 = vunpack.c.l.b16 %v2399
      %v2716 = vunpack.c.h.b16 %v2399
      %v2717 = vunpack.c.l.b16 %v2400
      %v2718 = vunpack.c.l.b16 %v2401
      %v2719 = vunpack.c.h.b16 %v2401
      %v2720 = vunpack.c.l.b16 %v2402
      %v2721 = vunpack.c.l.b16 %v2403
      %v2722 = vunpack.c.h.b16 %v2403
      %v2723 = vunpack.c.l.b16 %v2404
      %v2724 = vunpack.c.l.b16 %v2405
      %v2725 = vunpack.c.h.b16 %v2405
      %v2726 = vunpack.c.l.b16 %v2406
      %v2727 = vunpack.c.l.b16 %v2407
      %v2728 = vunpack.c.h.b16 %v2407
      %v2729 = vunpack.c.l.b16 %v2408
      %v2730 = vpack.c.b16 %v2685, %v2682
      %v2731 = vpack.c.b16 %v2686, %v2683
      %v2732 = vpack.c.b16 %v2687, %v2684
      %v2733 = vpack.c.b16 %v2691, %v2688
      %v2734 = vpack.c.b16 %v2692, %v2689
      %v2735 = vpack.c.b16 %v2693, %v2690
      %v2736 = vpack.c.b16 %v2697, %v2694
      %v2737 = vpack.c.b16 %v2698, %v2695
      %v2738 = vpack.c.b16 %v2699, %v2696
      %v2739 = vpack.c.b16 %v2703, %v2700
      %v2740 = vpack.c.b16 %v2704, %v2701
      %v2741 = vpack.c.b16 %v2705, %v2702
      %v2742 = vpack.c.b16 %v2709, %v2706
      %v2743 = vpack.c.b16 %v2710, %v2707
      %v2744 = vpack.c.b16 %v2711, %v2708
      %v2745 = vpack.c.b16 %v2715, %v2712
      %v2746 = vpack.c.b16 %v2716, %v2713
      %v2747 = vpack.c.b16 %v2717, %v2714
      %v2748 = vpack.c.b16 %v2721, %v2718
      %v2749 = vpack.c.b16 %v2722, %v2719
      %v2750 = vpack.c.b16 %v2723, %v2720
      %v2751 = vpack.c.b16 %v2727, %v2724
      %v2752 = vpack.c.b16 %v2728, %v2725
      %v2753 = vpack.c.b16 %v2729, %v2726
      %2778 = vmatprep.subr.bf16.mxu0 %v2752
      %2779 = vmatpush1.bf16.msra.mxu0 %v2751
      %2780 = vmatprep.subr.bf16.mxu0 %v2749
      %2781 = vmatpush1.bf16.msra.mxu0 %v2748
      %2782 = vmatprep.subr.bf16.mxu0 %v2746
      %2783 = vmatpush1.bf16.msra.mxu0 %v2745
      %2784 = vmatprep.subr.bf16.mxu0 %v2743
      %2785 = vmatpush1.bf16.msra.mxu0 %v2742
      %2786 = vmatprep.subr.bf16.mxu0 %v2740
      %2787 = vmatpush1.bf16.msra.mxu0 %v2739
      %2788 = vmatprep.subr.bf16.mxu0 %v2737
      %2789 = vmatpush1.bf16.msra.mxu0 %v2736
      %2790 = vmatprep.subr.bf16.mxu0 %v2734
      %2791 = vmatpush1.bf16.msra.mxu0 %v2733
      %2792 = vmatprep.subr.bf16.mxu0 %v2731
      %2793 = vmatpush1.bf16.msra.mxu0 %v2730
      %2794 = vmatprep.subr.bf16.mxu0 0
      %2795 = vmatpush2.bf16.msra.mxu0 0
      %2796 = vmatprep.subr.bf16.mxu0 0
      %2797 = vmatpush2.bf16.msra.mxu0 0
      %2798 = vmatprep.subr.bf16.mxu0 0
      %2799 = vmatpush2.bf16.msra.mxu0 0
      %2800 = vmatprep.subr.bf16.mxu0 0
      %2801 = vmatpush2.bf16.msra.mxu0 0
      %2802 = vmatprep.subr.bf16.mxu0 0
      %2803 = vmatpush2.bf16.msra.mxu0 0
      %2804 = vmatprep.subr.bf16.mxu0 0
      %2805 = vmatpush2.bf16.msra.mxu0 0
      %2806 = vmatprep.subr.bf16.mxu0 0
      %2807 = vmatpush2.bf16.msra.mxu0 0
      %2808 = vmatprep.subr.bf16.mxu0 0
      %2809 = vmatpush2.bf16.msra.mxu0 0
      %2810 = vmatprep.mubr.bf16.mxu0 0
      %2811 = vmatmul.mubr.bf16.gmra.mxu0 %v2374
      %v2812 = vpop.f32.mrf.mxu0
      %v2813 = vadd.f32 %v2604, %v2812
      %v2814 = vpop.f32.mrf.mxu0
      %v2815 = vadd.f32 %v2606, %v2814
      %v2816 = vpop.f32.mrf.mxu0
      %v2817 = vpop.f32.mrf.mxu0
      %2818 = vdwg.mxu0
      %2819 = vmatprep.subr.bf16.mxu0 0
      %2820 = vmatpush1.bf16.msra.mxu0 %v2753
      %2821 = vmatprep.subr.bf16.mxu0 0
      %2822 = vmatpush1.bf16.msra.mxu0 %v2750
      %2823 = vmatprep.subr.bf16.mxu0 0
      %2824 = vmatpush1.bf16.msra.mxu0 %v2747
      %2825 = vmatprep.subr.bf16.mxu0 0
      %2826 = vmatpush1.bf16.msra.mxu0 %v2744
      %2827 = vmatprep.subr.bf16.mxu0 0
      %2828 = vmatpush1.bf16.msra.mxu0 %v2741
      %2829 = vmatprep.subr.bf16.mxu0 0
      %2830 = vmatpush1.bf16.msra.mxu0 %v2738
      %2831 = vmatprep.subr.bf16.mxu0 0
      %2832 = vmatpush1.bf16.msra.mxu0 %v2735
      %2833 = vmatprep.subr.bf16.mxu0 0
      %2834 = vmatpush1.bf16.msra.mxu0 %v2732
      %2835 = vmatprep.subr.bf16.mxu0 0
      %2836 = vmatpush2.bf16.msra.mxu0 0
      %2837 = vmatprep.subr.bf16.mxu0 0
      %2838 = vmatpush2.bf16.msra.mxu0 0
      %2839 = vmatprep.subr.bf16.mxu0 0
      %2840 = vmatpush2.bf16.msra.mxu0 0
      %2841 = vmatprep.subr.bf16.mxu0 0
      %2842 = vmatpush2.bf16.msra.mxu0 0
      %2843 = vmatprep.subr.bf16.mxu0 0
      %2844 = vmatpush2.bf16.msra.mxu0 0
      %2845 = vmatprep.subr.bf16.mxu0 0
      %2846 = vmatpush2.bf16.msra.mxu0 0
      %2847 = vmatprep.subr.bf16.mxu0 0
      %2848 = vmatpush2.bf16.msra.mxu0 0
      %2849 = vmatprep.subr.bf16.mxu0 0
      %2850 = vmatpush2.bf16.msra.mxu0 0
      %2851 = vmatprep.mubr.bf16.mxu0 0
      %2852 = vmatmul.mubr.bf16.gmra.mxu0 %v2374
      %v2853 = vpop.f32.mrf.mxu0
      %v2854 = vadd.f32 %v2645, %v2853
      %v2855 = vpop.f32.mrf.mxu0
      %v2856 = vpop.f32.mrf.mxu0
      %v2857 = vpop.f32.mrf.mxu0
      %2858 = vdwg.mxu0
      %v2859 = vld [vmem:[%s608] sm:$0x7]
      %v2861 = vlaneseq
      %v2862 = vshrl.u32 %v2861, 7
      %v2863 = vsub.s32 0, %v2862
      %v2864 = vrot.slane %v2859, %v2863
      %v2865 = vlaneseq
      %v2866 = vshrl.u32 %v2865, 7
      %v2867 = vsub.s32 1, %v2866
      %v2868 = vrot.slane %v2859, %v2867
      %v2869 = vlaneseq
      %v2870 = vshrl.u32 %v2869, 7
      %v2871 = vsub.s32 2, %v2870
      %v2872 = vrot.slane %v2859, %v2871
      %v2876 = vadd.f32 %v2813, %v2864
      %v2877 = vadd.f32 %v2815, %v2868
      %v2878 = vadd.f32 %v2854, %v2872
      %v2879 = vmax.f32 %v2876, 0.0
      %v2880 = vmax.f32 %v2877, 0.0
      %v2881 = vmax.f32 %v2878, 0.0
      %v2885 = vcombine.low %v2879, %v2880
      %v2887 = vunpack.c.l.s4 1983009808
      %v2888 = vunpack.c.0.s8 %v2887
      %v2889 = vlaneseq
      %v2890 = vshrl.u32 %v2889, 7
      %v2891 = vsub.s32 %v2888, %v2890
      %v2892 = vrot.slane %v2885, %v2891
      %v2894 = vunpack.c.l.s4 1983009808
      %v2895 = vunpack.c.0.s8 %v2894
      %v2896 = vlaneseq
      %v2897 = vshrl.u32 %v2896, 7
      %v2898 = vsub.s32 %v2895, %v2897
      %v2899 = vrot.slane %v2881, %v2898
      %v2900 = vcombine.low %v2892, %v2899
      %2902 = vst [vmem:[%s613] sm:$0x3f] %v2900
      %p2903 = scmp.lt.s32.totalorder %s24, 2
      %s2904 = scalar_select %p2903, %s24, 2
      %s2905 = smul.addr %s2904, 3
      %s2906 = smul.addr %s2905, 2
      %s2907 = scalar_lea.vmem %s13, %s2906
      // Predicated region
      $region73: #{bag_reid_forward.1} parent=71 // pred_check
        %p2908 = pneg %p370
      $region74: #{bag_reid_forward.1} parent=71 // pred_check_branch
        %2910 = sbr.rel (%p2908) target = $region76
      $region75: #{bag_reid_forward.1} parent=71 // pred_region
        _
      $region76: #{bag_reid_forward.1} parent=71 // pred_fallthru
        _
    $region72: #{bag_reid_forward.1} parent=5 // pred_fallthru
      _
    %p2911 = scmp.le.s32.totalorder 2, %s19
    // Predicated region
    $region77: #{bag_reid_forward.1} parent=5 // pred_check
      %p2912 = pneg %p2911
    $region78: #{bag_reid_forward.1} parent=5 // pred_check_branch
      %2914 = sbr.rel (%p2912) target = $region80
    $region79: #{bag_reid_forward.1} parent=5 // pred_region
      %s2915 = ssub.s32 %s19, 2
      // Predicated region
      $region81: #{bag_reid_forward.1} parent=79 // pred_check
        %p2916 = pneg %p376
      $region82: #{bag_reid_forward.1} parent=79 // pred_check_branch
        %2918 = sbr.rel (%p2916) target = $region84
      $region83: #{bag_reid_forward.1} parent=79 // pred_region
        %p2919 = scmp.lt.s32.totalorder %s25, 2
        %s2920 = scalar_select %p2919, %s25, 2
        %s2921 = smul.addr %s2920, 3
        %s2922 = smul.addr %s2921, 2
        %s2923 = scalar_lea.vmem %s13, %s2922
      $region84: #{bag_reid_forward.1} parent=79 // pred_fallthru
        _
    $region80: #{bag_reid_forward.1} parent=5 // pred_fallthru
      _
  $region6: #{bag_reid_forward.1} parent=0 // loop_footer
    %s23 = sadd.s32 1, %s19
  $region7: #{bag_reid_forward.1} parent=0 // loop_footer_branch
    %18 = sbr.rel target = $region3
  $region8: #{bag_reid_forward.1} parent=0 // loop_exit
    _

</llo_original>
